<compile_context>
chip_gen: v7x
topology: tpu7x:2x2x1
jax: 0.10.0
libtpu: 0.0.40
codegen_flags: <defaults>
</compile_context>

<pallas_src>
import functools
import math

import jax
import jax.numpy as jnp
from jax import lax
from jax.experimental import pallas as pl
from jax.experimental.pallas import tpu as pltpu


_VMEM_LIMIT = 48 * 1024 * 1024   # requested scoped VMEM (fits v7x's 64 MiB)
_VMEM_BUDGET = 30 * 1024 * 1024  # working-set budget used to size tiles


# --------------------------------- helpers -----------------------------------
def _round_up(n, m):
    return ((n + m - 1) // m) * m


def _pick_tile(n, target, quantum):
    """Largest tile <= target that divides n (n must be a multiple of quantum)."""
    t = min(target, n)
    t = max(quantum, (t // quantum) * quantum)
    while n % t:
        t -= quantum
    return t


def _pick_unroll(Bp, Hp):
    """Rough vreg-pressure heuristic: per-step live set scales with Bp*Hp."""
    vregs_per_state = max(1, (Bp * Hp * 4) // 4096)   # one f32 (B,Hp) slab
    if vregs_per_state <= 4:
        return 8
    if vregs_per_state <= 16:
        return 4
    return 2


def _plan_time_chunks(T, Bp, Hp, budget_bytes, cap=256):
    """Derive the recurrence time-chunk size from a VMEM byte budget."""
    # resident: W_ih + W_hh (bf16, single-buffered), bias, state buffers.
    fixed = 2 * Hp * (4 * Hp) * 2 + 4 * Hp * 4 + 32 * Bp * Hp
    # per time step: 2x bf16 x buffers + 2x bf16 y buffers + f32 p scratch.
    per_t = 24 * Bp * Hp
    avail = max(budget_bytes - fixed, per_t)
    t_blk = int(max(1, min(cap, avail // per_t, T)))
    n_chunks = -(-T // t_blk)
    t_last = T - (n_chunks - 1) * t_blk
    return t_blk, n_chunks, n_chunks * t_blk, t_last


def _plan_proj_tiles(T8, Bp, Hp, Vp, budget_bytes):
    """Time/vocab tiles for the output projection (T8 is a multiple of 8)."""
    t_out = _pick_tile(T8, 128, 8)
    tv = _pick_tile(Vp, 2048, 128)

    def ws(to, tvv):
        return (2 * Bp * to * Hp * 2     # x bf16, double-buffered
                + 2 * Hp * tvv * 2       # W slab bf16
                + 2 * tvv * 4            # bias
                + 2 * Bp * to * tvv * 4)  # f32 logits block

    while ws(t_out, tv) > budget_bytes and tv > 128:
        tv = _pick_tile(Vp, max(128, tv // 2), 128)
    while ws(t_out, tv) > budget_bytes and t_out > 8:
        t_out = _pick_tile(T8, max(8, t_out // 2), 8)
    return t_out, tv


# ----------------------- fused LSTM layer (proj + recurrence) -----------------
def _lstm_rec_kernel(x_ref, wih_ref, whh_ref, b_ref, h0_ref, c0_ref,
                     y_ref, hN_ref, cN_ref,
                     h_scr, c_scr, p_scr, *, t_valid_last, unroll):
    t_blk, B, Hp = x_ref.shape
    n_chunks = pl.num_programs(0)

    @pl.when(pl.program_id(0) == 0)
    def _():
        h_scr[...] = h0_ref[...]
        c_scr[...] = c0_ref[...]

    # Fused input projection for the whole time chunk: one large MXU matmul
    # (bias folded in).  The (T,B,4Hp) intermediate never leaves VMEM.
    x2 = x_ref[...].reshape(t_blk * B, Hp)                       # free reshape
    p = jnp.dot(x2, wih_ref[...], preferred_element_type=jnp.float32) + b_ref[...]
    p_scr[...] = p.reshape(t_blk, B, 4 * Hp)

    whh = whh_ref[...]                    # (Hp, 4Hp) bf16, resident

    def step(t, carry):
        h, c = carry                      # h: (B,Hp) bf16, c: (B,Hp) f32
        gates = p_scr[t] + jnp.dot(h, whh, preferred_element_type=jnp.float32)
        i_g = jax.nn.sigmoid(gates[:, 0 * Hp:1 * Hp])   # lane-aligned slices
        f_g = jax.nn.sigmoid(gates[:, 1 * Hp:2 * Hp])
        g_g = jnp.tanh(gates[:, 2 * Hp:3 * Hp])
        o_g = jax.nn.sigmoid(gates[:, 3 * Hp:4 * Hp])
        c_new = f_g * c + i_g * g_g                     # fp32 cell state
        h_new = (o_g * jnp.tanh(c_new)).astype(jnp.bfloat16)
        y_ref[t] = h_new
        return (h_new, c_new)

    def run(n_steps):
        # (h, c) carried in registers; scratch touched once per chunk.
        h, c = lax.fori_loop(0, n_steps, step, (h_scr[...], c_scr[...]),
                             unroll=min(unroll, n_steps))
        h_scr[...] = h
        c_scr[...] = c

    if t_valid_last == t_blk:
        run(t_blk)
    else:
        # Statically-sized remainder chunk: last grid step runs fewer steps.
        is_last = pl.program_id(0) == n_chunks - 1

        @pl.when(jnp.logical_not(is_last))
        def _():
            run(t_blk)

        @pl.when(is_last)
        def _():
            run(t_valid_last)

    # Final state written every chunk (last write wins; grid is sequential).
    hN_ref[...] = h_scr[...]
    cN_ref[...] = c_scr[...]


def lstm_layer(x_tm, w_ih, w_hh, b, h0, c0, *, t_blk, t_valid_last):
    """x_tm: (T_pad, Bp, Hp) bf16 time-major activations.
       Returns y_tm (T_pad, Bp, Hp) bf16, h_final (Bp, Hp) bf16, c_final f32."""
    T_pad, B, Hp = x_tm.shape
    n_chunks = T_pad // t_blk
    unroll = _pick_unroll(B, Hp)
    kernel = functools.partial(_lstm_rec_kernel,
                               t_valid_last=t_valid_last, unroll=unroll)

    def const_spec(shape):
        # Constant-index inputs: single-buffered (no wasted second VMEM copy).
        return pl.BlockSpec(shape, lambda i: (0,) * len(shape),
                            pipeline_mode=pl.Buffered(1))

    return pl.pallas_call(
        kernel,
        out_shape=(
            jax.ShapeDtypeStruct((T_pad, B, Hp), jnp.bfloat16),  # y
            jax.ShapeDtypeStruct((B, Hp), jnp.bfloat16),         # h_final
            jax.ShapeDtypeStruct((B, Hp), jnp.float32),          # c_final
        ),
        grid=(n_chunks,),
        in_specs=[
            pl.BlockSpec((t_blk, B, Hp), lambda i: (i, 0, 0)),   # x chunk
            const_spec((Hp, 4 * Hp)),                            # W_ih
            const_spec((Hp, 4 * Hp)),                            # W_hh
            const_spec((1, 4 * Hp)),                             # folded bias
            const_spec((B, Hp)),                                 # h0
            const_spec((B, Hp)),                                 # c0
        ],
        out_specs=[
            pl.BlockSpec((t_blk, B, Hp), lambda i: (i, 0, 0)),
            pl.BlockSpec((B, Hp), lambda i: (0, 0)),
            pl.BlockSpec((B, Hp), lambda i: (0, 0)),
        ],
        scratch_shapes=[
            pltpu.VMEM((B, Hp), jnp.bfloat16),            # h across chunks
            pltpu.VMEM((B, Hp), jnp.float32),             # c across chunks
            pltpu.VMEM((t_blk, B, 4 * Hp), jnp.float32),  # fused projection
        ],
        compiler_params=pltpu.CompilerParams(
            # Recurrence: MUST stay sequential (never parallel/core_parallel).
            dimension_semantics=("arbitrary",),
            vmem_limit_bytes=_VMEM_LIMIT),
    )(x_tm, w_ih, w_hh, b, h0, c0)


# ---------------------------- output projection -------------------------------
def _proj_kernel(x_ref, w_ref, b_ref, o_ref):
    B, t_out, Hp = x_ref.shape
    tv = w_ref.shape[1]
    y = jnp.dot(x_ref[...].reshape(B * t_out, Hp), w_ref[...],
                preferred_element_type=jnp.float32) + b_ref[...]
    o_ref[...] = y.reshape(B, t_out, tv)


def output_projection(x_bm, w, b):
    """x_bm: (Bp, T8, Hp) bf16 batch-major; w: (Hp, Vp) bf16; b: (1, Vp) f32.
       Returns (Bp, T8, Vp) f32 logits — already batch-major, no HBM transpose."""
    B, T8, Hp = x_bm.shape
    Vp = w.shape[1]
    t_out, tv = _plan_proj_tiles(T8, B, Hp, Vp, _VMEM_BUDGET)
    nv, nt = Vp // tv, T8 // t_out
    return pl.pallas_call(
        _proj_kernel,
        out_shape=jax.ShapeDtypeStruct((B, T8, Vp), jnp.float32),
        # vocab-outer / time-inner: W_out is streamed from HBM exactly once.
        grid=(nv, nt),
        in_specs=[
            pl.BlockSpec((B, t_out, Hp), lambda j, i: (0, i, 0)),
            pl.BlockSpec((Hp, tv), lambda j, i: (0, j)),
            pl.BlockSpec((1, tv), lambda j, i: (0, j)),
        ],
        out_specs=pl.BlockSpec((B, t_out, tv), lambda j, i: (0, i, j)),
        compiler_params=pltpu.CompilerParams(
            dimension_semantics=("parallel", "parallel"),
            vmem_limit_bytes=_VMEM_LIMIT),
    )(x_bm, w, b)


# ------------------------------ parameter init --------------------------------
def init_params(key, n_input_tokens, state_size, num_layers, encoder_sos=True):
    vocab = n_input_tokens + 1 + int(encoder_sos)
    H = state_size
    Hp = _round_up(H, 128)      # per-gate lane padding
    Vp = _round_up(vocab, 128)  # lane-dense logits
    keys = jax.random.split(key, 3 + 4 * num_layers)
    ki = iter(keys)

    def xavier(k, shape):
        fan_out, fan_in = shape
        bound = math.sqrt(6.0 / (fan_in + fan_out))
        return jax.random.uniform(k, shape, jnp.float32, -bound, bound)

    def pad2(x, r, c):
        return jnp.pad(x, ((0, r - x.shape[0]), (0, c - x.shape[1])))

    bnd = 1.0 / math.sqrt(H)
    params = {}

    # Embedding (vocab, H), xavier uniform (embedding_init='xavier'); pad H.
    emb = xavier(next(ki), (vocab, H))
    params["embedding"] = pad2(emb, vocab, Hp).astype(jnp.bfloat16)

    # output_map = Linear(H, vocab): weight (vocab, H) xavier -> stored (H, vocab).
    w_out = xavier(next(ki), (vocab, H)).T
    params["w_out"] = pad2(w_out, Hp, Vp).astype(jnp.bfloat16)
    b_out = jax.random.uniform(next(ki), (1, vocab), jnp.float32, -bnd, bnd)
    params["b_out"] = pad2(b_out, 1, Vp)

    def pad_gated(w, rows):
        # (rows_in, 4*H) -> (rows, 4*Hp): pad each of the 4 gate blocks so gate
        # k occupies columns [k*Hp, (k+1)*Hp) in the padded layout.
        w4 = w.reshape(w.shape[0], 4, H)
        w4 = jnp.pad(w4, ((0, rows - w.shape[0]), (0, 0), (0, Hp - H)))
        return w4.reshape(rows, 4 * Hp)

    # LSTM layers (PyTorch default init U(-1/sqrt(H), 1/sqrt(H)); gate order i,f,g,o).
    layers = []
    for _ in range(num_layers):
        w_ih = jax.random.uniform(next(ki), (H, 4 * H), jnp.float32, -bnd, bnd)
        w_hh = jax.random.uniform(next(ki), (H, 4 * H), jnp.float32, -bnd, bnd)
        b_ih = jax.random.uniform(next(ki), (1, 4 * H), jnp.float32, -bnd, bnd)
        b_hh = jax.random.uniform(next(ki), (1, 4 * H), jnp.float32, -bnd, bnd)
        layers.append({
            "w_ih": pad_gated(w_ih, Hp).astype(jnp.bfloat16),
            "w_hh": pad_gated(w_hh, Hp).astype(jnp.bfloat16),
            "b": pad_gated(b_ih + b_hh, 1),            # folded bias, f32
        })
    params["lstm"] = layers
    return params


# --------------------------------- forward ------------------------------------
@functools.partial(jax.jit, static_argnames=("state_size", "vocab"))
def rnnlm_forward(params, src_tokens, src_len, *, state_size, vocab):
    """src_tokens: (B, T) int32 ids; src_len: (B,) int32.

    Returns RNNResult-equivalent dict: data (B,T,V) logits,
    hidden = (h (L,B,H), c (L,B,H)), length (B,).
    """
    B, T = src_tokens.shape
    Hp = params["w_out"].shape[0]
    Vp = params["w_out"].shape[1]
    Bp = _round_up(max(B, 8), 8)

    t_blk, _, T_pad, t_last = _plan_time_chunks(T, Bp, Hp, _VMEM_BUDGET)

    # Embedding gather directly into time-major (T_pad, Bp, Hp) layout.
    # TODO(synk): gather stays in plain JAX; a DMA-gather kernel is not
    #             worthwhile at these sizes.  Padded rows/steps never affect
    #             real outputs (they are skipped in the recurrence).
    tok = jnp.pad(src_tokens.astype(jnp.int32), ((0, Bp - B), (0, T_pad - T)))
    x_tm = jnp.take(params["embedding"], tok.T, axis=0)      # (T_pad, Bp, Hp) bf16

    h0 = jnp.zeros((Bp, Hp), jnp.bfloat16)
    c0 = jnp.zeros((Bp, Hp), jnp.float32)
    h_fin, c_fin = [], []
    for layer in params["lstm"]:
        x_tm, hN, cN = lstm_layer(x_tm, layer["w_ih"], layer["w_hh"], layer["b"],
                                  h0, c0, t_blk=t_blk, t_valid_last=t_last)
        h_fin.append(hN.astype(jnp.float32)[:B, :state_size])
        c_fin.append(cN[:B, :state_size])

    # Small batch-major relayout of the (B,T,Hp) activations (cheap), so the
    # projection kernel writes the big (B,T,Vp) logits in final layout.
    T8 = _round_up(T, 8)
    x_bm = jnp.transpose(x_tm[:T], (1, 0, 2))                 # (Bp, T, Hp) bf16
    if T8 != T:
        x_bm = jnp.pad(x_bm, ((0, 0), (0, T8 - T), (0, 0)))
    logits = output_projection(x_bm, params["w_out"], params["b_out"])
    logits = logits[:B, :T, :vocab]                           # (B, T, V)

    hidden = (jnp.stack(h_fin, axis=0), jnp.stack(c_fin, axis=0))
    return {"data": logits, "hidden": hidden, "length": src_len}


# ---------------------------- pure-JAX reference -------------------------------
def _reference_forward(params, src_tokens, src_len, *, state_size, vocab):
    B, T = src_tokens.shape
    Hp = params["w_out"].shape[0]
    Bp = _round_up(max(B, 8), 8)
    tok = jnp.pad(src_tokens.astype(jnp.int32), ((0, Bp - B), (0, 0)))
    x = jnp.take(params["embedding"].astype(jnp.float32), tok.T, axis=0)
    h_fin, c_fin = [], []
    for layer in params["lstm"]:
        w_ih = layer["w_ih"].astype(jnp.float32)
        w_hh = layer["w_hh"].astype(jnp.float32)
        b = layer["b"]

        def step(carry, x_t, w_ih=w_ih, w_hh=w_hh, b=b):
            h, c = carry
            g = x_t @ w_ih + h @ w_hh + b
            i = jax.nn.sigmoid(g[:, :Hp])
            f = jax.nn.sigmoid(g[:, Hp:2 * Hp])
            gg = jnp.tanh(g[:, 2 * Hp:3 * Hp])
            o = jax.nn.sigmoid(g[:, 3 * Hp:])
            c = f * c + i * gg
            h = o * jnp.tanh(c)
            return (h, c), h

        init = (jnp.zeros((Bp, Hp), jnp.float32), jnp.zeros((Bp, Hp), jnp.float32))
        (hN, cN), y = lax.scan(step, init, x)
        x = y
        h_fin.append(hN[:B, :state_size])
        c_fin.append(cN[:B, :state_size])
    logits = x @ params["w_out"].astype(jnp.float32) + params["b_out"]
    logits = jnp.transpose(logits, (1, 0, 2))[:B, :, :vocab]
    return {"data": logits,
            "hidden": (jnp.stack(h_fin, 0), jnp.stack(c_fin, 0)),
            "length": src_len}


# ----------------------------------- main --------------------------------------
if __name__ == "__main__":
    n_input_tokens = 10        # vocab = 10 + 1 (eos) + 1 (sos) = 12
    state_size = 32
    num_layers = 2
    B, T = 2, 8
    vocab = n_input_tokens + 2

    key = jax.random.PRNGKey(0)
    kp, kt = jax.random.split(key, 2)
    params = init_params(kp, n_input_tokens, state_size, num_layers)

    src = jax.random.randint(kt, (B, T), 0, vocab, dtype=jnp.int32)
    src_len = jnp.full((B,), T, dtype=jnp.int32)

    result = rnnlm_forward(params, src, src_len,
                           state_size=state_size, vocab=vocab)
    jax.block_until_ready(result)

    assert result["data"].shape == (B, T, vocab)
    assert result["hidden"][0].shape == (num_layers, B, state_size)
    assert result["hidden"][1].shape == (num_layers, B, state_size)

    ref = _reference_forward(params, src, src_len,
                             state_size=state_size, vocab=vocab)
    jax.block_until_ready(ref)
    err_logits = float(jnp.max(jnp.abs(result["data"] - ref["data"])))
    err_h = float(jnp.max(jnp.abs(result["hidden"][0] - ref["hidden"][0])))
    err_c = float(jnp.max(jnp.abs(result["hidden"][1] - ref["hidden"][1])))
    assert err_logits < 5e-2 and err_h < 5e-2 and err_c < 5e-2, \
        (err_logits, err_h, err_c)

    print("KERNEL_OK")
</pallas_src>

<mosaic_0001>
module attributes {stable_mosaic.version = 11 : i64} {
  func.func @_lstm_rec_kernel(%arg0: i32, %arg1: memref<8x8x128xbf16, #tpu.memory_space<vmem>>, %arg2: memref<128x512xbf16, #tpu.memory_space<vmem>>, %arg3: memref<128x512xbf16, #tpu.memory_space<vmem>>, %arg4: memref<1x512xf32, #tpu.memory_space<vmem>>, %arg5: memref<8x128xbf16, #tpu.memory_space<vmem>>, %arg6: memref<8x128xf32, #tpu.memory_space<vmem>>, %arg7: memref<8x8x128xbf16, #tpu.memory_space<vmem>>, %arg8: memref<8x128xbf16, #tpu.memory_space<vmem>>, %arg9: memref<8x128xf32, #tpu.memory_space<vmem>>, %arg10: memref<8x128xbf16, #tpu.memory_space<vmem>>, %arg11: memref<8x128xf32, #tpu.memory_space<vmem>>, %arg12: memref<8x8x512xf32, #tpu.memory_space<vmem>>) attributes {dimension_semantics = [#tpu.dimension_semantics<arbitrary>], iteration_bounds = array<i64: 1>, scalar_prefetch = 0 : i64, scratch_operands = 3 : i64, tpu.core_type = #tpu.core_type<tc>, window_params = [{transform_indices = @transform_0, window_bounds = array<i64: 8, 8, 128>}, {pipeline_mode = #tpu.pipeline_mode<synchronous>, transform_indices = @transform_1, window_bounds = array<i64: 128, 512>}, {pipeline_mode = #tpu.pipeline_mode<synchronous>, transform_indices = @transform_2, window_bounds = array<i64: 128, 512>}, {pipeline_mode = #tpu.pipeline_mode<synchronous>, transform_indices = @transform_3, window_bounds = array<i64: 1, 512>}, {pipeline_mode = #tpu.pipeline_mode<synchronous>, transform_indices = @transform_4, window_bounds = array<i64: 8, 128>}, {pipeline_mode = #tpu.pipeline_mode<synchronous>, transform_indices = @transform_5, window_bounds = array<i64: 8, 128>}, {transform_indices = @transform_6, window_bounds = array<i64: 8, 8, 128>}, {pipeline_mode = #tpu.pipeline_mode<synchronous>, transform_indices = @transform_7, window_bounds = array<i64: 8, 128>}, {pipeline_mode = #tpu.pipeline_mode<synchronous>, transform_indices = @transform_8, window_bounds = array<i64: 8, 128>}]} {
    %c0_i32 = arith.constant 0 : i32
    %0 = arith.cmpi eq, %arg0, %c0_i32 : i32
    %1 = arith.extui %0 : i1 to i32
    %c0_i32_0 = arith.constant 0 : i32
    %2 = arith.cmpi ne, %1, %c0_i32_0 : i32
    scf.if %2 {
      %c0_93 = arith.constant 0 : index
      %c0_94 = arith.constant 0 : index
      %301 = vector.load %arg5[%c0_93, %c0_94] : memref<8x128xbf16, #tpu.memory_space<vmem>>, vector<8x128xbf16>
      %c0_95 = arith.constant 0 : index
      %c0_96 = arith.constant 0 : index
      %302 = vector.load %arg10[%c0_95, %c0_96] : memref<8x128xbf16, #tpu.memory_space<vmem>>, vector<8x128xbf16>
      tpu.vector_store %arg10[%c0_95, %c0_96], %301 {strides = array<i32>} : memref<8x128xbf16, #tpu.memory_space<vmem>>, vector<8x128xbf16>,
      %c0_97 = arith.constant 0 : index
      %c0_98 = arith.constant 0 : index
      %303 = vector.load %arg6[%c0_97, %c0_98] : memref<8x128xf32, #tpu.memory_space<vmem>>, vector<8x128xf32>
      %c0_99 = arith.constant 0 : index
      %c0_100 = arith.constant 0 : index
      %304 = vector.load %arg11[%c0_99, %c0_100] : memref<8x128xf32, #tpu.memory_space<vmem>>, vector<8x128xf32>
      tpu.vector_store %arg11[%c0_99, %c0_100], %303 {strides = array<i32>} : memref<8x128xf32, #tpu.memory_space<vmem>>, vector<8x128xf32>,
    } else {
    }
    %c0 = arith.constant 0 : index
    %c0_1 = arith.constant 0 : index
    %c0_2 = arith.constant 0 : index
    %3 = vector.load %arg1[%c0, %c0_1, %c0_2] : memref<8x8x128xbf16, #tpu.memory_space<vmem>>, vector<8x8x128xbf16>
    %4 = vector.shape_cast %3 : vector<8x8x128xbf16> to vector<64x128xbf16>
    %c0_3 = arith.constant 0 : index
    %c0_4 = arith.constant 0 : index
    %5 = vector.load %arg2[%c0_3, %c0_4] : memref<128x512xbf16, #tpu.memory_space<vmem>>, vector<128x512xbf16>
    %cst = arith.constant dense<0.000000e+00> : vector<64x512xf32>
    %6 = tpu.matmul %4, %5, %cst {dimension_numbers = #tpu.dot_dimension_numbers<[1], [0], [0], [1], [0, 0, 1, 1], [], []>} : vector<64x128xbf16>, vector<128x512xbf16>, vector<64x512xf32> -> vector<64x512xf32>
    %c0_5 = arith.constant 0 : index
    %c0_6 = arith.constant 0 : index
    %7 = vector.load %arg4[%c0_5, %c0_6] : memref<1x512xf32, #tpu.memory_space<vmem>>, vector<1x512xf32>
    %8 = vector.broadcast %7 : vector<1x512xf32> to vector<64x512xf32>
    %9 = arith.addf %6, %8 : vector<64x512xf32>
    %10 = vector.shape_cast %9 : vector<64x512xf32> to vector<8x8x512xf32>
    %c0_7 = arith.constant 0 : index
    %c0_8 = arith.constant 0 : index
    %c0_9 = arith.constant 0 : index
    %11 = vector.load %arg12[%c0_7, %c0_8, %c0_9] : memref<8x8x512xf32, #tpu.memory_space<vmem>>, vector<8x8x512xf32>
    tpu.vector_store %arg12[%c0_7, %c0_8, %c0_9], %10 {strides = array<i32>} : memref<8x8x512xf32, #tpu.memory_space<vmem>>, vector<8x8x512xf32>,
    %c0_10 = arith.constant 0 : index
    %c0_11 = arith.constant 0 : index
    %12 = vector.load %arg3[%c0_10, %c0_11] : memref<128x512xbf16, #tpu.memory_space<vmem>>, vector<128x512xbf16>
    %c0_12 = arith.constant 0 : index
    %c0_13 = arith.constant 0 : index
    %13 = vector.load %arg10[%c0_12, %c0_13] : memref<8x128xbf16, #tpu.memory_space<vmem>>, vector<8x128xbf16>
    %c0_14 = arith.constant 0 : index
    %c0_15 = arith.constant 0 : index
    %14 = vector.load %arg11[%c0_14, %c0_15] : memref<8x128xf32, #tpu.memory_space<vmem>>, vector<8x128xf32>
    %c0_i32_16 = arith.constant 0 : i32
    %15 = arith.index_cast %c0_i32_16 : i32 to index
    %c0_17 = arith.constant 0 : index
    %c0_18 = arith.constant 0 : index
    %16 = vector.load %arg12[%15, %c0_17, %c0_18] : memref<8x8x512xf32, #tpu.memory_space<vmem>>, vector<1x8x512xf32>
    %17 = vector.shape_cast %16 : vector<1x8x512xf32> to vector<8x512xf32>
    %cst_19 = arith.constant dense<0.000000e+00> : vector<8x512xf32>
    %18 = tpu.matmul %13, %12, %cst_19 {dimension_numbers = #tpu.dot_dimension_numbers<[1], [0], [0], [1], [0, 0, 1, 1], [], []>} : vector<8x128xbf16>, vector<128x512xbf16>, vector<8x512xf32> -> vector<8x512xf32>
    %19 = arith.addf %17, %18 : vector<8x512xf32>
    %20 = vector.extract_strided_slice %19 {offsets = [0, 0], sizes = [8, 128], strides = [1, 1]} : vector<8x512xf32> to vector<8x128xf32>
    %21 = arith.negf %20 : vector<8x128xf32>
    %22 = math.exp %21 : vector<8x128xf32>
    %cst_20 = arith.constant 1.000000e+00 : f32
    %23 = vector.broadcast %cst_20 : f32 to vector<8x128xf32>
    %24 = arith.addf %23, %22 : vector<8x128xf32>
    %25 = arith.divf %23, %24 : vector<8x128xf32>
    %26 = vector.extract_strided_slice %19 {offsets = [0, 128], sizes = [8, 128], strides = [1, 1]} : vector<8x512xf32> to vector<8x128xf32>
    %27 = arith.negf %26 : vector<8x128xf32>
    %28 = math.exp %27 : vector<8x128xf32>
    %cst_21 = arith.constant 1.000000e+00 : f32
    %29 = vector.broadcast %cst_21 : f32 to vector<8x128xf32>
    %30 = arith.addf %29, %28 : vector<8x128xf32>
    %31 = arith.divf %29, %30 : vector<8x128xf32>
    %32 = vector.extract_strided_slice %19 {offsets = [0, 256], sizes = [8, 128], strides = [1, 1]} : vector<8x512xf32> to vector<8x128xf32>
    %33 = math.tanh %32 : vector<8x128xf32>
    %34 = vector.extract_strided_slice %19 {offsets = [0, 384], sizes = [8, 128], strides = [1, 1]} : vector<8x512xf32> to vector<8x128xf32>
    %35 = arith.negf %34 : vector<8x128xf32>
    %36 = math.exp %35 : vector<8x128xf32>
    %cst_22 = arith.constant 1.000000e+00 : f32
    %37 = vector.broadcast %cst_22 : f32 to vector<8x128xf32>
    %38 = arith.addf %37, %36 : vector<8x128xf32>
    %39 = arith.divf %37, %38 : vector<8x128xf32>
    %40 = arith.mulf %31, %14 : vector<8x128xf32>
    %41 = arith.mulf %25, %33 : vector<8x128xf32>
    %42 = arith.addf %40, %41 : vector<8x128xf32>
    %43 = math.tanh %42 : vector<8x128xf32>
    %44 = arith.mulf %39, %43 : vector<8x128xf32>
    %45 = arith.truncf %44 : vector<8x128xf32> to vector<8x128xbf16>
    %46 = arith.index_cast %c0_i32_16 : i32 to index
    %c0_23 = arith.constant 0 : index
    %c0_24 = arith.constant 0 : index
    %47 = vector.load %arg7[%46, %c0_23, %c0_24] : memref<8x8x128xbf16, #tpu.memory_space<vmem>>, vector<1x8x128xbf16>
    %48 = vector.shape_cast %47 : vector<1x8x128xbf16> to vector<8x128xbf16>
    %49 = vector.shape_cast %45 : vector<8x128xbf16> to vector<1x8x128xbf16>
    tpu.vector_store %arg7[%46, %c0_23, %c0_24], %49 {strides = array<i32>} : memref<8x8x128xbf16, #tpu.memory_space<vmem>>, vector<1x8x128xbf16>,
    %c1_i32 = arith.constant 1 : i32
    %50 = arith.index_cast %c1_i32 : i32 to index
    %c0_25 = arith.constant 0 : index
    %c0_26 = arith.constant 0 : index
    %51 = vector.load %arg12[%50, %c0_25, %c0_26] : memref<8x8x512xf32, #tpu.memory_space<vmem>>, vector<1x8x512xf32>
    %52 = vector.shape_cast %51 : vector<1x8x512xf32> to vector<8x512xf32>
    %cst_27 = arith.constant dense<0.000000e+00> : vector<8x512xf32>
    %53 = tpu.matmul %45, %12, %cst_27 {dimension_numbers = #tpu.dot_dimension_numbers<[1], [0], [0], [1], [0, 0, 1, 1], [], []>} : vector<8x128xbf16>, vector<128x512xbf16>, vector<8x512xf32> -> vector<8x512xf32>
    %54 = arith.addf %52, %53 : vector<8x512xf32>
    %55 = vector.extract_strided_slice %54 {offsets = [0, 0], sizes = [8, 128], strides = [1, 1]} : vector<8x512xf32> to vector<8x128xf32>
    %56 = arith.negf %55 : vector<8x128xf32>
    %57 = math.exp %56 : vector<8x128xf32>
    %cst_28 = arith.constant 1.000000e+00 : f32
    %58 = vector.broadcast %cst_28 : f32 to vector<8x128xf32>
    %59 = arith.addf %58, %57 : vector<8x128xf32>
    %60 = arith.divf %58, %59 : vector<8x128xf32>
    %61 = vector.extract_strided_slice %54 {offsets = [0, 128], sizes = [8, 128], strides = [1, 1]} : vector<8x512xf32> to vector<8x128xf32>
    %62 = arith.negf %61 : vector<8x128xf32>
    %63 = math.exp %62 : vector<8x128xf32>
    %cst_29 = arith.constant 1.000000e+00 : f32
    %64 = vector.broadcast %cst_29 : f32 to vector<8x128xf32>
    %65 = arith.addf %64, %63 : vector<8x128xf32>
    %66 = arith.divf %64, %65 : vector<8x128xf32>
    %67 = vector.extract_strided_slice %54 {offsets = [0, 256], sizes = [8, 128], strides = [1, 1]} : vector<8x512xf32> to vector<8x128xf32>
    %68 = math.tanh %67 : vector<8x128xf32>
    %69 = vector.extract_strided_slice %54 {offsets = [0, 384], sizes = [8, 128], strides = [1, 1]} : vector<8x512xf32> to vector<8x128xf32>
    %70 = arith.negf %69 : vector<8x128xf32>
    %71 = math.exp %70 : vector<8x128xf32>
    %cst_30 = arith.constant 1.000000e+00 : f32
    %72 = vector.broadcast %cst_30 : f32 to vector<8x128xf32>
    %73 = arith.addf %72, %71 : vector<8x128xf32>
    %74 = arith.divf %72, %73 : vector<8x128xf32>
    %75 = arith.mulf %66, %42 : vector<8x128xf32>
    %76 = arith.mulf %60, %68 : vector<8x128xf32>
    %77 = arith.addf %75, %76 : vector<8x128xf32>
    %78 = math.tanh %77 : vector<8x128xf32>
    %79 = arith.mulf %74, %78 : vector<8x128xf32>
    %80 = arith.truncf %79 : vector<8x128xf32> to vector<8x128xbf16>
    %81 = arith.index_cast %c1_i32 : i32 to index
    %c0_31 = arith.constant 0 : index
    %c0_32 = arith.constant 0 : index
    %82 = vector.load %arg7[%81, %c0_31, %c0_32] : memref<8x8x128xbf16, #tpu.memory_space<vmem>>, vector<1x8x128xbf16>
    %83 = vector.shape_cast %82 : vector<1x8x128xbf16> to vector<8x128xbf16>
    %84 = vector.shape_cast %80 : vector<8x128xbf16> to vector<1x8x128xbf16>
    tpu.vector_store %arg7[%81, %c0_31, %c0_32], %84 {strides = array<i32>} : memref<8x8x128xbf16, #tpu.memory_space<vmem>>, vector<1x8x128xbf16>,
    %c2_i32 = arith.constant 2 : i32
    %85 = arith.index_cast %c2_i32 : i32 to index
    %c0_33 = arith.constant 0 : index
    %c0_34 = arith.constant 0 : index
    %86 = vector.load %arg12[%85, %c0_33, %c0_34] : memref<8x8x512xf32, #tpu.memory_space<vmem>>, vector<1x8x512xf32>
    %87 = vector.shape_cast %86 : vector<1x8x512xf32> to vector<8x512xf32>
    %cst_35 = arith.constant dense<0.000000e+00> : vector<8x512xf32>
    %88 = tpu.matmul %80, %12, %cst_35 {dimension_numbers = #tpu.dot_dimension_numbers<[1], [0], [0], [1], [0, 0, 1, 1], [], []>} : vector<8x128xbf16>, vector<128x512xbf16>, vector<8x512xf32> -> vector<8x512xf32>
    %89 = arith.addf %87, %88 : vector<8x512xf32>
    %90 = vector.extract_strided_slice %89 {offsets = [0, 0], sizes = [8, 128], strides = [1, 1]} : vector<8x512xf32> to vector<8x128xf32>
    %91 = arith.negf %90 : vector<8x128xf32>
    %92 = math.exp %91 : vector<8x128xf32>
    %cst_36 = arith.constant 1.000000e+00 : f32
    %93 = vector.broadcast %cst_36 : f32 to vector<8x128xf32>
    %94 = arith.addf %93, %92 : vector<8x128xf32>
    %95 = arith.divf %93, %94 : vector<8x128xf32>
    %96 = vector.extract_strided_slice %89 {offsets = [0, 128], sizes = [8, 128], strides = [1, 1]} : vector<8x512xf32> to vector<8x128xf32>
    %97 = arith.negf %96 : vector<8x128xf32>
    %98 = math.exp %97 : vector<8x128xf32>
    %cst_37 = arith.constant 1.000000e+00 : f32
    %99 = vector.broadcast %cst_37 : f32 to vector<8x128xf32>
    %100 = arith.addf %99, %98 : vector<8x128xf32>
    %101 = arith.divf %99, %100 : vector<8x128xf32>
    %102 = vector.extract_strided_slice %89 {offsets = [0, 256], sizes = [8, 128], strides = [1, 1]} : vector<8x512xf32> to vector<8x128xf32>
    %103 = math.tanh %102 : vector<8x128xf32>
    %104 = vector.extract_strided_slice %89 {offsets = [0, 384], sizes = [8, 128], strides = [1, 1]} : vector<8x512xf32> to vector<8x128xf32>
    %105 = arith.negf %104 : vector<8x128xf32>
    %106 = math.exp %105 : vector<8x128xf32>
    %cst_38 = arith.constant 1.000000e+00 : f32
    %107 = vector.broadcast %cst_38 : f32 to vector<8x128xf32>
    %108 = arith.addf %107, %106 : vector<8x128xf32>
    %109 = arith.divf %107, %108 : vector<8x128xf32>
    %110 = arith.mulf %101, %77 : vector<8x128xf32>
    %111 = arith.mulf %95, %103 : vector<8x128xf32>
    %112 = arith.addf %110, %111 : vector<8x128xf32>
    %113 = math.tanh %112 : vector<8x128xf32>
    %114 = arith.mulf %109, %113 : vector<8x128xf32>
    %115 = arith.truncf %114 : vector<8x128xf32> to vector<8x128xbf16>
    %116 = arith.index_cast %c2_i32 : i32 to index
    %c0_39 = arith.constant 0 : index
    %c0_40 = arith.constant 0 : index
    %117 = vector.load %arg7[%116, %c0_39, %c0_40] : memref<8x8x128xbf16, #tpu.memory_space<vmem>>, vector<1x8x128xbf16>
    %118 = vector.shape_cast %117 : vector<1x8x128xbf16> to vector<8x128xbf16>
    %119 = vector.shape_cast %115 : vector<8x128xbf16> to vector<1x8x128xbf16>
    tpu.vector_store %arg7[%116, %c0_39, %c0_40], %119 {strides = array<i32>} : memref<8x8x128xbf16, #tpu.memory_space<vmem>>, vector<1x8x128xbf16>,
    %c3_i32 = arith.constant 3 : i32
    %120 = arith.index_cast %c3_i32 : i32 to index
    %c0_41 = arith.constant 0 : index
    %c0_42 = arith.constant 0 : index
    %121 = vector.load %arg12[%120, %c0_41, %c0_42] : memref<8x8x512xf32, #tpu.memory_space<vmem>>, vector<1x8x512xf32>
    %122 = vector.shape_cast %121 : vector<1x8x512xf32> to vector<8x512xf32>
    %cst_43 = arith.constant dense<0.000000e+00> : vector<8x512xf32>
    %123 = tpu.matmul %115, %12, %cst_43 {dimension_numbers = #tpu.dot_dimension_numbers<[1], [0], [0], [1], [0, 0, 1, 1], [], []>} : vector<8x128xbf16>, vector<128x512xbf16>, vector<8x512xf32> -> vector<8x512xf32>
    %124 = arith.addf %122, %123 : vector<8x512xf32>
    %125 = vector.extract_strided_slice %124 {offsets = [0, 0], sizes = [8, 128], strides = [1, 1]} : vector<8x512xf32> to vector<8x128xf32>
    %126 = arith.negf %125 : vector<8x128xf32>
    %127 = math.exp %126 : vector<8x128xf32>
    %cst_44 = arith.constant 1.000000e+00 : f32
    %128 = vector.broadcast %cst_44 : f32 to vector<8x128xf32>
    %129 = arith.addf %128, %127 : vector<8x128xf32>
    %130 = arith.divf %128, %129 : vector<8x128xf32>
    %131 = vector.extract_strided_slice %124 {offsets = [0, 128], sizes = [8, 128], strides = [1, 1]} : vector<8x512xf32> to vector<8x128xf32>
    %132 = arith.negf %131 : vector<8x128xf32>
    %133 = math.exp %132 : vector<8x128xf32>
    %cst_45 = arith.constant 1.000000e+00 : f32
    %134 = vector.broadcast %cst_45 : f32 to vector<8x128xf32>
    %135 = arith.addf %134, %133 : vector<8x128xf32>
    %136 = arith.divf %134, %135 : vector<8x128xf32>
    %137 = vector.extract_strided_slice %124 {offsets = [0, 256], sizes = [8, 128], strides = [1, 1]} : vector<8x512xf32> to vector<8x128xf32>
    %138 = math.tanh %137 : vector<8x128xf32>
    %139 = vector.extract_strided_slice %124 {offsets = [0, 384], sizes = [8, 128], strides = [1, 1]} : vector<8x512xf32> to vector<8x128xf32>
    %140 = arith.negf %139 : vector<8x128xf32>
    %141 = math.exp %140 : vector<8x128xf32>
    %cst_46 = arith.constant 1.000000e+00 : f32
    %142 = vector.broadcast %cst_46 : f32 to vector<8x128xf32>
    %143 = arith.addf %142, %141 : vector<8x128xf32>
    %144 = arith.divf %142, %143 : vector<8x128xf32>
    %145 = arith.mulf %136, %112 : vector<8x128xf32>
    %146 = arith.mulf %130, %138 : vector<8x128xf32>
    %147 = arith.addf %145, %146 : vector<8x128xf32>
    %148 = math.tanh %147 : vector<8x128xf32>
    %149 = arith.mulf %144, %148 : vector<8x128xf32>
    %150 = arith.truncf %149 : vector<8x128xf32> to vector<8x128xbf16>
    %151 = arith.index_cast %c3_i32 : i32 to index
    %c0_47 = arith.constant 0 : index
    %c0_48 = arith.constant 0 : index
    %152 = vector.load %arg7[%151, %c0_47, %c0_48] : memref<8x8x128xbf16, #tpu.memory_space<vmem>>, vector<1x8x128xbf16>
    %153 = vector.shape_cast %152 : vector<1x8x128xbf16> to vector<8x128xbf16>
    %154 = vector.shape_cast %150 : vector<8x128xbf16> to vector<1x8x128xbf16>
    tpu.vector_store %arg7[%151, %c0_47, %c0_48], %154 {strides = array<i32>} : memref<8x8x128xbf16, #tpu.memory_space<vmem>>, vector<1x8x128xbf16>,
    %c4_i32 = arith.constant 4 : i32
    %155 = arith.index_cast %c4_i32 : i32 to index
    %c0_49 = arith.constant 0 : index
    %c0_50 = arith.constant 0 : index
    %156 = vector.load %arg12[%155, %c0_49, %c0_50] : memref<8x8x512xf32, #tpu.memory_space<vmem>>, vector<1x8x512xf32>
    %157 = vector.shape_cast %156 : vector<1x8x512xf32> to vector<8x512xf32>
    %cst_51 = arith.constant dense<0.000000e+00> : vector<8x512xf32>
    %158 = tpu.matmul %150, %12, %cst_51 {dimension_numbers = #tpu.dot_dimension_numbers<[1], [0], [0], [1], [0, 0, 1, 1], [], []>} : vector<8x128xbf16>, vector<128x512xbf16>, vector<8x512xf32> -> vector<8x512xf32>
    %159 = arith.addf %157, %158 : vector<8x512xf32>
    %160 = vector.extract_strided_slice %159 {offsets = [0, 0], sizes = [8, 128], strides = [1, 1]} : vector<8x512xf32> to vector<8x128xf32>
    %161 = arith.negf %160 : vector<8x128xf32>
    %162 = math.exp %161 : vector<8x128xf32>
    %cst_52 = arith.constant 1.000000e+00 : f32
    %163 = vector.broadcast %cst_52 : f32 to vector<8x128xf32>
    %164 = arith.addf %163, %162 : vector<8x128xf32>
    %165 = arith.divf %163, %164 : vector<8x128xf32>
    %166 = vector.extract_strided_slice %159 {offsets = [0, 128], sizes = [8, 128], strides = [1, 1]} : vector<8x512xf32> to vector<8x128xf32>
    %167 = arith.negf %166 : vector<8x128xf32>
    %168 = math.exp %167 : vector<8x128xf32>
    %cst_53 = arith.constant 1.000000e+00 : f32
    %169 = vector.broadcast %cst_53 : f32 to vector<8x128xf32>
    %170 = arith.addf %169, %168 : vector<8x128xf32>
    %171 = arith.divf %169, %170 : vector<8x128xf32>
    %172 = vector.extract_strided_slice %159 {offsets = [0, 256], sizes = [8, 128], strides = [1, 1]} : vector<8x512xf32> to vector<8x128xf32>
    %173 = math.tanh %172 : vector<8x128xf32>
    %174 = vector.extract_strided_slice %159 {offsets = [0, 384], sizes = [8, 128], strides = [1, 1]} : vector<8x512xf32> to vector<8x128xf32>
    %175 = arith.negf %174 : vector<8x128xf32>
    %176 = math.exp %175 : vector<8x128xf32>
    %cst_54 = arith.constant 1.000000e+00 : f32
    %177 = vector.broadcast %cst_54 : f32 to vector<8x128xf32>
    %178 = arith.addf %177, %176 : vector<8x128xf32>
    %179 = arith.divf %177, %178 : vector<8x128xf32>
    %180 = arith.mulf %171, %147 : vector<8x128xf32>
    %181 = arith.mulf %165, %173 : vector<8x128xf32>
    %182 = arith.addf %180, %181 : vector<8x128xf32>
    %183 = math.tanh %182 : vector<8x128xf32>
    %184 = arith.mulf %179, %183 : vector<8x128xf32>
    %185 = arith.truncf %184 : vector<8x128xf32> to vector<8x128xbf16>
    %186 = arith.index_cast %c4_i32 : i32 to index
    %c0_55 = arith.constant 0 : index
    %c0_56 = arith.constant 0 : index
    %187 = vector.load %arg7[%186, %c0_55, %c0_56] : memref<8x8x128xbf16, #tpu.memory_space<vmem>>, vector<1x8x128xbf16>
    %188 = vector.shape_cast %187 : vector<1x8x128xbf16> to vector<8x128xbf16>
    %189 = vector.shape_cast %185 : vector<8x128xbf16> to vector<1x8x128xbf16>
    tpu.vector_store %arg7[%186, %c0_55, %c0_56], %189 {strides = array<i32>} : memref<8x8x128xbf16, #tpu.memory_space<vmem>>, vector<1x8x128xbf16>,
    %c5_i32 = arith.constant 5 : i32
    %190 = arith.index_cast %c5_i32 : i32 to index
    %c0_57 = arith.constant 0 : index
    %c0_58 = arith.constant 0 : index
    %191 = vector.load %arg12[%190, %c0_57, %c0_58] : memref<8x8x512xf32, #tpu.memory_space<vmem>>, vector<1x8x512xf32>
    %192 = vector.shape_cast %191 : vector<1x8x512xf32> to vector<8x512xf32>
    %cst_59 = arith.constant dense<0.000000e+00> : vector<8x512xf32>
    %193 = tpu.matmul %185, %12, %cst_59 {dimension_numbers = #tpu.dot_dimension_numbers<[1], [0], [0], [1], [0, 0, 1, 1], [], []>} : vector<8x128xbf16>, vector<128x512xbf16>, vector<8x512xf32> -> vector<8x512xf32>
    %194 = arith.addf %192, %193 : vector<8x512xf32>
    %195 = vector.extract_strided_slice %194 {offsets = [0, 0], sizes = [8, 128], strides = [1, 1]} : vector<8x512xf32> to vector<8x128xf32>
    %196 = arith.negf %195 : vector<8x128xf32>
    %197 = math.exp %196 : vector<8x128xf32>
    %cst_60 = arith.constant 1.000000e+00 : f32
    %198 = vector.broadcast %cst_60 : f32 to vector<8x128xf32>
    %199 = arith.addf %198, %197 : vector<8x128xf32>
    %200 = arith.divf %198, %199 : vector<8x128xf32>
    %201 = vector.extract_strided_slice %194 {offsets = [0, 128], sizes = [8, 128], strides = [1, 1]} : vector<8x512xf32> to vector<8x128xf32>
    %202 = arith.negf %201 : vector<8x128xf32>
    %203 = math.exp %202 : vector<8x128xf32>
    %cst_61 = arith.constant 1.000000e+00 : f32
    %204 = vector.broadcast %cst_61 : f32 to vector<8x128xf32>
    %205 = arith.addf %204, %203 : vector<8x128xf32>
    %206 = arith.divf %204, %205 : vector<8x128xf32>
    %207 = vector.extract_strided_slice %194 {offsets = [0, 256], sizes = [8, 128], strides = [1, 1]} : vector<8x512xf32> to vector<8x128xf32>
    %208 = math.tanh %207 : vector<8x128xf32>
    %209 = vector.extract_strided_slice %194 {offsets = [0, 384], sizes = [8, 128], strides = [1, 1]} : vector<8x512xf32> to vector<8x128xf32>
    %210 = arith.negf %209 : vector<8x128xf32>
    %211 = math.exp %210 : vector<8x128xf32>
    %cst_62 = arith.constant 1.000000e+00 : f32
    %212 = vector.broadcast %cst_62 : f32 to vector<8x128xf32>
    %213 = arith.addf %212, %211 : vector<8x128xf32>
    %214 = arith.divf %212, %213 : vector<8x128xf32>
    %215 = arith.mulf %206, %182 : vector<8x128xf32>
    %216 = arith.mulf %200, %208 : vector<8x128xf32>
    %217 = arith.addf %215, %216 : vector<8x128xf32>
    %218 = math.tanh %217 : vector<8x128xf32>
    %219 = arith.mulf %214, %218 : vector<8x128xf32>
    %220 = arith.truncf %219 : vector<8x128xf32> to vector<8x128xbf16>
    %221 = arith.index_cast %c5_i32 : i32 to index
    %c0_63 = arith.constant 0 : index
    %c0_64 = arith.constant 0 : index
    %222 = vector.load %arg7[%221, %c0_63, %c0_64] : memref<8x8x128xbf16, #tpu.memory_space<vmem>>, vector<1x8x128xbf16>
    %223 = vector.shape_cast %222 : vector<1x8x128xbf16> to vector<8x128xbf16>
    %224 = vector.shape_cast %220 : vector<8x128xbf16> to vector<1x8x128xbf16>
    tpu.vector_store %arg7[%221, %c0_63, %c0_64], %224 {strides = array<i32>} : memref<8x8x128xbf16, #tpu.memory_space<vmem>>, vector<1x8x128xbf16>,
    %c6_i32 = arith.constant 6 : i32
    %225 = arith.index_cast %c6_i32 : i32 to index
    %c0_65 = arith.constant 0 : index
    %c0_66 = arith.constant 0 : index
    %226 = vector.load %arg12[%225, %c0_65, %c0_66] : memref<8x8x512xf32, #tpu.memory_space<vmem>>, vector<1x8x512xf32>
    %227 = vector.shape_cast %226 : vector<1x8x512xf32> to vector<8x512xf32>
    %cst_67 = arith.constant dense<0.000000e+00> : vector<8x512xf32>
    %228 = tpu.matmul %220, %12, %cst_67 {dimension_numbers = #tpu.dot_dimension_numbers<[1], [0], [0], [1], [0, 0, 1, 1], [], []>} : vector<8x128xbf16>, vector<128x512xbf16>, vector<8x512xf32> -> vector<8x512xf32>
    %229 = arith.addf %227, %228 : vector<8x512xf32>
    %230 = vector.extract_strided_slice %229 {offsets = [0, 0], sizes = [8, 128], strides = [1, 1]} : vector<8x512xf32> to vector<8x128xf32>
    %231 = arith.negf %230 : vector<8x128xf32>
    %232 = math.exp %231 : vector<8x128xf32>
    %cst_68 = arith.constant 1.000000e+00 : f32
    %233 = vector.broadcast %cst_68 : f32 to vector<8x128xf32>
    %234 = arith.addf %233, %232 : vector<8x128xf32>
    %235 = arith.divf %233, %234 : vector<8x128xf32>
    %236 = vector.extract_strided_slice %229 {offsets = [0, 128], sizes = [8, 128], strides = [1, 1]} : vector<8x512xf32> to vector<8x128xf32>
    %237 = arith.negf %236 : vector<8x128xf32>
    %238 = math.exp %237 : vector<8x128xf32>
    %cst_69 = arith.constant 1.000000e+00 : f32
    %239 = vector.broadcast %cst_69 : f32 to vector<8x128xf32>
    %240 = arith.addf %239, %238 : vector<8x128xf32>
    %241 = arith.divf %239, %240 : vector<8x128xf32>
    %242 = vector.extract_strided_slice %229 {offsets = [0, 256], sizes = [8, 128], strides = [1, 1]} : vector<8x512xf32> to vector<8x128xf32>
    %243 = math.tanh %242 : vector<8x128xf32>
    %244 = vector.extract_strided_slice %229 {offsets = [0, 384], sizes = [8, 128], strides = [1, 1]} : vector<8x512xf32> to vector<8x128xf32>
    %245 = arith.negf %244 : vector<8x128xf32>
    %246 = math.exp %245 : vector<8x128xf32>
    %cst_70 = arith.constant 1.000000e+00 : f32
    %247 = vector.broadcast %cst_70 : f32 to vector<8x128xf32>
    %248 = arith.addf %247, %246 : vector<8x128xf32>
    %249 = arith.divf %247, %248 : vector<8x128xf32>
    %250 = arith.mulf %241, %217 : vector<8x128xf32>
    %251 = arith.mulf %235, %243 : vector<8x128xf32>
    %252 = arith.addf %250, %251 : vector<8x128xf32>
    %253 = math.tanh %252 : vector<8x128xf32>
    %254 = arith.mulf %249, %253 : vector<8x128xf32>
    %255 = arith.truncf %254 : vector<8x128xf32> to vector<8x128xbf16>
    %256 = arith.index_cast %c6_i32 : i32 to index
    %c0_71 = arith.constant 0 : index
    %c0_72 = arith.constant 0 : index
    %257 = vector.load %arg7[%256, %c0_71, %c0_72] : memref<8x8x128xbf16, #tpu.memory_space<vmem>>, vector<1x8x128xbf16>
    %258 = vector.shape_cast %257 : vector<1x8x128xbf16> to vector<8x128xbf16>
    %259 = vector.shape_cast %255 : vector<8x128xbf16> to vector<1x8x128xbf16>
    tpu.vector_store %arg7[%256, %c0_71, %c0_72], %259 {strides = array<i32>} : memref<8x8x128xbf16, #tpu.memory_space<vmem>>, vector<1x8x128xbf16>,
    %c7_i32 = arith.constant 7 : i32
    %260 = arith.index_cast %c7_i32 : i32 to index
    %c0_73 = arith.constant 0 : index
    %c0_74 = arith.constant 0 : index
    %261 = vector.load %arg12[%260, %c0_73, %c0_74] : memref<8x8x512xf32, #tpu.memory_space<vmem>>, vector<1x8x512xf32>
    %262 = vector.shape_cast %261 : vector<1x8x512xf32> to vector<8x512xf32>
    %cst_75 = arith.constant dense<0.000000e+00> : vector<8x512xf32>
    %263 = tpu.matmul %255, %12, %cst_75 {dimension_numbers = #tpu.dot_dimension_numbers<[1], [0], [0], [1], [0, 0, 1, 1], [], []>} : vector<8x128xbf16>, vector<128x512xbf16>, vector<8x512xf32> -> vector<8x512xf32>
    %264 = arith.addf %262, %263 : vector<8x512xf32>
    %265 = vector.extract_strided_slice %264 {offsets = [0, 0], sizes = [8, 128], strides = [1, 1]} : vector<8x512xf32> to vector<8x128xf32>
    %266 = arith.negf %265 : vector<8x128xf32>
    %267 = math.exp %266 : vector<8x128xf32>
    %cst_76 = arith.constant 1.000000e+00 : f32
    %268 = vector.broadcast %cst_76 : f32 to vector<8x128xf32>
    %269 = arith.addf %268, %267 : vector<8x128xf32>
    %270 = arith.divf %268, %269 : vector<8x128xf32>
    %271 = vector.extract_strided_slice %264 {offsets = [0, 128], sizes = [8, 128], strides = [1, 1]} : vector<8x512xf32> to vector<8x128xf32>
    %272 = arith.negf %271 : vector<8x128xf32>
    %273 = math.exp %272 : vector<8x128xf32>
    %cst_77 = arith.constant 1.000000e+00 : f32
    %274 = vector.broadcast %cst_77 : f32 to vector<8x128xf32>
    %275 = arith.addf %274, %273 : vector<8x128xf32>
    %276 = arith.divf %274, %275 : vector<8x128xf32>
    %277 = vector.extract_strided_slice %264 {offsets = [0, 256], sizes = [8, 128], strides = [1, 1]} : vector<8x512xf32> to vector<8x128xf32>
    %278 = math.tanh %277 : vector<8x128xf32>
    %279 = vector.extract_strided_slice %264 {offsets = [0, 384], sizes = [8, 128], strides = [1, 1]} : vector<8x512xf32> to vector<8x128xf32>
    %280 = arith.negf %279 : vector<8x128xf32>
    %281 = math.exp %280 : vector<8x128xf32>
    %cst_78 = arith.constant 1.000000e+00 : f32
    %282 = vector.broadcast %cst_78 : f32 to vector<8x128xf32>
    %283 = arith.addf %282, %281 : vector<8x128xf32>
    %284 = arith.divf %282, %283 : vector<8x128xf32>
    %285 = arith.mulf %276, %252 : vector<8x128xf32>
    %286 = arith.mulf %270, %278 : vector<8x128xf32>
    %287 = arith.addf %285, %286 : vector<8x128xf32>
    %288 = math.tanh %287 : vector<8x128xf32>
    %289 = arith.mulf %284, %288 : vector<8x128xf32>
    %290 = arith.truncf %289 : vector<8x128xf32> to vector<8x128xbf16>
    %291 = arith.index_cast %c7_i32 : i32 to index
    %c0_79 = arith.constant 0 : index
    %c0_80 = arith.constant 0 : index
    %292 = vector.load %arg7[%291, %c0_79, %c0_80] : memref<8x8x128xbf16, #tpu.memory_space<vmem>>, vector<1x8x128xbf16>
    %293 = vector.shape_cast %292 : vector<1x8x128xbf16> to vector<8x128xbf16>
    %294 = vector.shape_cast %290 : vector<8x128xbf16> to vector<1x8x128xbf16>
    tpu.vector_store %arg7[%291, %c0_79, %c0_80], %294 {strides = array<i32>} : memref<8x8x128xbf16, #tpu.memory_space<vmem>>, vector<1x8x128xbf16>,
    %c8_i32 = arith.constant 8 : i32
    %c0_81 = arith.constant 0 : index
    %c0_82 = arith.constant 0 : index
    %295 = vector.load %arg10[%c0_81, %c0_82] : memref<8x128xbf16, #tpu.memory_space<vmem>>, vector<8x128xbf16>
    tpu.vector_store %arg10[%c0_81, %c0_82], %290 {strides = array<i32>} : memref<8x128xbf16, #tpu.memory_space<vmem>>, vector<8x128xbf16>,
    %c0_83 = arith.constant 0 : index
    %c0_84 = arith.constant 0 : index
    %296 = vector.load %arg11[%c0_83, %c0_84] : memref<8x128xf32, #tpu.memory_space<vmem>>, vector<8x128xf32>
    tpu.vector_store %arg11[%c0_83, %c0_84], %287 {strides = array<i32>} : memref<8x128xf32, #tpu.memory_space<vmem>>, vector<8x128xf32>,
    %c0_85 = arith.constant 0 : index
    %c0_86 = arith.constant 0 : index
    %297 = vector.load %arg10[%c0_85, %c0_86] : memref<8x128xbf16, #tpu.memory_space<vmem>>, vector<8x128xbf16>
    %c0_87 = arith.constant 0 : index
    %c0_88 = arith.constant 0 : index
    %298 = vector.load %arg8[%c0_87, %c0_88] : memref<8x128xbf16, #tpu.memory_space<vmem>>, vector<8x128xbf16>
    tpu.vector_store %arg8[%c0_87, %c0_88], %297 {strides = array<i32>} : memref<8x128xbf16, #tpu.memory_space<vmem>>, vector<8x128xbf16>,
    %c0_89 = arith.constant 0 : index
    %c0_90 = arith.constant 0 : index
    %299 = vector.load %arg11[%c0_89, %c0_90] : memref<8x128xf32, #tpu.memory_space<vmem>>, vector<8x128xf32>
    %c0_91 = arith.constant 0 : index
    %c0_92 = arith.constant 0 : index
    %300 = vector.load %arg9[%c0_91, %c0_92] : memref<8x128xf32, #tpu.memory_space<vmem>>, vector<8x128xf32>
    tpu.vector_store %arg9[%c0_91, %c0_92], %299 {strides = array<i32>} : memref<8x128xf32, #tpu.memory_space<vmem>>, vector<8x128xf32>,
    return
  }
  func.func @transform_0(%arg0: i32) -> (i32, i32, i32) {
    %c0_i32 = arith.constant 0 : i32
    %c0_i32_0 = arith.constant 0 : i32
    %c0_i32_1 = arith.constant 0 : i32
    return %arg0, %c0_i32, %c0_i32_0 : i32, i32, i32
  }
  func.func @transform_1(%arg0: i32) -> (i32, i32) {
    %c0_i32 = arith.constant 0 : i32
    %c0_i32_0 = arith.constant 0 : i32
    %c0_i32_1 = arith.constant 0 : i32
    return %c0_i32, %c0_i32_0 : i32, i32
  }
  func.func @transform_2(%arg0: i32) -> (i32, i32) {
    %c0_i32 = arith.constant 0 : i32
    %c0_i32_0 = arith.constant 0 : i32
    %c0_i32_1 = arith.constant 0 : i32
    return %c0_i32, %c0_i32_0 : i32, i32
  }
  func.func @transform_3(%arg0: i32) -> (i32, i32) {
    %c0_i32 = arith.constant 0 : i32
    %c0_i32_0 = arith.constant 0 : i32
    %c0_i32_1 = arith.constant 0 : i32
    return %c0_i32, %c0_i32_0 : i32, i32
  }
  func.func @transform_4(%arg0: i32) -> (i32, i32) {
    %c0_i32 = arith.constant 0 : i32
    %c0_i32_0 = arith.constant 0 : i32
    %c0_i32_1 = arith.constant 0 : i32
    return %c0_i32, %c0_i32_0 : i32, i32
  }
  func.func @transform_5(%arg0: i32) -> (i32, i32) {
    %c0_i32 = arith.constant 0 : i32
    %c0_i32_0 = arith.constant 0 : i32
    %c0_i32_1 = arith.constant 0 : i32
    return %c0_i32, %c0_i32_0 : i32, i32
  }
  func.func @transform_6(%arg0: i32) -> (i32, i32, i32) {
    %c0_i32 = arith.constant 0 : i32
    %c0_i32_0 = arith.constant 0 : i32
    %c0_i32_1 = arith.constant 0 : i32
    return %arg0, %c0_i32, %c0_i32_0 : i32, i32, i32
  }
  func.func @transform_7(%arg0: i32) -> (i32, i32) {
    %c0_i32 = arith.constant 0 : i32
    %c0_i32_0 = arith.constant 0 : i32
    %c0_i32_1 = arith.constant 0 : i32
    return %c0_i32, %c0_i32_0 : i32, i32
  }
  func.func @transform_8(%arg0: i32) -> (i32, i32) {
    %c0_i32 = arith.constant 0 : i32
    %c0_i32_0 = arith.constant 0 : i32
    %c0_i32_1 = arith.constant 0 : i32
    return %c0_i32, %c0_i32_0 : i32, i32
  }
}

module attributes {stable_mosaic.version = 11 : i64} {
  func.func @_lstm_rec_kernel(%arg0: i32, %arg1: memref<8x8x128xbf16, #tpu.memory_space<vmem>>, %arg2: memref<128x512xbf16, #tpu.memory_space<vmem>>, %arg3: memref<128x512xbf16, #tpu.memory_space<vmem>>, %arg4: memref<1x512xf32, #tpu.memory_space<vmem>>, %arg5: memref<8x128xbf16, #tpu.memory_space<vmem>>, %arg6: memref<8x128xf32, #tpu.memory_space<vmem>>, %arg7: memref<8x8x128xbf16, #tpu.memory_space<vmem>>, %arg8: memref<8x128xbf16, #tpu.memory_space<vmem>>, %arg9: memref<8x128xf32, #tpu.memory_space<vmem>>, %arg10: memref<8x128xbf16, #tpu.memory_space<vmem>>, %arg11: memref<8x128xf32, #tpu.memory_space<vmem>>, %arg12: memref<8x8x512xf32, #tpu.memory_space<vmem>>) attributes {dimension_semantics = [#tpu.dimension_semantics<arbitrary>], iteration_bounds = array<i64: 1>, scalar_prefetch = 0 : i64, scratch_operands = 3 : i64, tpu.core_type = #tpu.core_type<tc>, window_params = [{transform_indices = @transform_0, window_bounds = array<i64: 8, 8, 128>}, {pipeline_mode = #tpu.pipeline_mode<synchronous>, transform_indices = @transform_1, window_bounds = array<i64: 128, 512>}, {pipeline_mode = #tpu.pipeline_mode<synchronous>, transform_indices = @transform_2, window_bounds = array<i64: 128, 512>}, {pipeline_mode = #tpu.pipeline_mode<synchronous>, transform_indices = @transform_3, window_bounds = array<i64: 1, 512>}, {pipeline_mode = #tpu.pipeline_mode<synchronous>, transform_indices = @transform_4, window_bounds = array<i64: 8, 128>}, {pipeline_mode = #tpu.pipeline_mode<synchronous>, transform_indices = @transform_5, window_bounds = array<i64: 8, 128>}, {transform_indices = @transform_6, window_bounds = array<i64: 8, 8, 128>}, {pipeline_mode = #tpu.pipeline_mode<synchronous>, transform_indices = @transform_7, window_bounds = array<i64: 8, 128>}, {pipeline_mode = #tpu.pipeline_mode<synchronous>, transform_indices = @transform_8, window_bounds = array<i64: 8, 128>}]} {
    %c0_i32 = arith.constant 0 : i32
    %0 = arith.cmpi eq, %arg0, %c0_i32 : i32
    %1 = arith.extui %0 : i1 to i32
    %c0_i32_0 = arith.constant 0 : i32
    %2 = arith.cmpi ne, %1, %c0_i32_0 : i32
    scf.if %2 {
      %c0_93 = arith.constant 0 : index
      %c0_94 = arith.constant 0 : index
      %301 = vector.load %arg5[%c0_93, %c0_94] : memref<8x128xbf16, #tpu.memory_space<vmem>>, vector<8x128xbf16>
      %c0_95 = arith.constant 0 : index
      %c0_96 = arith.constant 0 : index
      %302 = vector.load %arg10[%c0_95, %c0_96] : memref<8x128xbf16, #tpu.memory_space<vmem>>, vector<8x128xbf16>
      tpu.vector_store %arg10[%c0_95, %c0_96], %301 {strides = array<i32>} : memref<8x128xbf16, #tpu.memory_space<vmem>>, vector<8x128xbf16>,
      %c0_97 = arith.constant 0 : index
      %c0_98 = arith.constant 0 : index
      %303 = vector.load %arg6[%c0_97, %c0_98] : memref<8x128xf32, #tpu.memory_space<vmem>>, vector<8x128xf32>
      %c0_99 = arith.constant 0 : index
      %c0_100 = arith.constant 0 : index
      %304 = vector.load %arg11[%c0_99, %c0_100] : memref<8x128xf32, #tpu.memory_space<vmem>>, vector<8x128xf32>
      tpu.vector_store %arg11[%c0_99, %c0_100], %303 {strides = array<i32>} : memref<8x128xf32, #tpu.memory_space<vmem>>, vector<8x128xf32>,
    } else {
    }
    %c0 = arith.constant 0 : index
    %c0_1 = arith.constant 0 : index
    %c0_2 = arith.constant 0 : index
    %3 = vector.load %arg1[%c0, %c0_1, %c0_2] : memref<8x8x128xbf16, #tpu.memory_space<vmem>>, vector<8x8x128xbf16>
    %4 = vector.shape_cast %3 : vector<8x8x128xbf16> to vector<64x128xbf16>
    %c0_3 = arith.constant 0 : index
    %c0_4 = arith.constant 0 : index
    %5 = vector.load %arg2[%c0_3, %c0_4] : memref<128x512xbf16, #tpu.memory_space<vmem>>, vector<128x512xbf16>
    %cst = arith.constant dense<0.000000e+00> : vector<64x512xf32>
    %6 = tpu.matmul %4, %5, %cst {dimension_numbers = #tpu.dot_dimension_numbers<[1], [0], [0], [1], [0, 0, 1, 1], [], []>} : vector<64x128xbf16>, vector<128x512xbf16>, vector<64x512xf32> -> vector<64x512xf32>
    %c0_5 = arith.constant 0 : index
    %c0_6 = arith.constant 0 : index
    %7 = vector.load %arg4[%c0_5, %c0_6] : memref<1x512xf32, #tpu.memory_space<vmem>>, vector<1x512xf32>
    %8 = vector.broadcast %7 : vector<1x512xf32> to vector<64x512xf32>
    %9 = arith.addf %6, %8 : vector<64x512xf32>
    %10 = vector.shape_cast %9 : vector<64x512xf32> to vector<8x8x512xf32>
    %c0_7 = arith.constant 0 : index
    %c0_8 = arith.constant 0 : index
    %c0_9 = arith.constant 0 : index
    %11 = vector.load %arg12[%c0_7, %c0_8, %c0_9] : memref<8x8x512xf32, #tpu.memory_space<vmem>>, vector<8x8x512xf32>
    tpu.vector_store %arg12[%c0_7, %c0_8, %c0_9], %10 {strides = array<i32>} : memref<8x8x512xf32, #tpu.memory_space<vmem>>, vector<8x8x512xf32>,
    %c0_10 = arith.constant 0 : index
    %c0_11 = arith.constant 0 : index
    %12 = vector.load %arg3[%c0_10, %c0_11] : memref<128x512xbf16, #tpu.memory_space<vmem>>, vector<128x512xbf16>
    %c0_12 = arith.constant 0 : index
    %c0_13 = arith.constant 0 : index
    %13 = vector.load %arg10[%c0_12, %c0_13] : memref<8x128xbf16, #tpu.memory_space<vmem>>, vector<8x128xbf16>
    %c0_14 = arith.constant 0 : index
    %c0_15 = arith.constant 0 : index
    %14 = vector.load %arg11[%c0_14, %c0_15] : memref<8x128xf32, #tpu.memory_space<vmem>>, vector<8x128xf32>
    %c0_i32_16 = arith.constant 0 : i32
    %15 = arith.index_cast %c0_i32_16 : i32 to index
    %c0_17 = arith.constant 0 : index
    %c0_18 = arith.constant 0 : index
    %16 = vector.load %arg12[%15, %c0_17, %c0_18] : memref<8x8x512xf32, #tpu.memory_space<vmem>>, vector<1x8x512xf32>
    %17 = vector.shape_cast %16 : vector<1x8x512xf32> to vector<8x512xf32>
    %cst_19 = arith.constant dense<0.000000e+00> : vector<8x512xf32>
    %18 = tpu.matmul %13, %12, %cst_19 {dimension_numbers = #tpu.dot_dimension_numbers<[1], [0], [0], [1], [0, 0, 1, 1], [], []>} : vector<8x128xbf16>, vector<128x512xbf16>, vector<8x512xf32> -> vector<8x512xf32>
    %19 = arith.addf %17, %18 : vector<8x512xf32>
    %20 = vector.extract_strided_slice %19 {offsets = [0, 0], sizes = [8, 128], strides = [1, 1]} : vector<8x512xf32> to vector<8x128xf32>
    %21 = arith.negf %20 : vector<8x128xf32>
    %22 = math.exp %21 : vector<8x128xf32>
    %cst_20 = arith.constant 1.000000e+00 : f32
    %23 = vector.broadcast %cst_20 : f32 to vector<8x128xf32>
    %24 = arith.addf %23, %22 : vector<8x128xf32>
    %25 = arith.divf %23, %24 : vector<8x128xf32>
    %26 = vector.extract_strided_slice %19 {offsets = [0, 128], sizes = [8, 128], strides = [1, 1]} : vector<8x512xf32> to vector<8x128xf32>
    %27 = arith.negf %26 : vector<8x128xf32>
    %28 = math.exp %27 : vector<8x128xf32>
    %cst_21 = arith.constant 1.000000e+00 : f32
    %29 = vector.broadcast %cst_21 : f32 to vector<8x128xf32>
    %30 = arith.addf %29, %28 : vector<8x128xf32>
    %31 = arith.divf %29, %30 : vector<8x128xf32>
    %32 = vector.extract_strided_slice %19 {offsets = [0, 256], sizes = [8, 128], strides = [1, 1]} : vector<8x512xf32> to vector<8x128xf32>
    %33 = math.tanh %32 : vector<8x128xf32>
    %34 = vector.extract_strided_slice %19 {offsets = [0, 384], sizes = [8, 128], strides = [1, 1]} : vector<8x512xf32> to vector<8x128xf32>
    %35 = arith.negf %34 : vector<8x128xf32>
    %36 = math.exp %35 : vector<8x128xf32>
    %cst_22 = arith.constant 1.000000e+00 : f32
    %37 = vector.broadcast %cst_22 : f32 to vector<8x128xf32>
    %38 = arith.addf %37, %36 : vector<8x128xf32>
    %39 = arith.divf %37, %38 : vector<8x128xf32>
    %40 = arith.mulf %31, %14 : vector<8x128xf32>
    %41 = arith.mulf %25, %33 : vector<8x128xf32>
    %42 = arith.addf %40, %41 : vector<8x128xf32>
    %43 = math.tanh %42 : vector<8x128xf32>
    %44 = arith.mulf %39, %43 : vector<8x128xf32>
    %45 = arith.truncf %44 : vector<8x128xf32> to vector<8x128xbf16>
    %46 = arith.index_cast %c0_i32_16 : i32 to index
    %c0_23 = arith.constant 0 : index
    %c0_24 = arith.constant 0 : index
    %47 = vector.load %arg7[%46, %c0_23, %c0_24] : memref<8x8x128xbf16, #tpu.memory_space<vmem>>, vector<1x8x128xbf16>
    %48 = vector.shape_cast %47 : vector<1x8x128xbf16> to vector<8x128xbf16>
    %49 = vector.shape_cast %45 : vector<8x128xbf16> to vector<1x8x128xbf16>
    tpu.vector_store %arg7[%46, %c0_23, %c0_24], %49 {strides = array<i32>} : memref<8x8x128xbf16, #tpu.memory_space<vmem>>, vector<1x8x128xbf16>,
    %c1_i32 = arith.constant 1 : i32
    %50 = arith.index_cast %c1_i32 : i32 to index
    %c0_25 = arith.constant 0 : index
    %c0_26 = arith.constant 0 : index
    %51 = vector.load %arg12[%50, %c0_25, %c0_26] : memref<8x8x512xf32, #tpu.memory_space<vmem>>, vector<1x8x512xf32>
    %52 = vector.shape_cast %51 : vector<1x8x512xf32> to vector<8x512xf32>
    %cst_27 = arith.constant dense<0.000000e+00> : vector<8x512xf32>
    %53 = tpu.matmul %45, %12, %cst_27 {dimension_numbers = #tpu.dot_dimension_numbers<[1], [0], [0], [1], [0, 0, 1, 1], [], []>} : vector<8x128xbf16>, vector<128x512xbf16>, vector<8x512xf32> -> vector<8x512xf32>
    %54 = arith.addf %52, %53 : vector<8x512xf32>
    %55 = vector.extract_strided_slice %54 {offsets = [0, 0], sizes = [8, 128], strides = [1, 1]} : vector<8x512xf32> to vector<8x128xf32>
    %56 = arith.negf %55 : vector<8x128xf32>
    %57 = math.exp %56 : vector<8x128xf32>
    %cst_28 = arith.constant 1.000000e+00 : f32
    %58 = vector.broadcast %cst_28 : f32 to vector<8x128xf32>
    %59 = arith.addf %58, %57 : vector<8x128xf32>
    %60 = arith.divf %58, %59 : vector<8x128xf32>
    %61 = vector.extract_strided_slice %54 {offsets = [0, 128], sizes = [8, 128], strides = [1, 1]} : vector<8x512xf32> to vector<8x128xf32>
    %62 = arith.negf %61 : vector<8x128xf32>
    %63 = math.exp %62 : vector<8x128xf32>
    %cst_29 = arith.constant 1.000000e+00 : f32
    %64 = vector.broadcast %cst_29 : f32 to vector<8x128xf32>
    %65 = arith.addf %64, %63 : vector<8x128xf32>
    %66 = arith.divf %64, %65 : vector<8x128xf32>
    %67 = vector.extract_strided_slice %54 {offsets = [0, 256], sizes = [8, 128], strides = [1, 1]} : vector<8x512xf32> to vector<8x128xf32>
    %68 = math.tanh %67 : vector<8x128xf32>
    %69 = vector.extract_strided_slice %54 {offsets = [0, 384], sizes = [8, 128], strides = [1, 1]} : vector<8x512xf32> to vector<8x128xf32>
    %70 = arith.negf %69 : vector<8x128xf32>
    %71 = math.exp %70 : vector<8x128xf32>
    %cst_30 = arith.constant 1.000000e+00 : f32
    %72 = vector.broadcast %cst_30 : f32 to vector<8x128xf32>
    %73 = arith.addf %72, %71 : vector<8x128xf32>
    %74 = arith.divf %72, %73 : vector<8x128xf32>
    %75 = arith.mulf %66, %42 : vector<8x128xf32>
    %76 = arith.mulf %60, %68 : vector<8x128xf32>
    %77 = arith.addf %75, %76 : vector<8x128xf32>
    %78 = math.tanh %77 : vector<8x128xf32>
    %79 = arith.mulf %74, %78 : vector<8x128xf32>
    %80 = arith.truncf %79 : vector<8x128xf32> to vector<8x128xbf16>
    %81 = arith.index_cast %c1_i32 : i32 to index
    %c0_31 = arith.constant 0 : index
    %c0_32 = arith.constant 0 : index
    %82 = vector.load %arg7[%81, %c0_31, %c0_32] : memref<8x8x128xbf16, #tpu.memory_space<vmem>>, vector<1x8x128xbf16>
    %83 = vector.shape_cast %82 : vector<1x8x128xbf16> to vector<8x128xbf16>
    %84 = vector.shape_cast %80 : vector<8x128xbf16> to vector<1x8x128xbf16>
    tpu.vector_store %arg7[%81, %c0_31, %c0_32], %84 {strides = array<i32>} : memref<8x8x128xbf16, #tpu.memory_space<vmem>>, vector<1x8x128xbf16>,
    %c2_i32 = arith.constant 2 : i32
    %85 = arith.index_cast %c2_i32 : i32 to index
    %c0_33 = arith.constant 0 : index
    %c0_34 = arith.constant 0 : index
    %86 = vector.load %arg12[%85, %c0_33, %c0_34] : memref<8x8x512xf32, #tpu.memory_space<vmem>>, vector<1x8x512xf32>
    %87 = vector.shape_cast %86 : vector<1x8x512xf32> to vector<8x512xf32>
    %cst_35 = arith.constant dense<0.000000e+00> : vector<8x512xf32>
    %88 = tpu.matmul %80, %12, %cst_35 {dimension_numbers = #tpu.dot_dimension_numbers<[1], [0], [0], [1], [0, 0, 1, 1], [], []>} : vector<8x128xbf16>, vector<128x512xbf16>, vector<8x512xf32> -> vector<8x512xf32>
    %89 = arith.addf %87, %88 : vector<8x512xf32>
    %90 = vector.extract_strided_slice %89 {offsets = [0, 0], sizes = [8, 128], strides = [1, 1]} : vector<8x512xf32> to vector<8x128xf32>
    %91 = arith.negf %90 : vector<8x128xf32>
    %92 = math.exp %91 : vector<8x128xf32>
    %cst_36 = arith.constant 1.000000e+00 : f32
    %93 = vector.broadcast %cst_36 : f32 to vector<8x128xf32>
    %94 = arith.addf %93, %92 : vector<8x128xf32>
    %95 = arith.divf %93, %94 : vector<8x128xf32>
    %96 = vector.extract_strided_slice %89 {offsets = [0, 128], sizes = [8, 128], strides = [1, 1]} : vector<8x512xf32> to vector<8x128xf32>
    %97 = arith.negf %96 : vector<8x128xf32>
    %98 = math.exp %97 : vector<8x128xf32>
    %cst_37 = arith.constant 1.000000e+00 : f32
    %99 = vector.broadcast %cst_37 : f32 to vector<8x128xf32>
    %100 = arith.addf %99, %98 : vector<8x128xf32>
    %101 = arith.divf %99, %100 : vector<8x128xf32>
    %102 = vector.extract_strided_slice %89 {offsets = [0, 256], sizes = [8, 128], strides = [1, 1]} : vector<8x512xf32> to vector<8x128xf32>
    %103 = math.tanh %102 : vector<8x128xf32>
    %104 = vector.extract_strided_slice %89 {offsets = [0, 384], sizes = [8, 128], strides = [1, 1]} : vector<8x512xf32> to vector<8x128xf32>
    %105 = arith.negf %104 : vector<8x128xf32>
    %106 = math.exp %105 : vector<8x128xf32>
    %cst_38 = arith.constant 1.000000e+00 : f32
    %107 = vector.broadcast %cst_38 : f32 to vector<8x128xf32>
    %108 = arith.addf %107, %106 : vector<8x128xf32>
    %109 = arith.divf %107, %108 : vector<8x128xf32>
    %110 = arith.mulf %101, %77 : vector<8x128xf32>
    %111 = arith.mulf %95, %103 : vector<8x128xf32>
    %112 = arith.addf %110, %111 : vector<8x128xf32>
    %113 = math.tanh %112 : vector<8x128xf32>
    %114 = arith.mulf %109, %113 : vector<8x128xf32>
    %115 = arith.truncf %114 : vector<8x128xf32> to vector<8x128xbf16>
    %116 = arith.index_cast %c2_i32 : i32 to index
    %c0_39 = arith.constant 0 : index
    %c0_40 = arith.constant 0 : index
    %117 = vector.load %arg7[%116, %c0_39, %c0_40] : memref<8x8x128xbf16, #tpu.memory_space<vmem>>, vector<1x8x128xbf16>
    %118 = vector.shape_cast %117 : vector<1x8x128xbf16> to vector<8x128xbf16>
    %119 = vector.shape_cast %115 : vector<8x128xbf16> to vector<1x8x128xbf16>
    tpu.vector_store %arg7[%116, %c0_39, %c0_40], %119 {strides = array<i32>} : memref<8x8x128xbf16, #tpu.memory_space<vmem>>, vector<1x8x128xbf16>,
    %c3_i32 = arith.constant 3 : i32
    %120 = arith.index_cast %c3_i32 : i32 to index
    %c0_41 = arith.constant 0 : index
    %c0_42 = arith.constant 0 : index
    %121 = vector.load %arg12[%120, %c0_41, %c0_42] : memref<8x8x512xf32, #tpu.memory_space<vmem>>, vector<1x8x512xf32>
    %122 = vector.shape_cast %121 : vector<1x8x512xf32> to vector<8x512xf32>
    %cst_43 = arith.constant dense<0.000000e+00> : vector<8x512xf32>
    %123 = tpu.matmul %115, %12, %cst_43 {dimension_numbers = #tpu.dot_dimension_numbers<[1], [0], [0], [1], [0, 0, 1, 1], [], []>} : vector<8x128xbf16>, vector<128x512xbf16>, vector<8x512xf32> -> vector<8x512xf32>
    %124 = arith.addf %122, %123 : vector<8x512xf32>
    %125 = vector.extract_strided_slice %124 {offsets = [0, 0], sizes = [8, 128], strides = [1, 1]} : vector<8x512xf32> to vector<8x128xf32>
    %126 = arith.negf %125 : vector<8x128xf32>
    %127 = math.exp %126 : vector<8x128xf32>
    %cst_44 = arith.constant 1.000000e+00 : f32
    %128 = vector.broadcast %cst_44 : f32 to vector<8x128xf32>
    %129 = arith.addf %128, %127 : vector<8x128xf32>
    %130 = arith.divf %128, %129 : vector<8x128xf32>
    %131 = vector.extract_strided_slice %124 {offsets = [0, 128], sizes = [8, 128], strides = [1, 1]} : vector<8x512xf32> to vector<8x128xf32>
    %132 = arith.negf %131 : vector<8x128xf32>
    %133 = math.exp %132 : vector<8x128xf32>
    %cst_45 = arith.constant 1.000000e+00 : f32
    %134 = vector.broadcast %cst_45 : f32 to vector<8x128xf32>
    %135 = arith.addf %134, %133 : vector<8x128xf32>
    %136 = arith.divf %134, %135 : vector<8x128xf32>
    %137 = vector.extract_strided_slice %124 {offsets = [0, 256], sizes = [8, 128], strides = [1, 1]} : vector<8x512xf32> to vector<8x128xf32>
    %138 = math.tanh %137 : vector<8x128xf32>
    %139 = vector.extract_strided_slice %124 {offsets = [0, 384], sizes = [8, 128], strides = [1, 1]} : vector<8x512xf32> to vector<8x128xf32>
    %140 = arith.negf %139 : vector<8x128xf32>
    %141 = math.exp %140 : vector<8x128xf32>
    %cst_46 = arith.constant 1.000000e+00 : f32
    %142 = vector.broadcast %cst_46 : f32 to vector<8x128xf32>
    %143 = arith.addf %142, %141 : vector<8x128xf32>
    %144 = arith.divf %142, %143 : vector<8x128xf32>
    %145 = arith.mulf %136, %112 : vector<8x128xf32>
    %146 = arith.mulf %130, %138 : vector<8x128xf32>
    %147 = arith.addf %145, %146 : vector<8x128xf32>
    %148 = math.tanh %147 : vector<8x128xf32>
    %149 = arith.mulf %144, %148 : vector<8x128xf32>
    %150 = arith.truncf %149 : vector<8x128xf32> to vector<8x128xbf16>
    %151 = arith.index_cast %c3_i32 : i32 to index
    %c0_47 = arith.constant 0 : index
    %c0_48 = arith.constant 0 : index
    %152 = vector.load %arg7[%151, %c0_47, %c0_48] : memref<8x8x128xbf16, #tpu.memory_space<vmem>>, vector<1x8x128xbf16>
    %153 = vector.shape_cast %152 : vector<1x8x128xbf16> to vector<8x128xbf16>
    %154 = vector.shape_cast %150 : vector<8x128xbf16> to vector<1x8x128xbf16>
    tpu.vector_store %arg7[%151, %c0_47, %c0_48], %154 {strides = array<i32>} : memref<8x8x128xbf16, #tpu.memory_space<vmem>>, vector<1x8x128xbf16>,
    %c4_i32 = arith.constant 4 : i32
    %155 = arith.index_cast %c4_i32 : i32 to index
    %c0_49 = arith.constant 0 : index
    %c0_50 = arith.constant 0 : index
    %156 = vector.load %arg12[%155, %c0_49, %c0_50] : memref<8x8x512xf32, #tpu.memory_space<vmem>>, vector<1x8x512xf32>
    %157 = vector.shape_cast %156 : vector<1x8x512xf32> to vector<8x512xf32>
    %cst_51 = arith.constant dense<0.000000e+00> : vector<8x512xf32>
    %158 = tpu.matmul %150, %12, %cst_51 {dimension_numbers = #tpu.dot_dimension_numbers<[1], [0], [0], [1], [0, 0, 1, 1], [], []>} : vector<8x128xbf16>, vector<128x512xbf16>, vector<8x512xf32> -> vector<8x512xf32>
    %159 = arith.addf %157, %158 : vector<8x512xf32>
    %160 = vector.extract_strided_slice %159 {offsets = [0, 0], sizes = [8, 128], strides = [1, 1]} : vector<8x512xf32> to vector<8x128xf32>
    %161 = arith.negf %160 : vector<8x128xf32>
    %162 = math.exp %161 : vector<8x128xf32>
    %cst_52 = arith.constant 1.000000e+00 : f32
    %163 = vector.broadcast %cst_52 : f32 to vector<8x128xf32>
    %164 = arith.addf %163, %162 : vector<8x128xf32>
    %165 = arith.divf %163, %164 : vector<8x128xf32>
    %166 = vector.extract_strided_slice %159 {offsets = [0, 128], sizes = [8, 128], strides = [1, 1]} : vector<8x512xf32> to vector<8x128xf32>
    %167 = arith.negf %166 : vector<8x128xf32>
    %168 = math.exp %167 : vector<8x128xf32>
    %cst_53 = arith.constant 1.000000e+00 : f32
    %169 = vector.broadcast %cst_53 : f32 to vector<8x128xf32>
    %170 = arith.addf %169, %168 : vector<8x128xf32>
    %171 = arith.divf %169, %170 : vector<8x128xf32>
    %172 = vector.extract_strided_slice %159 {offsets = [0, 256], sizes = [8, 128], strides = [1, 1]} : vector<8x512xf32> to vector<8x128xf32>
    %173 = math.tanh %172 : vector<8x128xf32>
    %174 = vector.extract_strided_slice %159 {offsets = [0, 384], sizes = [8, 128], strides = [1, 1]} : vector<8x512xf32> to vector<8x128xf32>
    %175 = arith.negf %174 : vector<8x128xf32>
    %176 = math.exp %175 : vector<8x128xf32>
    %cst_54 = arith.constant 1.000000e+00 : f32
    %177 = vector.broadcast %cst_54 : f32 to vector<8x128xf32>
    %178 = arith.addf %177, %176 : vector<8x128xf32>
    %179 = arith.divf %177, %178 : vector<8x128xf32>
    %180 = arith.mulf %171, %147 : vector<8x128xf32>
    %181 = arith.mulf %165, %173 : vector<8x128xf32>
    %182 = arith.addf %180, %181 : vector<8x128xf32>
    %183 = math.tanh %182 : vector<8x128xf32>
    %184 = arith.mulf %179, %183 : vector<8x128xf32>
    %185 = arith.truncf %184 : vector<8x128xf32> to vector<8x128xbf16>
    %186 = arith.index_cast %c4_i32 : i32 to index
    %c0_55 = arith.constant 0 : index
    %c0_56 = arith.constant 0 : index
    %187 = vector.load %arg7[%186, %c0_55, %c0_56] : memref<8x8x128xbf16, #tpu.memory_space<vmem>>, vector<1x8x128xbf16>
    %188 = vector.shape_cast %187 : vector<1x8x128xbf16> to vector<8x128xbf16>
    %189 = vector.shape_cast %185 : vector<8x128xbf16> to vector<1x8x128xbf16>
    tpu.vector_store %arg7[%186, %c0_55, %c0_56], %189 {strides = array<i32>} : memref<8x8x128xbf16, #tpu.memory_space<vmem>>, vector<1x8x128xbf16>,
    %c5_i32 = arith.constant 5 : i32
    %190 = arith.index_cast %c5_i32 : i32 to index
    %c0_57 = arith.constant 0 : index
    %c0_58 = arith.constant 0 : index
    %191 = vector.load %arg12[%190, %c0_57, %c0_58] : memref<8x8x512xf32, #tpu.memory_space<vmem>>, vector<1x8x512xf32>
    %192 = vector.shape_cast %191 : vector<1x8x512xf32> to vector<8x512xf32>
    %cst_59 = arith.constant dense<0.000000e+00> : vector<8x512xf32>
    %193 = tpu.matmul %185, %12, %cst_59 {dimension_numbers = #tpu.dot_dimension_numbers<[1], [0], [0], [1], [0, 0, 1, 1], [], []>} : vector<8x128xbf16>, vector<128x512xbf16>, vector<8x512xf32> -> vector<8x512xf32>
    %194 = arith.addf %192, %193 : vector<8x512xf32>
    %195 = vector.extract_strided_slice %194 {offsets = [0, 0], sizes = [8, 128], strides = [1, 1]} : vector<8x512xf32> to vector<8x128xf32>
    %196 = arith.negf %195 : vector<8x128xf32>
    %197 = math.exp %196 : vector<8x128xf32>
    %cst_60 = arith.constant 1.000000e+00 : f32
    %198 = vector.broadcast %cst_60 : f32 to vector<8x128xf32>
    %199 = arith.addf %198, %197 : vector<8x128xf32>
    %200 = arith.divf %198, %199 : vector<8x128xf32>
    %201 = vector.extract_strided_slice %194 {offsets = [0, 128], sizes = [8, 128], strides = [1, 1]} : vector<8x512xf32> to vector<8x128xf32>
    %202 = arith.negf %201 : vector<8x128xf32>
    %203 = math.exp %202 : vector<8x128xf32>
    %cst_61 = arith.constant 1.000000e+00 : f32
    %204 = vector.broadcast %cst_61 : f32 to vector<8x128xf32>
    %205 = arith.addf %204, %203 : vector<8x128xf32>
    %206 = arith.divf %204, %205 : vector<8x128xf32>
    %207 = vector.extract_strided_slice %194 {offsets = [0, 256], sizes = [8, 128], strides = [1, 1]} : vector<8x512xf32> to vector<8x128xf32>
    %208 = math.tanh %207 : vector<8x128xf32>
    %209 = vector.extract_strided_slice %194 {offsets = [0, 384], sizes = [8, 128], strides = [1, 1]} : vector<8x512xf32> to vector<8x128xf32>
    %210 = arith.negf %209 : vector<8x128xf32>
    %211 = math.exp %210 : vector<8x128xf32>
    %cst_62 = arith.constant 1.000000e+00 : f32
    %212 = vector.broadcast %cst_62 : f32 to vector<8x128xf32>
    %213 = arith.addf %212, %211 : vector<8x128xf32>
    %214 = arith.divf %212, %213 : vector<8x128xf32>
    %215 = arith.mulf %206, %182 : vector<8x128xf32>
    %216 = arith.mulf %200, %208 : vector<8x128xf32>
    %217 = arith.addf %215, %216 : vector<8x128xf32>
    %218 = math.tanh %217 : vector<8x128xf32>
    %219 = arith.mulf %214, %218 : vector<8x128xf32>
    %220 = arith.truncf %219 : vector<8x128xf32> to vector<8x128xbf16>
    %221 = arith.index_cast %c5_i32 : i32 to index
    %c0_63 = arith.constant 0 : index
    %c0_64 = arith.constant 0 : index
    %222 = vector.load %arg7[%221, %c0_63, %c0_64] : memref<8x8x128xbf16, #tpu.memory_space<vmem>>, vector<1x8x128xbf16>
    %223 = vector.shape_cast %222 : vector<1x8x128xbf16> to vector<8x128xbf16>
    %224 = vector.shape_cast %220 : vector<8x128xbf16> to vector<1x8x128xbf16>
    tpu.vector_store %arg7[%221, %c0_63, %c0_64], %224 {strides = array<i32>} : memref<8x8x128xbf16, #tpu.memory_space<vmem>>, vector<1x8x128xbf16>,
    %c6_i32 = arith.constant 6 : i32
    %225 = arith.index_cast %c6_i32 : i32 to index
    %c0_65 = arith.constant 0 : index
    %c0_66 = arith.constant 0 : index
    %226 = vector.load %arg12[%225, %c0_65, %c0_66] : memref<8x8x512xf32, #tpu.memory_space<vmem>>, vector<1x8x512xf32>
    %227 = vector.shape_cast %226 : vector<1x8x512xf32> to vector<8x512xf32>
    %cst_67 = arith.constant dense<0.000000e+00> : vector<8x512xf32>
    %228 = tpu.matmul %220, %12, %cst_67 {dimension_numbers = #tpu.dot_dimension_numbers<[1], [0], [0], [1], [0, 0, 1, 1], [], []>} : vector<8x128xbf16>, vector<128x512xbf16>, vector<8x512xf32> -> vector<8x512xf32>
    %229 = arith.addf %227, %228 : vector<8x512xf32>
    %230 = vector.extract_strided_slice %229 {offsets = [0, 0], sizes = [8, 128], strides = [1, 1]} : vector<8x512xf32> to vector<8x128xf32>
    %231 = arith.negf %230 : vector<8x128xf32>
    %232 = math.exp %231 : vector<8x128xf32>
    %cst_68 = arith.constant 1.000000e+00 : f32
    %233 = vector.broadcast %cst_68 : f32 to vector<8x128xf32>
    %234 = arith.addf %233, %232 : vector<8x128xf32>
    %235 = arith.divf %233, %234 : vector<8x128xf32>
    %236 = vector.extract_strided_slice %229 {offsets = [0, 128], sizes = [8, 128], strides = [1, 1]} : vector<8x512xf32> to vector<8x128xf32>
    %237 = arith.negf %236 : vector<8x128xf32>
    %238 = math.exp %237 : vector<8x128xf32>
    %cst_69 = arith.constant 1.000000e+00 : f32
    %239 = vector.broadcast %cst_69 : f32 to vector<8x128xf32>
    %240 = arith.addf %239, %238 : vector<8x128xf32>
    %241 = arith.divf %239, %240 : vector<8x128xf32>
    %242 = vector.extract_strided_slice %229 {offsets = [0, 256], sizes = [8, 128], strides = [1, 1]} : vector<8x512xf32> to vector<8x128xf32>
    %243 = math.tanh %242 : vector<8x128xf32>
    %244 = vector.extract_strided_slice %229 {offsets = [0, 384], sizes = [8, 128], strides = [1, 1]} : vector<8x512xf32> to vector<8x128xf32>
    %245 = arith.negf %244 : vector<8x128xf32>
    %246 = math.exp %245 : vector<8x128xf32>
    %cst_70 = arith.constant 1.000000e+00 : f32
    %247 = vector.broadcast %cst_70 : f32 to vector<8x128xf32>
    %248 = arith.addf %247, %246 : vector<8x128xf32>
    %249 = arith.divf %247, %248 : vector<8x128xf32>
    %250 = arith.mulf %241, %217 : vector<8x128xf32>
    %251 = arith.mulf %235, %243 : vector<8x128xf32>
    %252 = arith.addf %250, %251 : vector<8x128xf32>
    %253 = math.tanh %252 : vector<8x128xf32>
    %254 = arith.mulf %249, %253 : vector<8x128xf32>
    %255 = arith.truncf %254 : vector<8x128xf32> to vector<8x128xbf16>
    %256 = arith.index_cast %c6_i32 : i32 to index
    %c0_71 = arith.constant 0 : index
    %c0_72 = arith.constant 0 : index
    %257 = vector.load %arg7[%256, %c0_71, %c0_72] : memref<8x8x128xbf16, #tpu.memory_space<vmem>>, vector<1x8x128xbf16>
    %258 = vector.shape_cast %257 : vector<1x8x128xbf16> to vector<8x128xbf16>
    %259 = vector.shape_cast %255 : vector<8x128xbf16> to vector<1x8x128xbf16>
    tpu.vector_store %arg7[%256, %c0_71, %c0_72], %259 {strides = array<i32>} : memref<8x8x128xbf16, #tpu.memory_space<vmem>>, vector<1x8x128xbf16>,
    %c7_i32 = arith.constant 7 : i32
    %260 = arith.index_cast %c7_i32 : i32 to index
    %c0_73 = arith.constant 0 : index
    %c0_74 = arith.constant 0 : index
    %261 = vector.load %arg12[%260, %c0_73, %c0_74] : memref<8x8x512xf32, #tpu.memory_space<vmem>>, vector<1x8x512xf32>
    %262 = vector.shape_cast %261 : vector<1x8x512xf32> to vector<8x512xf32>
    %cst_75 = arith.constant dense<0.000000e+00> : vector<8x512xf32>
    %263 = tpu.matmul %255, %12, %cst_75 {dimension_numbers = #tpu.dot_dimension_numbers<[1], [0], [0], [1], [0, 0, 1, 1], [], []>} : vector<8x128xbf16>, vector<128x512xbf16>, vector<8x512xf32> -> vector<8x512xf32>
    %264 = arith.addf %262, %263 : vector<8x512xf32>
    %265 = vector.extract_strided_slice %264 {offsets = [0, 0], sizes = [8, 128], strides = [1, 1]} : vector<8x512xf32> to vector<8x128xf32>
    %266 = arith.negf %265 : vector<8x128xf32>
    %267 = math.exp %266 : vector<8x128xf32>
    %cst_76 = arith.constant 1.000000e+00 : f32
    %268 = vector.broadcast %cst_76 : f32 to vector<8x128xf32>
    %269 = arith.addf %268, %267 : vector<8x128xf32>
    %270 = arith.divf %268, %269 : vector<8x128xf32>
    %271 = vector.extract_strided_slice %264 {offsets = [0, 128], sizes = [8, 128], strides = [1, 1]} : vector<8x512xf32> to vector<8x128xf32>
    %272 = arith.negf %271 : vector<8x128xf32>
    %273 = math.exp %272 : vector<8x128xf32>
    %cst_77 = arith.constant 1.000000e+00 : f32
    %274 = vector.broadcast %cst_77 : f32 to vector<8x128xf32>
    %275 = arith.addf %274, %273 : vector<8x128xf32>
    %276 = arith.divf %274, %275 : vector<8x128xf32>
    %277 = vector.extract_strided_slice %264 {offsets = [0, 256], sizes = [8, 128], strides = [1, 1]} : vector<8x512xf32> to vector<8x128xf32>
    %278 = math.tanh %277 : vector<8x128xf32>
    %279 = vector.extract_strided_slice %264 {offsets = [0, 384], sizes = [8, 128], strides = [1, 1]} : vector<8x512xf32> to vector<8x128xf32>
    %280 = arith.negf %279 : vector<8x128xf32>
    %281 = math.exp %280 : vector<8x128xf32>
    %cst_78 = arith.constant 1.000000e+00 : f32
    %282 = vector.broadcast %cst_78 : f32 to vector<8x128xf32>
    %283 = arith.addf %282, %281 : vector<8x128xf32>
    %284 = arith.divf %282, %283 : vector<8x128xf32>
    %285 = arith.mulf %276, %252 : vector<8x128xf32>
    %286 = arith.mulf %270, %278 : vector<8x128xf32>
    %287 = arith.addf %285, %286 : vector<8x128xf32>
    %288 = math.tanh %287 : vector<8x128xf32>
    %289 = arith.mulf %284, %288 : vector<8x128xf32>
    %290 = arith.truncf %289 : vector<8x128xf32> to vector<8x128xbf16>
    %291 = arith.index_cast %c7_i32 : i32 to index
    %c0_79 = arith.constant 0 : index
    %c0_80 = arith.constant 0 : index
    %292 = vector.load %arg7[%291, %c0_79, %c0_80] : memref<8x8x128xbf16, #tpu.memory_space<vmem>>, vector<1x8x128xbf16>
    %293 = vector.shape_cast %292 : vector<1x8x128xbf16> to vector<8x128xbf16>
    %294 = vector.shape_cast %290 : vector<8x128xbf16> to vector<1x8x128xbf16>
    tpu.vector_store %arg7[%291, %c0_79, %c0_80], %294 {strides = array<i32>} : memref<8x8x128xbf16, #tpu.memory_space<vmem>>, vector<1x8x128xbf16>,
    %c8_i32 = arith.constant 8 : i32
    %c0_81 = arith.constant 0 : index
    %c0_82 = arith.constant 0 : index
    %295 = vector.load %arg10[%c0_81, %c0_82] : memref<8x128xbf16, #tpu.memory_space<vmem>>, vector<8x128xbf16>
    tpu.vector_store %arg10[%c0_81, %c0_82], %290 {strides = array<i32>} : memref<8x128xbf16, #tpu.memory_space<vmem>>, vector<8x128xbf16>,
    %c0_83 = arith.constant 0 : index
    %c0_84 = arith.constant 0 : index
    %296 = vector.load %arg11[%c0_83, %c0_84] : memref<8x128xf32, #tpu.memory_space<vmem>>, vector<8x128xf32>
    tpu.vector_store %arg11[%c0_83, %c0_84], %287 {strides = array<i32>} : memref<8x128xf32, #tpu.memory_space<vmem>>, vector<8x128xf32>,
    %c0_85 = arith.constant 0 : index
    %c0_86 = arith.constant 0 : index
    %297 = vector.load %arg10[%c0_85, %c0_86] : memref<8x128xbf16, #tpu.memory_space<vmem>>, vector<8x128xbf16>
    %c0_87 = arith.constant 0 : index
    %c0_88 = arith.constant 0 : index
    %298 = vector.load %arg8[%c0_87, %c0_88] : memref<8x128xbf16, #tpu.memory_space<vmem>>, vector<8x128xbf16>
    tpu.vector_store %arg8[%c0_87, %c0_88], %297 {strides = array<i32>} : memref<8x128xbf16, #tpu.memory_space<vmem>>, vector<8x128xbf16>,
    %c0_89 = arith.constant 0 : index
    %c0_90 = arith.constant 0 : index
    %299 = vector.load %arg11[%c0_89, %c0_90] : memref<8x128xf32, #tpu.memory_space<vmem>>, vector<8x128xf32>
    %c0_91 = arith.constant 0 : index
    %c0_92 = arith.constant 0 : index
    %300 = vector.load %arg9[%c0_91, %c0_92] : memref<8x128xf32, #tpu.memory_space<vmem>>, vector<8x128xf32>
    tpu.vector_store %arg9[%c0_91, %c0_92], %299 {strides = array<i32>} : memref<8x128xf32, #tpu.memory_space<vmem>>, vector<8x128xf32>,
    return
  }
  func.func @transform_0(%arg0: i32) -> (i32, i32, i32) {
    %c0_i32 = arith.constant 0 : i32
    %c0_i32_0 = arith.constant 0 : i32
    %c0_i32_1 = arith.constant 0 : i32
    return %arg0, %c0_i32, %c0_i32_0 : i32, i32, i32
  }
  func.func @transform_1(%arg0: i32) -> (i32, i32) {
    %c0_i32 = arith.constant 0 : i32
    %c0_i32_0 = arith.constant 0 : i32
    %c0_i32_1 = arith.constant 0 : i32
    return %c0_i32, %c0_i32_0 : i32, i32
  }
  func.func @transform_2(%arg0: i32) -> (i32, i32) {
    %c0_i32 = arith.constant 0 : i32
    %c0_i32_0 = arith.constant 0 : i32
    %c0_i32_1 = arith.constant 0 : i32
    return %c0_i32, %c0_i32_0 : i32, i32
  }
  func.func @transform_3(%arg0: i32) -> (i32, i32) {
    %c0_i32 = arith.constant 0 : i32
    %c0_i32_0 = arith.constant 0 : i32
    %c0_i32_1 = arith.constant 0 : i32
    return %c0_i32, %c0_i32_0 : i32, i32
  }
  func.func @transform_4(%arg0: i32) -> (i32, i32) {
    %c0_i32 = arith.constant 0 : i32
    %c0_i32_0 = arith.constant 0 : i32
    %c0_i32_1 = arith.constant 0 : i32
    return %c0_i32, %c0_i32_0 : i32, i32
  }
  func.func @transform_5(%arg0: i32) -> (i32, i32) {
    %c0_i32 = arith.constant 0 : i32
    %c0_i32_0 = arith.constant 0 : i32
    %c0_i32_1 = arith.constant 0 : i32
    return %c0_i32, %c0_i32_0 : i32, i32
  }
  func.func @transform_6(%arg0: i32) -> (i32, i32, i32) {
    %c0_i32 = arith.constant 0 : i32
    %c0_i32_0 = arith.constant 0 : i32
    %c0_i32_1 = arith.constant 0 : i32
    return %arg0, %c0_i32, %c0_i32_0 : i32, i32, i32
  }
  func.func @transform_7(%arg0: i32) -> (i32, i32) {
    %c0_i32 = arith.constant 0 : i32
    %c0_i32_0 = arith.constant 0 : i32
    %c0_i32_1 = arith.constant 0 : i32
    return %c0_i32, %c0_i32_0 : i32, i32
  }
  func.func @transform_8(%arg0: i32) -> (i32, i32) {
    %c0_i32 = arith.constant 0 : i32
    %c0_i32_0 = arith.constant 0 : i32
    %c0_i32_1 = arith.constant 0 : i32
    return %c0_i32, %c0_i32_0 : i32, i32
  }
}

module attributes {stable_mosaic.version = 11 : i64} {
  func.func @_proj_kernel(%arg0: i32, %arg1: i32, %arg2: memref<8x8x128xbf16, #tpu.memory_space<vmem>>, %arg3: memref<128x128xbf16, #tpu.memory_space<vmem>>, %arg4: memref<1x128xf32, #tpu.memory_space<vmem>>, %arg5: memref<8x8x128xf32, #tpu.memory_space<vmem>>) attributes {dimension_semantics = [#tpu.dimension_semantics<parallel>, #tpu.dimension_semantics<parallel>], iteration_bounds = array<i64: 1, 1>, scalar_prefetch = 0 : i64, scratch_operands = 0 : i64, tpu.core_type = #tpu.core_type<tc>, window_params = [{transform_indices = @transform_0, window_bounds = array<i64: 8, 8, 128>}, {transform_indices = @transform_1, window_bounds = array<i64: 128, 128>}, {transform_indices = @transform_2, window_bounds = array<i64: 1, 128>}, {transform_indices = @transform_3, window_bounds = array<i64: 8, 8, 128>}]} {
    %c0 = arith.constant 0 : index
    %c0_0 = arith.constant 0 : index
    %c0_1 = arith.constant 0 : index
    %0 = vector.load %arg2[%c0, %c0_0, %c0_1] : memref<8x8x128xbf16, #tpu.memory_space<vmem>>, vector<8x8x128xbf16>
    %1 = vector.shape_cast %0 : vector<8x8x128xbf16> to vector<64x128xbf16>
    %c0_2 = arith.constant 0 : index
    %c0_3 = arith.constant 0 : index
    %2 = vector.load %arg3[%c0_2, %c0_3] : memref<128x128xbf16, #tpu.memory_space<vmem>>, vector<128x128xbf16>
    %cst = arith.constant dense<0.000000e+00> : vector<64x128xf32>
    %3 = tpu.matmul %1, %2, %cst {dimension_numbers = #tpu.dot_dimension_numbers<[1], [0], [0], [1], [0, 0, 1, 1], [], []>} : vector<64x128xbf16>, vector<128x128xbf16>, vector<64x128xf32> -> vector<64x128xf32>
    %c0_4 = arith.constant 0 : index
    %c0_5 = arith.constant 0 : index
    %4 = vector.load %arg4[%c0_4, %c0_5] : memref<1x128xf32, #tpu.memory_space<vmem>>, vector<1x128xf32>
    %5 = vector.broadcast %4 : vector<1x128xf32> to vector<64x128xf32>
    %6 = arith.addf %3, %5 : vector<64x128xf32>
    %7 = vector.shape_cast %6 : vector<64x128xf32> to vector<8x8x128xf32>
    %c0_6 = arith.constant 0 : index
    %c0_7 = arith.constant 0 : index
    %c0_8 = arith.constant 0 : index
    %8 = vector.load %arg5[%c0_6, %c0_7, %c0_8] : memref<8x8x128xf32, #tpu.memory_space<vmem>>, vector<8x8x128xf32>
    tpu.vector_store %arg5[%c0_6, %c0_7, %c0_8], %7 {strides = array<i32>} : memref<8x8x128xf32, #tpu.memory_space<vmem>>, vector<8x8x128xf32>,
    return
  }
  func.func @transform_0(%arg0: i32, %arg1: i32) -> (i32, i32, i32) {
    %c0_i32 = arith.constant 0 : i32
    %c0_i32_0 = arith.constant 0 : i32
    %c0_i32_1 = arith.constant 0 : i32
    return %c0_i32, %arg1, %c0_i32_0 : i32, i32, i32
  }
  func.func @transform_1(%arg0: i32, %arg1: i32) -> (i32, i32) {
    %c0_i32 = arith.constant 0 : i32
    %c0_i32_0 = arith.constant 0 : i32
    return %c0_i32, %arg0 : i32, i32
  }
  func.func @transform_2(%arg0: i32, %arg1: i32) -> (i32, i32) {
    %c0_i32 = arith.constant 0 : i32
    %c0_i32_0 = arith.constant 0 : i32
    return %c0_i32, %arg0 : i32, i32
  }
  func.func @transform_3(%arg0: i32, %arg1: i32) -> (i32, i32, i32) {
    %c0_i32 = arith.constant 0 : i32
    %c0_i32_0 = arith.constant 0 : i32
    return %c0_i32, %arg1, %arg0 : i32, i32, i32
  }
}

</mosaic_0001>

<llo_original>
// kernel: rnnlm_forward.5
$region0: #{rnnlm_forward.5}
  #allocation0 [shape = 'u32[]', space=smem, size = 0x4, offset = 0x4, fixed_abs, tag = 'smem constant byte address 0x4 - core index']
  #allocation1 [shape = 'u32[144,128]{1,0:T(1,128)}', space=vmem, size = 0x12000, scoped, tag = 'internal scratch']
  %s0 = inlined_call_operand.vmem [shape: bf16[8,8,128], index: 0, kind: input, shape index: {}]
  %s1 = inlined_call_operand.vmem [shape: bf16[128,128], index: 1, kind: input, shape index: {}]
  %s2 = inlined_call_operand.vmem [shape: f32[1,128], index: 2, kind: input, shape index: {}]
  %s3 = inlined_call_operand.vmem [shape: f32[8,8,128], index: 3, kind: output, shape index: {}]
  %s4 = sld [smem:[#allocation0]]
  $region22: #{rnnlm_forward.5} parent=0
    _
  %s6 = ssub.s32 1, %s4
  %s7 = scalar_select 0, %s6, %s4
  // Predicated region
  $region2: #{rnnlm_forward.5} parent=0 // pred_check
    _
  $region3: #{rnnlm_forward.5} parent=0 // pred_check_branch
    %9 = sbr.rel (0) target = $region5
  $region4: #{rnnlm_forward.5} parent=0 // pred_region
    _
  $region5: #{rnnlm_forward.5} parent=0 // pred_fallthru
    _
  // Predicated region
  $region6: #{rnnlm_forward.5} parent=0 // pred_check
    _
  $region7: #{rnnlm_forward.5} parent=0 // pred_check_branch
    %11 = sbr.rel (0) target = $region9
  $region8: #{rnnlm_forward.5} parent=0 // pred_region
    _
  $region9: #{rnnlm_forward.5} parent=0 // pred_fallthru
    _
  // Predicated region
  $region10: #{rnnlm_forward.5} parent=0 // pred_check
    _
  $region11: #{rnnlm_forward.5} parent=0 // pred_check_branch
    %13 = sbr.rel (0) target = $region13
  $region12: #{rnnlm_forward.5} parent=0 // pred_region
    _
  $region13: #{rnnlm_forward.5} parent=0 // pred_fallthru
    _
  %v15 = vld [vmem:[%s0] sm:$0xf]
  %v16 = vld [vmem:[%s0 + $0x4] sm:$0xf]
  %v17 = vld [vmem:[%s0 + $0x8] sm:$0xf]
  %v18 = vld [vmem:[%s0 + $0xc] sm:$0xf]
  %v19 = vld [vmem:[%s0 + $0x10] sm:$0xf]
  %v20 = vld [vmem:[%s0 + $0x14] sm:$0xf]
  %v21 = vld [vmem:[%s0 + $0x18] sm:$0xf]
  %v22 = vld [vmem:[%s0 + $0x1c] sm:$0xf]
  %v23 = vld [vmem:[%s1] sm:$0xf]
  %v24 = vld [vmem:[%s1 + $0x4] sm:$0xf]
  %v25 = vld [vmem:[%s1 + $0x8] sm:$0xf]
  %v26 = vld [vmem:[%s1 + $0xc] sm:$0xf]
  %v27 = vld [vmem:[%s1 + $0x10] sm:$0xf]
  %v28 = vld [vmem:[%s1 + $0x14] sm:$0xf]
  %v29 = vld [vmem:[%s1 + $0x18] sm:$0xf]
  %v30 = vld [vmem:[%s1 + $0x1c] sm:$0xf]
  %v31 = vld [vmem:[%s1 + $0x20] sm:$0xf]
  %v32 = vld [vmem:[%s1 + $0x24] sm:$0xf]
  %v33 = vld [vmem:[%s1 + $0x28] sm:$0xf]
  %v34 = vld [vmem:[%s1 + $0x2c] sm:$0xf]
  %v35 = vld [vmem:[%s1 + $0x30] sm:$0xf]
  %v36 = vld [vmem:[%s1 + $0x34] sm:$0xf]
  %v37 = vld [vmem:[%s1 + $0x38] sm:$0xf]
  %v38 = vld [vmem:[%s1 + $0x3c] sm:$0xf]
  %v39 = vld [vmem:[%s2] sm:$0x1]
  %v41 = vlaneseq
  %v42 = vshrl.u32 %v41, 7
  %v43 = vsub.s32 0, %v42
  %v44 = vrot.slane %v39, %v43
  %v54 = vunpack.c.l.b16 %v15
  %v55 = vunpack.c.l.b16 %v16
  %v56 = vunpack.c.l.b16 %v17
  %v57 = vunpack.c.l.b16 %v18
  %v58 = vunpack.c.l.b16 %v19
  %v59 = vunpack.c.l.b16 %v20
  %v60 = vunpack.c.l.b16 %v21
  %v61 = vunpack.c.l.b16 %v22
  %v62 = vpack.c.b16 %v55, %v54
  %v63 = vpack.c.b16 %v57, %v56
  %v64 = vpack.c.b16 %v59, %v58
  %v65 = vpack.c.b16 %v61, %v60
  %v86 = vunpack.c.l.b16 %v23
  %v87 = vunpack.c.l.b16 %v24
  %v88 = vunpack.c.l.b16 %v25
  %v89 = vunpack.c.l.b16 %v26
  %v90 = vunpack.c.l.b16 %v27
  %v91 = vunpack.c.l.b16 %v28
  %v92 = vunpack.c.l.b16 %v29
  %v93 = vunpack.c.l.b16 %v30
  %v94 = vunpack.c.l.b16 %v31
  %v95 = vunpack.c.l.b16 %v32
  %v96 = vunpack.c.l.b16 %v33
  %v97 = vunpack.c.l.b16 %v34
  %v98 = vunpack.c.l.b16 %v35
  %v99 = vunpack.c.l.b16 %v36
  %v100 = vunpack.c.l.b16 %v37
  %v101 = vunpack.c.l.b16 %v38
  %v102 = vpack.c.b16 %v87, %v86
  %v103 = vpack.c.b16 %v89, %v88
  %v104 = vpack.c.b16 %v91, %v90
  %v105 = vpack.c.b16 %v93, %v92
  %v106 = vpack.c.b16 %v95, %v94
  %v107 = vpack.c.b16 %v97, %v96
  %v108 = vpack.c.b16 %v99, %v98
  %v109 = vpack.c.b16 %v101, %v100
  %118 = vmatprep.subr.bf16.mxu0 0
  %119 = vmatpush1.bf16.msra.mxu0 %v102
  %120 = vmatprep.subr.bf16.mxu0 0
  %121 = vmatpush1.bf16.msra.mxu0 %v103
  %122 = vmatprep.subr.bf16.mxu0 0
  %123 = vmatpush1.bf16.msra.mxu0 %v104
  %124 = vmatprep.subr.bf16.mxu0 0
  %125 = vmatpush1.bf16.msra.mxu0 %v105
  %126 = vmatprep.subr.bf16.mxu0 0
  %127 = vmatpush1.bf16.msra.mxu0 %v106
  %128 = vmatprep.subr.bf16.mxu0 0
  %129 = vmatpush1.bf16.msra.mxu0 %v107
  %130 = vmatprep.subr.bf16.mxu0 0
  %131 = vmatpush1.bf16.msra.mxu0 %v108
  %132 = vmatprep.subr.bf16.mxu0 0
  %133 = vmatpush1.bf16.msra.mxu0 %v109
  %134 = vmatprep.subr.bf16.mxu0 0
  %135 = vmatpush1.bf16.msra.mxu0 0
  %136 = vmatprep.subr.bf16.mxu0 0
  %137 = vmatpush1.bf16.msra.mxu0 0
  %138 = vmatprep.subr.bf16.mxu0 0
  %139 = vmatpush1.bf16.msra.mxu0 0
  %140 = vmatprep.subr.bf16.mxu0 0
  %141 = vmatpush1.bf16.msra.mxu0 0
  %142 = vmatprep.subr.bf16.mxu0 0
  %143 = vmatpush1.bf16.msra.mxu0 0
  %144 = vmatprep.subr.bf16.mxu0 0
  %145 = vmatpush1.bf16.msra.mxu0 0
  %146 = vmatprep.subr.bf16.mxu0 0
  %147 = vmatpush1.bf16.msra.mxu0 0
  %148 = vmatprep.subr.bf16.mxu0 0
  %149 = vmatpush1.bf16.msra.mxu0 0
  %150 = vmatprep.mubr.bf16.mxu0 0
  %151 = vmatmul.mubr.bf16.gmra.mrb[0].mxu0 %v62
  %v152 = vpop.f32.mrb[0].mxu0
  %v153 = vadd.f32 %v44, %v152
  %v154 = vpop.f32.mrb[0].mxu0
  %v155 = vpop.f32.mrb[0].mxu0
  %v156 = vadd.f32 %v44, %v155
  %v157 = vpop.f32.mrb[0].mxu0
  %158 = vmatprep.mubr.bf16.mxu0 0
  %159 = vmatmul.mubr.bf16.gmra.mrb[0].mxu0 %v63
  %v160 = vpop.f32.mrb[0].mxu0
  %v161 = vadd.f32 %v44, %v160
  %v162 = vpop.f32.mrb[0].mxu0
  %v163 = vpop.f32.mrb[0].mxu0
  %v164 = vadd.f32 %v44, %v163
  %v165 = vpop.f32.mrb[0].mxu0
  %166 = vmatprep.mubr.bf16.mxu0 0
  %167 = vmatmul.mubr.bf16.gmra.mrb[0].mxu0 %v64
  %v168 = vpop.f32.mrb[0].mxu0
  %v169 = vadd.f32 %v44, %v168
  %v170 = vpop.f32.mrb[0].mxu0
  %v171 = vpop.f32.mrb[0].mxu0
  %v172 = vadd.f32 %v44, %v171
  %v173 = vpop.f32.mrb[0].mxu0
  %174 = vmatprep.mubr.bf16.mxu0 0
  %175 = vmatmul.mubr.bf16.gmra.mrb[0].mxu0 %v65
  %v176 = vpop.f32.mrb[0].mxu0
  %v177 = vadd.f32 %v44, %v176
  %v178 = vpop.f32.mrb[0].mxu0
  %v179 = vpop.f32.mrb[0].mxu0
  %v180 = vadd.f32 %v44, %v179
  %v181 = vpop.f32.mrb[0].mxu0
  %182 = vdwg.mxu0
  %183 = vst [vmem:[%s3] sm:$0xff] %v153
  %184 = vst [vmem:[%s3 + $0x8] sm:$0xff] %v156
  %185 = vst [vmem:[%s3 + $0x10] sm:$0xff] %v161
  %186 = vst [vmem:[%s3 + $0x18] sm:$0xff] %v164
  %187 = vst [vmem:[%s3 + $0x20] sm:$0xff] %v169
  %188 = vst [vmem:[%s3 + $0x28] sm:$0xff] %v172
  %189 = vst [vmem:[%s3 + $0x30] sm:$0xff] %v177
  %190 = vst [vmem:[%s3 + $0x38] sm:$0xff] %v180
  // Predicated region
  $region14: #{rnnlm_forward.5} parent=0 // pred_check
    _
  $region15: #{rnnlm_forward.5} parent=0 // pred_check_branch
    %192 = sbr.rel (0) target = $region17
  $region16: #{rnnlm_forward.5} parent=0 // pred_region
    _
  $region17: #{rnnlm_forward.5} parent=0 // pred_fallthru
    _
  // Predicated region
  $region18: #{rnnlm_forward.5} parent=0 // pred_check
    _
  $region19: #{rnnlm_forward.5} parent=0 // pred_check_branch
    %194 = sbr.rel (0) target = $region21
  $region20: #{rnnlm_forward.5} parent=0 // pred_region
    _
  $region21: #{rnnlm_forward.5} parent=0 // pred_fallthru
    _

// kernel: rnnlm_forward.3
$region0: #{rnnlm_forward.3}
  #allocation0 [shape = 'u32[]', space=smem, size = 0x4, offset = 0x4, fixed_abs, tag = 'smem constant byte address 0x4 - core index']
  #allocation1 [shape = 'u32[144,128]{1,0:T(1,128)}', space=vmem, size = 0x12000, scoped, tag = 'internal scratch']
  #allocation2 [shape = 'bf16[8,128]{1,0:T(8,128)(2,1)}', space=vmem, size = 0x800, scoped, tag = 'scratch operand']
  #allocation3 [shape = 'f32[8,128]{1,0:T(8,128)}', space=vmem, size = 0x1000, scoped, tag = 'scratch operand']
  #allocation4 [shape = 'f32[8,8,512]{2,1,0:T(8,128)}', space=vmem, size = 0x20000, scoped, tag = 'scratch operand']
  %s0 = inlined_call_operand.vmem [shape: bf16[8,8,128], index: 0, kind: input, shape index: {}]
  %s1 = inlined_call_operand.vmem [shape: bf16[128,512], index: 1, kind: input, shape index: {}]
  %s2 = inlined_call_operand.hbm [shape: bf16[128,512], index: 2, kind: input, shape index: {}]
  %s3 = inlined_call_operand.vmem [shape: f32[1,512], index: 3, kind: input, shape index: {}]
  %s4 = inlined_call_operand.vmem [shape: bf16[8,128], index: 4, kind: input, shape index: {}]
  %s5 = inlined_call_operand.vmem [shape: f32[8,128], index: 5, kind: input, shape index: {}]
  %s6 = inlined_call_operand.vmem [shape: bf16[8,8,128], index: 6, kind: output, shape index: {0}]
  %s7 = inlined_call_operand.vmem [shape: bf16[8,128], index: 7, kind: output, shape index: {1}]
  %s8 = inlined_call_operand.vmem [shape: f32[8,128], index: 8, kind: output, shape index: {2}]
  %9 = xla_tuple %s6, %s7, %s8
  %s10 = sld [smem:[#allocation0]]
  $region58: #{rnnlm_forward.3} parent=0
    _
  %s12 = ssub.s32 1, %s10
  %s13 = scalar_select 0, %s12, %s10
  $region1: #{rnnlm_forward.3} parent=0
    #allocation5 [shape = 'u8[131072]{0}', space=vmem, size = 0x20000, scoped, tag = 'input window, operand 2, single buffered']
    #allocation6 [shape = 's32[1]{0}', space=sflag, size = 0x4, scoped, tag = 'scoped memory for rnnlm_forward.3']
    %14 = vsyncpa [#allocation6], 0
    // Predicated region
    $region2: #{rnnlm_forward.3} parent=1 // pred_check
      _
    $region3: #{rnnlm_forward.3} parent=1 // pred_check_branch
      %16 = sbr.rel (0) target = $region5
    $region4: #{rnnlm_forward.3} parent=1 // pred_region
      _
    $region5: #{rnnlm_forward.3} parent=1 // pred_fallthru
      _
    // Predicated region
    $region6: #{rnnlm_forward.3} parent=1 // pred_check
      _
    $region7: #{rnnlm_forward.3} parent=1 // pred_check_branch
      %18 = sbr.rel (0) target = $region9
    $region8: #{rnnlm_forward.3} parent=1 // pred_region
      _
    $region9: #{rnnlm_forward.3} parent=1 // pred_fallthru
      _
    // Predicated region
    $region10: #{rnnlm_forward.3} parent=1 // pred_check
      _
    $region11: #{rnnlm_forward.3} parent=1 // pred_check_branch
      %20 = sbr.rel (0) target = $region13
    $region12: #{rnnlm_forward.3} parent=1 // pred_region
      %s22 = ssub.s32 4096, 4096
      %23 = vsyncadd [#allocation6], %s22
      %s24 = sshll.u32 [#allocation5], 4
      %s25 = int_to_ptr.vmem [resolvable:$true] %s24
      %30 = dma.hbm_to_vmem [thread:$0]  %s2, 4096, %s25, [#allocation6], 256, 256, 16
    $region13: #{rnnlm_forward.3} parent=1 // pred_fallthru
      _
    // Predicated region
    $region14: #{rnnlm_forward.3} parent=1 // pred_check
      _
    $region15: #{rnnlm_forward.3} parent=1 // pred_check_branch
      %32 = sbr.rel (0) target = $region17
    $region16: #{rnnlm_forward.3} parent=1 // pred_region
      _
    $region17: #{rnnlm_forward.3} parent=1 // pred_fallthru
      _
    // Predicated region
    $region18: #{rnnlm_forward.3} parent=1 // pred_check
      _
    $region19: #{rnnlm_forward.3} parent=1 // pred_check_branch
      %34 = sbr.rel (0) target = $region21
    $region20: #{rnnlm_forward.3} parent=1 // pred_region
      _
    $region21: #{rnnlm_forward.3} parent=1 // pred_fallthru
      _
    // Predicated region
    $region22: #{rnnlm_forward.3} parent=1 // pred_check
      _
    $region23: #{rnnlm_forward.3} parent=1 // pred_check_branch
      %36 = sbr.rel (0) target = $region25
    $region24: #{rnnlm_forward.3} parent=1 // pred_region
      _
    $region25: #{rnnlm_forward.3} parent=1 // pred_fallthru
      _
    // Predicated region
    $region26: #{rnnlm_forward.3} parent=1 // pred_check
      _
    $region27: #{rnnlm_forward.3} parent=1 // pred_check_branch
      %38 = sbr.rel (0) target = $region29
    $region28: #{rnnlm_forward.3} parent=1 // pred_region
      %39 = dma.done [#allocation6], 4096
    $region29: #{rnnlm_forward.3} parent=1 // pred_fallthru
      _
    %p41 = scmp.eq.s32.totalorder 0, 0
    // Predicated region
    $region30: #{rnnlm_forward.3} parent=1 // pred_check
      %p42 = pneg %p41
    $region31: #{rnnlm_forward.3} parent=1 // pred_check_branch
      %44 = sbr.rel (%p42) target = $region33
    $region32: #{rnnlm_forward.3} parent=1 // pred_region
      %v45 = vld [vmem:[%s4] sm:$0xf]
      %46 = vst [vmem:[#allocation2] sm:$0xf] %v45
      %v47 = vld [vmem:[%s5] sm:$0xff]
      %48 = vst [vmem:[#allocation3] sm:$0xff] %v47
    $region33: #{rnnlm_forward.3} parent=1 // pred_fallthru
      _
    %v49 = vld [vmem:[%s0] sm:$0xf]
    %v50 = vld [vmem:[%s0 + $0x4] sm:$0xf]
    %v51 = vld [vmem:[%s0 + $0x8] sm:$0xf]
    %v52 = vld [vmem:[%s0 + $0xc] sm:$0xf]
    %v53 = vld [vmem:[%s0 + $0x10] sm:$0xf]
    %v54 = vld [vmem:[%s0 + $0x14] sm:$0xf]
    %v55 = vld [vmem:[%s0 + $0x18] sm:$0xf]
    %v56 = vld [vmem:[%s0 + $0x1c] sm:$0xf]
    %v57 = vld [vmem:[%s1] sm:$0xff]
    %v58 = vld [vmem:[%s1 + $0x8] sm:$0xff]
    %v59 = vld [vmem:[%s1 + $0x10] sm:$0xff]
    %v60 = vld [vmem:[%s1 + $0x18] sm:$0xff]
    %v61 = vld [vmem:[%s1 + $0x20] sm:$0xff]
    %v62 = vld [vmem:[%s1 + $0x28] sm:$0xff]
    %v63 = vld [vmem:[%s1 + $0x30] sm:$0xff]
    %v64 = vld [vmem:[%s1 + $0x38] sm:$0xff]
    %v65 = vld [vmem:[%s1 + $0x40] sm:$0xff]
    %v66 = vld [vmem:[%s1 + $0x48] sm:$0xff]
    %v67 = vld [vmem:[%s1 + $0x50] sm:$0xff]
    %v68 = vld [vmem:[%s1 + $0x58] sm:$0xff]
    %v69 = vld [vmem:[%s1 + $0x60] sm:$0xff]
    %v70 = vld [vmem:[%s1 + $0x68] sm:$0xff]
    %v71 = vld [vmem:[%s1 + $0x70] sm:$0xff]
    %v72 = vld [vmem:[%s1 + $0x78] sm:$0xff]
    %v73 = vld [vmem:[%s1 + $0x80] sm:$0xff]
    %v74 = vld [vmem:[%s1 + $0x88] sm:$0xff]
    %v75 = vld [vmem:[%s1 + $0x90] sm:$0xff]
    %v76 = vld [vmem:[%s1 + $0x98] sm:$0xff]
    %v77 = vld [vmem:[%s1 + $0xa0] sm:$0xff]
    %v78 = vld [vmem:[%s1 + $0xa8] sm:$0xff]
    %v79 = vld [vmem:[%s1 + $0xb0] sm:$0xff]
    %v80 = vld [vmem:[%s1 + $0xb8] sm:$0xff]
    %v81 = vld [vmem:[%s1 + $0xc0] sm:$0xff]
    %v82 = vld [vmem:[%s1 + $0xc8] sm:$0xff]
    %v83 = vld [vmem:[%s1 + $0xd0] sm:$0xff]
    %v84 = vld [vmem:[%s1 + $0xd8] sm:$0xff]
    %v85 = vld [vmem:[%s1 + $0xe0] sm:$0xff]
    %v86 = vld [vmem:[%s1 + $0xe8] sm:$0xff]
    %v87 = vld [vmem:[%s1 + $0xf0] sm:$0xff]
    %v88 = vld [vmem:[%s1 + $0xf8] sm:$0xff]
    %v89 = vld [vmem:[%s3] sm:$0xf]
    %v91 = vlaneseq
    %v92 = vshrl.u32 %v91, 7
    %v93 = vsub.s32 0, %v92
    %v94 = vrot.slane %v89, %v93
    %v95 = vlaneseq
    %v96 = vshrl.u32 %v95, 7
    %v97 = vsub.s32 1, %v96
    %v98 = vrot.slane %v89, %v97
    %v99 = vlaneseq
    %v100 = vshrl.u32 %v99, 7
    %v101 = vsub.s32 2, %v100
    %v102 = vrot.slane %v89, %v101
    %v103 = vlaneseq
    %v104 = vshrl.u32 %v103, 7
    %v105 = vsub.s32 3, %v104
    %v106 = vrot.slane %v89, %v105
    %v119 = vunpack.c.l.b16 %v49
    %v120 = vunpack.c.l.b16 %v50
    %v121 = vunpack.c.l.b16 %v51
    %v122 = vunpack.c.l.b16 %v52
    %v123 = vunpack.c.l.b16 %v53
    %v124 = vunpack.c.l.b16 %v54
    %v125 = vunpack.c.l.b16 %v55
    %v126 = vunpack.c.l.b16 %v56
    %v127 = vpack.c.b16 %v120, %v119
    %v128 = vpack.c.b16 %v122, %v121
    %v129 = vpack.c.b16 %v124, %v123
    %v130 = vpack.c.b16 %v126, %v125
    %v167 = vunpack.c.l.b16 %v57
    %v168 = vunpack.c.h.b16 %v57
    %v169 = vunpack.c.l.b16 %v58
    %v170 = vunpack.c.h.b16 %v58
    %v171 = vunpack.c.l.b16 %v59
    %v172 = vunpack.c.h.b16 %v59
    %v173 = vunpack.c.l.b16 %v60
    %v174 = vunpack.c.h.b16 %v60
    %v175 = vunpack.c.l.b16 %v61
    %v176 = vunpack.c.h.b16 %v61
    %v177 = vunpack.c.l.b16 %v62
    %v178 = vunpack.c.h.b16 %v62
    %v179 = vunpack.c.l.b16 %v63
    %v180 = vunpack.c.h.b16 %v63
    %v181 = vunpack.c.l.b16 %v64
    %v182 = vunpack.c.h.b16 %v64
    %v183 = vunpack.c.l.b16 %v65
    %v184 = vunpack.c.h.b16 %v65
    %v185 = vunpack.c.l.b16 %v66
    %v186 = vunpack.c.h.b16 %v66
    %v187 = vunpack.c.l.b16 %v67
    %v188 = vunpack.c.h.b16 %v67
    %v189 = vunpack.c.l.b16 %v68
    %v190 = vunpack.c.h.b16 %v68
    %v191 = vunpack.c.l.b16 %v69
    %v192 = vunpack.c.h.b16 %v69
    %v193 = vunpack.c.l.b16 %v70
    %v194 = vunpack.c.h.b16 %v70
    %v195 = vunpack.c.l.b16 %v71
    %v196 = vunpack.c.h.b16 %v71
    %v197 = vunpack.c.l.b16 %v72
    %v198 = vunpack.c.h.b16 %v72
    %v199 = vunpack.c.l.b16 %v73
    %v200 = vunpack.c.h.b16 %v73
    %v201 = vunpack.c.l.b16 %v74
    %v202 = vunpack.c.h.b16 %v74
    %v203 = vunpack.c.l.b16 %v75
    %v204 = vunpack.c.h.b16 %v75
    %v205 = vunpack.c.l.b16 %v76
    %v206 = vunpack.c.h.b16 %v76
    %v207 = vunpack.c.l.b16 %v77
    %v208 = vunpack.c.h.b16 %v77
    %v209 = vunpack.c.l.b16 %v78
    %v210 = vunpack.c.h.b16 %v78
    %v211 = vunpack.c.l.b16 %v79
    %v212 = vunpack.c.h.b16 %v79
    %v213 = vunpack.c.l.b16 %v80
    %v214 = vunpack.c.h.b16 %v80
    %v215 = vunpack.c.l.b16 %v81
    %v216 = vunpack.c.h.b16 %v81
    %v217 = vunpack.c.l.b16 %v82
    %v218 = vunpack.c.h.b16 %v82
    %v219 = vunpack.c.l.b16 %v83
    %v220 = vunpack.c.h.b16 %v83
    %v221 = vunpack.c.l.b16 %v84
    %v222 = vunpack.c.h.b16 %v84
    %v223 = vunpack.c.l.b16 %v85
    %v224 = vunpack.c.h.b16 %v85
    %v225 = vunpack.c.l.b16 %v86
    %v226 = vunpack.c.h.b16 %v86
    %v227 = vunpack.c.l.b16 %v87
    %v228 = vunpack.c.h.b16 %v87
    %v229 = vunpack.c.l.b16 %v88
    %v230 = vunpack.c.h.b16 %v88
    %v231 = vpack.c.b16 %v171, %v167
    %v232 = vpack.c.b16 %v172, %v168
    %v233 = vpack.c.b16 %v173, %v169
    %v234 = vpack.c.b16 %v174, %v170
    %v235 = vpack.c.b16 %v179, %v175
    %v236 = vpack.c.b16 %v180, %v176
    %v237 = vpack.c.b16 %v181, %v177
    %v238 = vpack.c.b16 %v182, %v178
    %v239 = vpack.c.b16 %v187, %v183
    %v240 = vpack.c.b16 %v188, %v184
    %v241 = vpack.c.b16 %v189, %v185
    %v242 = vpack.c.b16 %v190, %v186
    %v243 = vpack.c.b16 %v195, %v191
    %v244 = vpack.c.b16 %v196, %v192
    %v245 = vpack.c.b16 %v197, %v193
    %v246 = vpack.c.b16 %v198, %v194
    %v247 = vpack.c.b16 %v203, %v199
    %v248 = vpack.c.b16 %v204, %v200
    %v249 = vpack.c.b16 %v205, %v201
    %v250 = vpack.c.b16 %v206, %v202
    %v251 = vpack.c.b16 %v211, %v207
    %v252 = vpack.c.b16 %v212, %v208
    %v253 = vpack.c.b16 %v213, %v209
    %v254 = vpack.c.b16 %v214, %v210
    %v255 = vpack.c.b16 %v219, %v215
    %v256 = vpack.c.b16 %v220, %v216
    %v257 = vpack.c.b16 %v221, %v217
    %v258 = vpack.c.b16 %v222, %v218
    %v259 = vpack.c.b16 %v227, %v223
    %v260 = vpack.c.b16 %v228, %v224
    %v261 = vpack.c.b16 %v229, %v225
    %v262 = vpack.c.b16 %v230, %v226
    %295 = vmatprep.subr.bf16.mxu0 %v232
    %296 = vmatpush1.bf16.msra.mxu0 %v231
    %297 = vmatprep.subr.bf16.mxu0 %v236
    %298 = vmatpush1.bf16.msra.mxu0 %v235
    %299 = vmatprep.subr.bf16.mxu0 %v240
    %300 = vmatpush1.bf16.msra.mxu0 %v239
    %301 = vmatprep.subr.bf16.mxu0 %v244
    %302 = vmatpush1.bf16.msra.mxu0 %v243
    %303 = vmatprep.subr.bf16.mxu0 %v248
    %304 = vmatpush1.bf16.msra.mxu0 %v247
    %305 = vmatprep.subr.bf16.mxu0 %v252
    %306 = vmatpush1.bf16.msra.mxu0 %v251
    %307 = vmatprep.subr.bf16.mxu0 %v256
    %308 = vmatpush1.bf16.msra.mxu0 %v255
    %309 = vmatprep.subr.bf16.mxu0 %v260
    %310 = vmatpush1.bf16.msra.mxu0 %v259
    %311 = vmatprep.subr.bf16.mxu0 0
    %312 = vmatpush1.bf16.msra.mxu0 0
    %313 = vmatprep.subr.bf16.mxu0 0
    %314 = vmatpush1.bf16.msra.mxu0 0
    %315 = vmatprep.subr.bf16.mxu0 0
    %316 = vmatpush1.bf16.msra.mxu0 0
    %317 = vmatprep.subr.bf16.mxu0 0
    %318 = vmatpush1.bf16.msra.mxu0 0
    %319 = vmatprep.subr.bf16.mxu0 0
    %320 = vmatpush1.bf16.msra.mxu0 0
    %321 = vmatprep.subr.bf16.mxu0 0
    %322 = vmatpush1.bf16.msra.mxu0 0
    %323 = vmatprep.subr.bf16.mxu0 0
    %324 = vmatpush1.bf16.msra.mxu0 0
    %325 = vmatprep.subr.bf16.mxu0 0
    %326 = vmatpush1.bf16.msra.mxu0 0
    %327 = vmatprep.mubr.bf16.mxu0 0
    %328 = vmatmul.mubr.bf16.gmra.mrb[0].mxu0 %v127
    %v329 = vpop.f32.mrb[0].mxu0
    %v330 = vadd.f32 %v94, %v329
    %v331 = vpop.f32.mrb[0].mxu0
    %v332 = vadd.f32 %v98, %v331
    %v333 = vpop.f32.mrb[0].mxu0
    %v334 = vadd.f32 %v94, %v333
    %v335 = vpop.f32.mrb[0].mxu0
    %v336 = vadd.f32 %v98, %v335
    %337 = vmatprep.mubr.bf16.mxu0 0
    %338 = vmatmul.mubr.bf16.gmra.mrb[0].mxu0 %v128
    %v339 = vpop.f32.mrb[0].mxu0
    %v340 = vadd.f32 %v94, %v339
    %v341 = vpop.f32.mrb[0].mxu0
    %v342 = vadd.f32 %v98, %v341
    %v343 = vpop.f32.mrb[0].mxu0
    %v344 = vadd.f32 %v94, %v343
    %v345 = vpop.f32.mrb[0].mxu0
    %v346 = vadd.f32 %v98, %v345
    %347 = vmatprep.mubr.bf16.mxu0 0
    %348 = vmatmul.mubr.bf16.gmra.mrb[0].mxu0 %v129
    %v349 = vpop.f32.mrb[0].mxu0
    %v350 = vadd.f32 %v94, %v349
    %v351 = vpop.f32.mrb[0].mxu0
    %v352 = vadd.f32 %v98, %v351
    %v353 = vpop.f32.mrb[0].mxu0
    %v354 = vadd.f32 %v94, %v353
    %v355 = vpop.f32.mrb[0].mxu0
    %v356 = vadd.f32 %v98, %v355
    %357 = vmatprep.mubr.bf16.mxu0 0
    %358 = vmatmul.mubr.bf16.gmra.mrb[0].mxu0 %v130
    %v359 = vpop.f32.mrb[0].mxu0
    %v360 = vadd.f32 %v94, %v359
    %v361 = vpop.f32.mrb[0].mxu0
    %v362 = vadd.f32 %v98, %v361
    %v363 = vpop.f32.mrb[0].mxu0
    %v364 = vadd.f32 %v94, %v363
    %v365 = vpop.f32.mrb[0].mxu0
    %v366 = vadd.f32 %v98, %v365
    %367 = vdwg.mxu0
    %368 = vmatprep.subr.bf16.mxu0 %v234
    %369 = vmatpush1.bf16.msra.mxu0 %v233
    %370 = vmatprep.subr.bf16.mxu0 %v238
    %371 = vmatpush1.bf16.msra.mxu0 %v237
    %372 = vmatprep.subr.bf16.mxu0 %v242
    %373 = vmatpush1.bf16.msra.mxu0 %v241
    %374 = vmatprep.subr.bf16.mxu0 %v246
    %375 = vmatpush1.bf16.msra.mxu0 %v245
    %376 = vmatprep.subr.bf16.mxu0 %v250
    %377 = vmatpush1.bf16.msra.mxu0 %v249
    %378 = vmatprep.subr.bf16.mxu0 %v254
    %379 = vmatpush1.bf16.msra.mxu0 %v253
    %380 = vmatprep.subr.bf16.mxu0 %v258
    %381 = vmatpush1.bf16.msra.mxu0 %v257
    %382 = vmatprep.subr.bf16.mxu0 %v262
    %383 = vmatpush1.bf16.msra.mxu0 %v261
    %384 = vmatprep.subr.bf16.mxu0 0
    %385 = vmatpush1.bf16.msra.mxu0 0
    %386 = vmatprep.subr.bf16.mxu0 0
    %387 = vmatpush1.bf16.msra.mxu0 0
    %388 = vmatprep.subr.bf16.mxu0 0
    %389 = vmatpush1.bf16.msra.mxu0 0
    %390 = vmatprep.subr.bf16.mxu0 0
    %391 = vmatpush1.bf16.msra.mxu0 0
    %392 = vmatprep.subr.bf16.mxu0 0
    %393 = vmatpush1.bf16.msra.mxu0 0
    %394 = vmatprep.subr.bf16.mxu0 0
    %395 = vmatpush1.bf16.msra.mxu0 0
    %396 = vmatprep.subr.bf16.mxu0 0
    %397 = vmatpush1.bf16.msra.mxu0 0
    %398 = vmatprep.subr.bf16.mxu0 0
    %399 = vmatpush1.bf16.msra.mxu0 0
    %400 = vmatprep.mubr.bf16.mxu0 0
    %401 = vmatmul.mubr.bf16.gmra.mrb[0].mxu0 %v127
    %v402 = vpop.f32.mrb[0].mxu0
    %v403 = vadd.f32 %v102, %v402
    %v404 = vpop.f32.mrb[0].mxu0
    %v405 = vadd.f32 %v106, %v404
    %v406 = vpop.f32.mrb[0].mxu0
    %v407 = vadd.f32 %v102, %v406
    %v408 = vpop.f32.mrb[0].mxu0
    %v409 = vadd.f32 %v106, %v408
    %410 = vmatprep.mubr.bf16.mxu0 0
    %411 = vmatmul.mubr.bf16.gmra.mrb[0].mxu0 %v128
    %v412 = vpop.f32.mrb[0].mxu0
    %v413 = vadd.f32 %v102, %v412
    %v414 = vpop.f32.mrb[0].mxu0
    %v415 = vadd.f32 %v106, %v414
    %v416 = vpop.f32.mrb[0].mxu0
    %v417 = vadd.f32 %v102, %v416
    %v418 = vpop.f32.mrb[0].mxu0
    %v419 = vadd.f32 %v106, %v418
    %420 = vmatprep.mubr.bf16.mxu0 0
    %421 = vmatmul.mubr.bf16.gmra.mrb[0].mxu0 %v129
    %v422 = vpop.f32.mrb[0].mxu0
    %v423 = vadd.f32 %v102, %v422
    %v424 = vpop.f32.mrb[0].mxu0
    %v425 = vadd.f32 %v106, %v424
    %v426 = vpop.f32.mrb[0].mxu0
    %v427 = vadd.f32 %v102, %v426
    %v428 = vpop.f32.mrb[0].mxu0
    %v429 = vadd.f32 %v106, %v428
    %430 = vmatprep.mubr.bf16.mxu0 0
    %431 = vmatmul.mubr.bf16.gmra.mrb[0].mxu0 %v130
    %v432 = vpop.f32.mrb[0].mxu0
    %v433 = vadd.f32 %v102, %v432
    %v434 = vpop.f32.mrb[0].mxu0
    %v435 = vadd.f32 %v106, %v434
    %v436 = vpop.f32.mrb[0].mxu0
    %v437 = vadd.f32 %v102, %v436
    %v438 = vpop.f32.mrb[0].mxu0
    %v439 = vadd.f32 %v106, %v438
    %440 = vdwg.mxu0
    %441 = vst [vmem:[#allocation4] sm:$0xff] %v330
    %442 = vst [vmem:[#allocation4 + $0x8] sm:$0xff] %v332
    %443 = vst [vmem:[#allocation4 + $0x10] sm:$0xff] %v403
    %444 = vst [vmem:[#allocation4 + $0x18] sm:$0xff] %v405
    %445 = vst [vmem:[#allocation4 + $0x20] sm:$0xff] %v334
    %446 = vst [vmem:[#allocation4 + $0x28] sm:$0xff] %v336
    %447 = vst [vmem:[#allocation4 + $0x30] sm:$0xff] %v407
    %448 = vst [vmem:[#allocation4 + $0x38] sm:$0xff] %v409
    %449 = vst [vmem:[#allocation4 + $0x40] sm:$0xff] %v340
    %450 = vst [vmem:[#allocation4 + $0x48] sm:$0xff] %v342
    %451 = vst [vmem:[#allocation4 + $0x50] sm:$0xff] %v413
    %452 = vst [vmem:[#allocation4 + $0x58] sm:$0xff] %v415
    %453 = vst [vmem:[#allocation4 + $0x60] sm:$0xff] %v344
    %454 = vst [vmem:[#allocation4 + $0x68] sm:$0xff] %v346
    %455 = vst [vmem:[#allocation4 + $0x70] sm:$0xff] %v417
    %456 = vst [vmem:[#allocation4 + $0x78] sm:$0xff] %v419
    %457 = vst [vmem:[#allocation4 + $0x80] sm:$0xff] %v350
    %458 = vst [vmem:[#allocation4 + $0x88] sm:$0xff] %v352
    %459 = vst [vmem:[#allocation4 + $0x90] sm:$0xff] %v423
    %460 = vst [vmem:[#allocation4 + $0x98] sm:$0xff] %v425
    %461 = vst [vmem:[#allocation4 + $0xa0] sm:$0xff] %v354
    %462 = vst [vmem:[#allocation4 + $0xa8] sm:$0xff] %v356
    %463 = vst [vmem:[#allocation4 + $0xb0] sm:$0xff] %v427
    %464 = vst [vmem:[#allocation4 + $0xb8] sm:$0xff] %v429
    %465 = vst [vmem:[#allocation4 + $0xc0] sm:$0xff] %v360
    %466 = vst [vmem:[#allocation4 + $0xc8] sm:$0xff] %v362
    %467 = vst [vmem:[#allocation4 + $0xd0] sm:$0xff] %v433
    %468 = vst [vmem:[#allocation4 + $0xd8] sm:$0xff] %v435
    %469 = vst [vmem:[#allocation4 + $0xe0] sm:$0xff] %v364
    %470 = vst [vmem:[#allocation4 + $0xe8] sm:$0xff] %v366
    %471 = vst [vmem:[#allocation4 + $0xf0] sm:$0xff] %v437
    %472 = vst [vmem:[#allocation4 + $0xf8] sm:$0xff] %v439
    %v473 = vld [vmem:[#allocation5] sm:$0xff]
    %v474 = vld [vmem:[#allocation5 + $0x8] sm:$0xff]
    %v475 = vld [vmem:[#allocation5 + $0x10] sm:$0xff]
    %v476 = vld [vmem:[#allocation5 + $0x18] sm:$0xff]
    %v477 = vld [vmem:[#allocation5 + $0x20] sm:$0xff]
    %v478 = vld [vmem:[#allocation5 + $0x28] sm:$0xff]
    %v479 = vld [vmem:[#allocation5 + $0x30] sm:$0xff]
    %v480 = vld [vmem:[#allocation5 + $0x38] sm:$0xff]
    %v481 = vld [vmem:[#allocation5 + $0x40] sm:$0xff]
    %v482 = vld [vmem:[#allocation5 + $0x48] sm:$0xff]
    %v483 = vld [vmem:[#allocation5 + $0x50] sm:$0xff]
    %v484 = vld [vmem:[#allocation5 + $0x58] sm:$0xff]
    %v485 = vld [vmem:[#allocation5 + $0x60] sm:$0xff]
    %v486 = vld [vmem:[#allocation5 + $0x68] sm:$0xff]
    %v487 = vld [vmem:[#allocation5 + $0x70] sm:$0xff]
    %v488 = vld [vmem:[#allocation5 + $0x78] sm:$0xff]
    %v489 = vld [vmem:[#allocation5 + $0x80] sm:$0xff]
    %v490 = vld [vmem:[#allocation5 + $0x88] sm:$0xff]
    %v491 = vld [vmem:[#allocation5 + $0x90] sm:$0xff]
    %v492 = vld [vmem:[#allocation5 + $0x98] sm:$0xff]
    %v493 = vld [vmem:[#allocation5 + $0xa0] sm:$0xff]
    %v494 = vld [vmem:[#allocation5 + $0xa8] sm:$0xff]
    %v495 = vld [vmem:[#allocation5 + $0xb0] sm:$0xff]
    %v496 = vld [vmem:[#allocation5 + $0xb8] sm:$0xff]
    %v497 = vld [vmem:[#allocation5 + $0xc0] sm:$0xff]
    %v498 = vld [vmem:[#allocation5 + $0xc8] sm:$0xff]
    %v499 = vld [vmem:[#allocation5 + $0xd0] sm:$0xff]
    %v500 = vld [vmem:[#allocation5 + $0xd8] sm:$0xff]
    %v501 = vld [vmem:[#allocation5 + $0xe0] sm:$0xff]
    %v502 = vld [vmem:[#allocation5 + $0xe8] sm:$0xff]
    %v503 = vld [vmem:[#allocation5 + $0xf0] sm:$0xff]
    %v504 = vld [vmem:[#allocation5 + $0xf8] sm:$0xff]
    %v505 = vld [vmem:[#allocation2] sm:$0xf]
    %v506 = vld [vmem:[#allocation3] sm:$0xff]
    %v507 = vld [vmem:[#allocation4] sm:$0xff]
    %v508 = vld [vmem:[#allocation4 + $0x8] sm:$0xff]
    %v509 = vld [vmem:[#allocation4 + $0x10] sm:$0xff]
    %v510 = vld [vmem:[#allocation4 + $0x18] sm:$0xff]
    %v543 = vunpack.c.l.b16 %v473
    %v544 = vunpack.c.h.b16 %v473
    %v545 = vunpack.c.l.b16 %v474
    %v546 = vunpack.c.h.b16 %v474
    %v547 = vunpack.c.l.b16 %v475
    %v548 = vunpack.c.h.b16 %v475
    %v549 = vunpack.c.l.b16 %v476
    %v550 = vunpack.c.h.b16 %v476
    %v551 = vunpack.c.l.b16 %v477
    %v552 = vunpack.c.h.b16 %v477
    %v553 = vunpack.c.l.b16 %v478
    %v554 = vunpack.c.h.b16 %v478
    %v555 = vunpack.c.l.b16 %v479
    %v556 = vunpack.c.h.b16 %v479
    %v557 = vunpack.c.l.b16 %v480
    %v558 = vunpack.c.h.b16 %v480
    %v559 = vunpack.c.l.b16 %v481
    %v560 = vunpack.c.h.b16 %v481
    %v561 = vunpack.c.l.b16 %v482
    %v562 = vunpack.c.h.b16 %v482
    %v563 = vunpack.c.l.b16 %v483
    %v564 = vunpack.c.h.b16 %v483
    %v565 = vunpack.c.l.b16 %v484
    %v566 = vunpack.c.h.b16 %v484
    %v567 = vunpack.c.l.b16 %v485
    %v568 = vunpack.c.h.b16 %v485
    %v569 = vunpack.c.l.b16 %v486
    %v570 = vunpack.c.h.b16 %v486
    %v571 = vunpack.c.l.b16 %v487
    %v572 = vunpack.c.h.b16 %v487
    %v573 = vunpack.c.l.b16 %v488
    %v574 = vunpack.c.h.b16 %v488
    %v575 = vunpack.c.l.b16 %v489
    %v576 = vunpack.c.h.b16 %v489
    %v577 = vunpack.c.l.b16 %v490
    %v578 = vunpack.c.h.b16 %v490
    %v579 = vunpack.c.l.b16 %v491
    %v580 = vunpack.c.h.b16 %v491
    %v581 = vunpack.c.l.b16 %v492
    %v582 = vunpack.c.h.b16 %v492
    %v583 = vunpack.c.l.b16 %v493
    %v584 = vunpack.c.h.b16 %v493
    %v585 = vunpack.c.l.b16 %v494
    %v586 = vunpack.c.h.b16 %v494
    %v587 = vunpack.c.l.b16 %v495
    %v588 = vunpack.c.h.b16 %v495
    %v589 = vunpack.c.l.b16 %v496
    %v590 = vunpack.c.h.b16 %v496
    %v591 = vunpack.c.l.b16 %v497
    %v592 = vunpack.c.h.b16 %v497
    %v593 = vunpack.c.l.b16 %v498
    %v594 = vunpack.c.h.b16 %v498
    %v595 = vunpack.c.l.b16 %v499
    %v596 = vunpack.c.h.b16 %v499
    %v597 = vunpack.c.l.b16 %v500
    %v598 = vunpack.c.h.b16 %v500
    %v599 = vunpack.c.l.b16 %v501
    %v600 = vunpack.c.h.b16 %v501
    %v601 = vunpack.c.l.b16 %v502
    %v602 = vunpack.c.h.b16 %v502
    %v603 = vunpack.c.l.b16 %v503
    %v604 = vunpack.c.h.b16 %v503
    %v605 = vunpack.c.l.b16 %v504
    %v606 = vunpack.c.h.b16 %v504
    %v607 = vpack.c.b16 %v547, %v543
    %v608 = vpack.c.b16 %v548, %v544
    %v609 = vpack.c.b16 %v549, %v545
    %v610 = vpack.c.b16 %v550, %v546
    %v611 = vpack.c.b16 %v555, %v551
    %v612 = vpack.c.b16 %v556, %v552
    %v613 = vpack.c.b16 %v557, %v553
    %v614 = vpack.c.b16 %v558, %v554
    %v615 = vpack.c.b16 %v563, %v559
    %v616 = vpack.c.b16 %v564, %v560
    %v617 = vpack.c.b16 %v565, %v561
    %v618 = vpack.c.b16 %v566, %v562
    %v619 = vpack.c.b16 %v571, %v567
    %v620 = vpack.c.b16 %v572, %v568
    %v621 = vpack.c.b16 %v573, %v569
    %v622 = vpack.c.b16 %v574, %v570
    %v623 = vpack.c.b16 %v579, %v575
    %v624 = vpack.c.b16 %v580, %v576
    %v625 = vpack.c.b16 %v581, %v577
    %v626 = vpack.c.b16 %v582, %v578
    %v627 = vpack.c.b16 %v587, %v583
    %v628 = vpack.c.b16 %v588, %v584
    %v629 = vpack.c.b16 %v589, %v585
    %v630 = vpack.c.b16 %v590, %v586
    %v631 = vpack.c.b16 %v595, %v591
    %v632 = vpack.c.b16 %v596, %v592
    %v633 = vpack.c.b16 %v597, %v593
    %v634 = vpack.c.b16 %v598, %v594
    %v635 = vpack.c.b16 %v603, %v599
    %v636 = vpack.c.b16 %v604, %v600
    %v637 = vpack.c.b16 %v605, %v601
    %v638 = vpack.c.b16 %v606, %v602
    %671 = vmatprep.subr.bf16.mxu0 %v608
    %672 = vmatpush1.bf16.msra.mxu0 %v607
    %673 = vmatprep.subr.bf16.mxu0 %v612
    %674 = vmatpush1.bf16.msra.mxu0 %v611
    %675 = vmatprep.subr.bf16.mxu0 %v616
    %676 = vmatpush1.bf16.msra.mxu0 %v615
    %677 = vmatprep.subr.bf16.mxu0 %v620
    %678 = vmatpush1.bf16.msra.mxu0 %v619
    %679 = vmatprep.subr.bf16.mxu0 %v624
    %680 = vmatpush1.bf16.msra.mxu0 %v623
    %681 = vmatprep.subr.bf16.mxu0 %v628
    %682 = vmatpush1.bf16.msra.mxu0 %v627
    %683 = vmatprep.subr.bf16.mxu0 %v632
    %684 = vmatpush1.bf16.msra.mxu0 %v631
    %685 = vmatprep.subr.bf16.mxu0 %v636
    %686 = vmatpush1.bf16.msra.mxu0 %v635
    %687 = vmatprep.subr.bf16.mxu0 0
    %688 = vmatpush1.bf16.msra.mxu0 0
    %689 = vmatprep.subr.bf16.mxu0 0
    %690 = vmatpush1.bf16.msra.mxu0 0
    %691 = vmatprep.subr.bf16.mxu0 0
    %692 = vmatpush1.bf16.msra.mxu0 0
    %693 = vmatprep.subr.bf16.mxu0 0
    %694 = vmatpush1.bf16.msra.mxu0 0
    %695 = vmatprep.subr.bf16.mxu0 0
    %696 = vmatpush1.bf16.msra.mxu0 0
    %697 = vmatprep.subr.bf16.mxu0 0
    %698 = vmatpush1.bf16.msra.mxu0 0
    %699 = vmatprep.subr.bf16.mxu0 0
    %700 = vmatpush1.bf16.msra.mxu0 0
    %701 = vmatprep.subr.bf16.mxu0 0
    %702 = vmatpush1.bf16.msra.mxu0 0
    %703 = vmatprep.mubr.bf16.mxu0 0
    %704 = vmatmul.mubr.bf16.gmra.mrb[0].mxu0 %v505
    %v705 = vpop.f32.mrb[0].mxu0
    %v706 = vadd.f32 0.0, %v705
    %v707 = vpop.f32.mrb[0].mxu0
    %v708 = vadd.f32 0.0, %v707
    %v709 = vpop.f32.mrb[0].mxu0
    %v710 = vpop.f32.mrb[0].mxu0
    %711 = vdwg.mxu0
    %712 = vmatprep.subr.bf16.mxu0 %v610
    %713 = vmatpush1.bf16.msra.mxu0 %v609
    %714 = vmatprep.subr.bf16.mxu0 %v614
    %715 = vmatpush1.bf16.msra.mxu0 %v613
    %716 = vmatprep.subr.bf16.mxu0 %v618
    %717 = vmatpush1.bf16.msra.mxu0 %v617
    %718 = vmatprep.subr.bf16.mxu0 %v622
    %719 = vmatpush1.bf16.msra.mxu0 %v621
    %720 = vmatprep.subr.bf16.mxu0 %v626
    %721 = vmatpush1.bf16.msra.mxu0 %v625
    %722 = vmatprep.subr.bf16.mxu0 %v630
    %723 = vmatpush1.bf16.msra.mxu0 %v629
    %724 = vmatprep.subr.bf16.mxu0 %v634
    %725 = vmatpush1.bf16.msra.mxu0 %v633
    %726 = vmatprep.subr.bf16.mxu0 %v638
    %727 = vmatpush1.bf16.msra.mxu0 %v637
    %728 = vmatprep.subr.bf16.mxu0 0
    %729 = vmatpush1.bf16.msra.mxu0 0
    %730 = vmatprep.subr.bf16.mxu0 0
    %731 = vmatpush1.bf16.msra.mxu0 0
    %732 = vmatprep.subr.bf16.mxu0 0
    %733 = vmatpush1.bf16.msra.mxu0 0
    %734 = vmatprep.subr.bf16.mxu0 0
    %735 = vmatpush1.bf16.msra.mxu0 0
    %736 = vmatprep.subr.bf16.mxu0 0
    %737 = vmatpush1.bf16.msra.mxu0 0
    %738 = vmatprep.subr.bf16.mxu0 0
    %739 = vmatpush1.bf16.msra.mxu0 0
    %740 = vmatprep.subr.bf16.mxu0 0
    %741 = vmatpush1.bf16.msra.mxu0 0
    %742 = vmatprep.subr.bf16.mxu0 0
    %743 = vmatpush1.bf16.msra.mxu0 0
    %744 = vmatprep.mubr.bf16.mxu0 0
    %745 = vmatmul.mubr.bf16.gmra.mrb[0].mxu0 %v505
    %v746 = vpop.f32.mrb[0].mxu0
    %v747 = vadd.f32 0.0, %v746
    %v748 = vpop.f32.mrb[0].mxu0
    %v749 = vadd.f32 0.0, %v748
    %v750 = vpop.f32.mrb[0].mxu0
    %v751 = vpop.f32.mrb[0].mxu0
    %752 = vdwg.mxu0
    %v753 = vadd.f32 %v507, %v706
    %v754 = vadd.f32 %v508, %v708
    %v755 = vadd.f32 %v509, %v747
    %v756 = vadd.f32 %v510, %v749
    %v757 = vxor.u32 %v753, 2147483648
    %v758 = vmul.f32 %v757, 1.442695
    %v759 = vpow.pop %v758
    %v760 = vadd.f32 %v759, 1.0
    %v761 = vrcp.pop %v760
    %v762 = vmul.f32 1.0, %v761
    %v763 = vxor.u32 %v754, 2147483648
    %v764 = vmul.f32 %v763, 1.442695
    %v765 = vpow.pop %v764
    %v766 = vadd.f32 %v765, 1.0
    %v767 = vrcp.pop %v766
    %v768 = vmul.f32 1.0, %v767
    %v769 = vtanh.pop %v755
    %v770 = vxor.u32 %v756, 2147483648
    %v771 = vmul.f32 %v770, 1.442695
    %v772 = vpow.pop %v771
    %v773 = vadd.f32 %v772, 1.0
    %v774 = vrcp.pop %v773
    %v775 = vmul.f32 1.0, %v774
    %v776 = vmul.f32 %v768, %v506
    %v777 = vmul.f32 %v762, %v769
    %v778 = vadd.f32 %v776, %v777
    %v779 = vtanh.pop %v778
    %v780 = vmul.f32 %v775, %v779
    %v781 = vpack.c.bf16 %v780, %v780
    %782 = vst [vmem:[%s6] sm:$0xf] %v781
    %s783 = scalar_lea.vmem [#allocation4], 32
    %v784 = vld [vmem:[%s783] sm:$0xff]
    %v785 = vld [vmem:[%s783 + $0x8] sm:$0xff]
    %v786 = vld [vmem:[%s783 + $0x10] sm:$0xff]
    %v787 = vld [vmem:[%s783 + $0x18] sm:$0xff]
    %788 = vmatprep.subr.bf16.mxu0 %v608
    %789 = vmatpush1.bf16.msra.mxu0 %v607
    %790 = vmatprep.subr.bf16.mxu0 %v612
    %791 = vmatpush1.bf16.msra.mxu0 %v611
    %792 = vmatprep.subr.bf16.mxu0 %v616
    %793 = vmatpush1.bf16.msra.mxu0 %v615
    %794 = vmatprep.subr.bf16.mxu0 %v620
    %795 = vmatpush1.bf16.msra.mxu0 %v619
    %796 = vmatprep.subr.bf16.mxu0 %v624
    %797 = vmatpush1.bf16.msra.mxu0 %v623
    %798 = vmatprep.subr.bf16.mxu0 %v628
    %799 = vmatpush1.bf16.msra.mxu0 %v627
    %800 = vmatprep.subr.bf16.mxu0 %v632
    %801 = vmatpush1.bf16.msra.mxu0 %v631
    %802 = vmatprep.subr.bf16.mxu0 %v636
    %803 = vmatpush1.bf16.msra.mxu0 %v635
    %804 = vmatprep.subr.bf16.mxu0 0
    %805 = vmatpush1.bf16.msra.mxu0 0
    %806 = vmatprep.subr.bf16.mxu0 0
    %807 = vmatpush1.bf16.msra.mxu0 0
    %808 = vmatprep.subr.bf16.mxu0 0
    %809 = vmatpush1.bf16.msra.mxu0 0
    %810 = vmatprep.subr.bf16.mxu0 0
    %811 = vmatpush1.bf16.msra.mxu0 0
    %812 = vmatprep.subr.bf16.mxu0 0
    %813 = vmatpush1.bf16.msra.mxu0 0
    %814 = vmatprep.subr.bf16.mxu0 0
    %815 = vmatpush1.bf16.msra.mxu0 0
    %816 = vmatprep.subr.bf16.mxu0 0
    %817 = vmatpush1.bf16.msra.mxu0 0
    %818 = vmatprep.subr.bf16.mxu0 0
    %819 = vmatpush1.bf16.msra.mxu0 0
    %820 = vmatprep.mubr.bf16.mxu0 0
    %821 = vmatmul.mubr.bf16.gmra.mrb[0].mxu0 %v781
    %v822 = vpop.f32.mrb[0].mxu0
    %v823 = vadd.f32 0.0, %v822
    %v824 = vpop.f32.mrb[0].mxu0
    %v825 = vadd.f32 0.0, %v824
    %v826 = vpop.f32.mrb[0].mxu0
    %v827 = vpop.f32.mrb[0].mxu0
    %828 = vdwg.mxu0
    %829 = vmatprep.subr.bf16.mxu0 %v610
    %830 = vmatpush1.bf16.msra.mxu0 %v609
    %831 = vmatprep.subr.bf16.mxu0 %v614
    %832 = vmatpush1.bf16.msra.mxu0 %v613
    %833 = vmatprep.subr.bf16.mxu0 %v618
    %834 = vmatpush1.bf16.msra.mxu0 %v617
    %835 = vmatprep.subr.bf16.mxu0 %v622
    %836 = vmatpush1.bf16.msra.mxu0 %v621
    %837 = vmatprep.subr.bf16.mxu0 %v626
    %838 = vmatpush1.bf16.msra.mxu0 %v625
    %839 = vmatprep.subr.bf16.mxu0 %v630
    %840 = vmatpush1.bf16.msra.mxu0 %v629
    %841 = vmatprep.subr.bf16.mxu0 %v634
    %842 = vmatpush1.bf16.msra.mxu0 %v633
    %843 = vmatprep.subr.bf16.mxu0 %v638
    %844 = vmatpush1.bf16.msra.mxu0 %v637
    %845 = vmatprep.subr.bf16.mxu0 0
    %846 = vmatpush1.bf16.msra.mxu0 0
    %847 = vmatprep.subr.bf16.mxu0 0
    %848 = vmatpush1.bf16.msra.mxu0 0
    %849 = vmatprep.subr.bf16.mxu0 0
    %850 = vmatpush1.bf16.msra.mxu0 0
    %851 = vmatprep.subr.bf16.mxu0 0
    %852 = vmatpush1.bf16.msra.mxu0 0
    %853 = vmatprep.subr.bf16.mxu0 0
    %854 = vmatpush1.bf16.msra.mxu0 0
    %855 = vmatprep.subr.bf16.mxu0 0
    %856 = vmatpush1.bf16.msra.mxu0 0
    %857 = vmatprep.subr.bf16.mxu0 0
    %858 = vmatpush1.bf16.msra.mxu0 0
    %859 = vmatprep.subr.bf16.mxu0 0
    %860 = vmatpush1.bf16.msra.mxu0 0
    %861 = vmatprep.mubr.bf16.mxu0 0
    %862 = vmatmul.mubr.bf16.gmra.mrb[0].mxu0 %v781
    %v863 = vpop.f32.mrb[0].mxu0
    %v864 = vadd.f32 0.0, %v863
    %v865 = vpop.f32.mrb[0].mxu0
    %v866 = vadd.f32 0.0, %v865
    %v867 = vpop.f32.mrb[0].mxu0
    %v868 = vpop.f32.mrb[0].mxu0
    %869 = vdwg.mxu0
    %v870 = vadd.f32 %v784, %v823
    %v871 = vadd.f32 %v785, %v825
    %v872 = vadd.f32 %v786, %v864
    %v873 = vadd.f32 %v787, %v866
    %v874 = vxor.u32 %v870, 2147483648
    %v875 = vmul.f32 %v874, 1.442695
    %v876 = vpow.pop %v875
    %v877 = vadd.f32 %v876, 1.0
    %v878 = vrcp.pop %v877
    %v879 = vmul.f32 1.0, %v878
    %v880 = vxor.u32 %v871, 2147483648
    %v881 = vmul.f32 %v880, 1.442695
    %v882 = vpow.pop %v881
    %v883 = vadd.f32 %v882, 1.0
    %v884 = vrcp.pop %v883
    %v885 = vmul.f32 1.0, %v884
    %v886 = vtanh.pop %v872
    %v887 = vxor.u32 %v873, 2147483648
    %v888 = vmul.f32 %v887, 1.442695
    %v889 = vpow.pop %v888
    %v890 = vadd.f32 %v889, 1.0
    %v891 = vrcp.pop %v890
    %v892 = vmul.f32 1.0, %v891
    %v893 = vmul.f32 %v885, %v778
    %v894 = vmul.f32 %v879, %v886
    %v895 = vadd.f32 %v893, %v894
    %v896 = vtanh.pop %v895
    %v897 = vmul.f32 %v892, %v896
    %v898 = vpack.c.bf16 %v897, %v897
    %s899 = scalar_lea.vmem %s6, 4
    %900 = vst [vmem:[%s899] sm:$0xf] %v898
    %s901 = scalar_lea.vmem [#allocation4], 64
    %v902 = vld [vmem:[%s901] sm:$0xff]
    %v903 = vld [vmem:[%s901 + $0x8] sm:$0xff]
    %v904 = vld [vmem:[%s901 + $0x10] sm:$0xff]
    %v905 = vld [vmem:[%s901 + $0x18] sm:$0xff]
    %906 = vmatprep.subr.bf16.mxu0 %v608
    %907 = vmatpush1.bf16.msra.mxu0 %v607
    %908 = vmatprep.subr.bf16.mxu0 %v612
    %909 = vmatpush1.bf16.msra.mxu0 %v611
    %910 = vmatprep.subr.bf16.mxu0 %v616
    %911 = vmatpush1.bf16.msra.mxu0 %v615
    %912 = vmatprep.subr.bf16.mxu0 %v620
    %913 = vmatpush1.bf16.msra.mxu0 %v619
    %914 = vmatprep.subr.bf16.mxu0 %v624
    %915 = vmatpush1.bf16.msra.mxu0 %v623
    %916 = vmatprep.subr.bf16.mxu0 %v628
    %917 = vmatpush1.bf16.msra.mxu0 %v627
    %918 = vmatprep.subr.bf16.mxu0 %v632
    %919 = vmatpush1.bf16.msra.mxu0 %v631
    %920 = vmatprep.subr.bf16.mxu0 %v636
    %921 = vmatpush1.bf16.msra.mxu0 %v635
    %922 = vmatprep.subr.bf16.mxu0 0
    %923 = vmatpush1.bf16.msra.mxu0 0
    %924 = vmatprep.subr.bf16.mxu0 0
    %925 = vmatpush1.bf16.msra.mxu0 0
    %926 = vmatprep.subr.bf16.mxu0 0
    %927 = vmatpush1.bf16.msra.mxu0 0
    %928 = vmatprep.subr.bf16.mxu0 0
    %929 = vmatpush1.bf16.msra.mxu0 0
    %930 = vmatprep.subr.bf16.mxu0 0
    %931 = vmatpush1.bf16.msra.mxu0 0
    %932 = vmatprep.subr.bf16.mxu0 0
    %933 = vmatpush1.bf16.msra.mxu0 0
    %934 = vmatprep.subr.bf16.mxu0 0
    %935 = vmatpush1.bf16.msra.mxu0 0
    %936 = vmatprep.subr.bf16.mxu0 0
    %937 = vmatpush1.bf16.msra.mxu0 0
    %938 = vmatprep.mubr.bf16.mxu0 0
    %939 = vmatmul.mubr.bf16.gmra.mrb[0].mxu0 %v898
    %v940 = vpop.f32.mrb[0].mxu0
    %v941 = vadd.f32 0.0, %v940
    %v942 = vpop.f32.mrb[0].mxu0
    %v943 = vadd.f32 0.0, %v942
    %v944 = vpop.f32.mrb[0].mxu0
    %v945 = vpop.f32.mrb[0].mxu0
    %946 = vdwg.mxu0
    %947 = vmatprep.subr.bf16.mxu0 %v610
    %948 = vmatpush1.bf16.msra.mxu0 %v609
    %949 = vmatprep.subr.bf16.mxu0 %v614
    %950 = vmatpush1.bf16.msra.mxu0 %v613
    %951 = vmatprep.subr.bf16.mxu0 %v618
    %952 = vmatpush1.bf16.msra.mxu0 %v617
    %953 = vmatprep.subr.bf16.mxu0 %v622
    %954 = vmatpush1.bf16.msra.mxu0 %v621
    %955 = vmatprep.subr.bf16.mxu0 %v626
    %956 = vmatpush1.bf16.msra.mxu0 %v625
    %957 = vmatprep.subr.bf16.mxu0 %v630
    %958 = vmatpush1.bf16.msra.mxu0 %v629
    %959 = vmatprep.subr.bf16.mxu0 %v634
    %960 = vmatpush1.bf16.msra.mxu0 %v633
    %961 = vmatprep.subr.bf16.mxu0 %v638
    %962 = vmatpush1.bf16.msra.mxu0 %v637
    %963 = vmatprep.subr.bf16.mxu0 0
    %964 = vmatpush1.bf16.msra.mxu0 0
    %965 = vmatprep.subr.bf16.mxu0 0
    %966 = vmatpush1.bf16.msra.mxu0 0
    %967 = vmatprep.subr.bf16.mxu0 0
    %968 = vmatpush1.bf16.msra.mxu0 0
    %969 = vmatprep.subr.bf16.mxu0 0
    %970 = vmatpush1.bf16.msra.mxu0 0
    %971 = vmatprep.subr.bf16.mxu0 0
    %972 = vmatpush1.bf16.msra.mxu0 0
    %973 = vmatprep.subr.bf16.mxu0 0
    %974 = vmatpush1.bf16.msra.mxu0 0
    %975 = vmatprep.subr.bf16.mxu0 0
    %976 = vmatpush1.bf16.msra.mxu0 0
    %977 = vmatprep.subr.bf16.mxu0 0
    %978 = vmatpush1.bf16.msra.mxu0 0
    %979 = vmatprep.mubr.bf16.mxu0 0
    %980 = vmatmul.mubr.bf16.gmra.mrb[0].mxu0 %v898
    %v981 = vpop.f32.mrb[0].mxu0
    %v982 = vadd.f32 0.0, %v981
    %v983 = vpop.f32.mrb[0].mxu0
    %v984 = vadd.f32 0.0, %v983
    %v985 = vpop.f32.mrb[0].mxu0
    %v986 = vpop.f32.mrb[0].mxu0
    %987 = vdwg.mxu0
    %v988 = vadd.f32 %v902, %v941
    %v989 = vadd.f32 %v903, %v943
    %v990 = vadd.f32 %v904, %v982
    %v991 = vadd.f32 %v905, %v984
    %v992 = vxor.u32 %v988, 2147483648
    %v993 = vmul.f32 %v992, 1.442695
    %v994 = vpow.pop %v993
    %v995 = vadd.f32 %v994, 1.0
    %v996 = vrcp.pop %v995
    %v997 = vmul.f32 1.0, %v996
    %v998 = vxor.u32 %v989, 2147483648
    %v999 = vmul.f32 %v998, 1.442695
    %v1000 = vpow.pop %v999
    %v1001 = vadd.f32 %v1000, 1.0
    %v1002 = vrcp.pop %v1001
    %v1003 = vmul.f32 1.0, %v1002
    %v1004 = vtanh.pop %v990
    %v1005 = vxor.u32 %v991, 2147483648
    %v1006 = vmul.f32 %v1005, 1.442695
    %v1007 = vpow.pop %v1006
    %v1008 = vadd.f32 %v1007, 1.0
    %v1009 = vrcp.pop %v1008
    %v1010 = vmul.f32 1.0, %v1009
    %v1011 = vmul.f32 %v1003, %v895
    %v1012 = vmul.f32 %v997, %v1004
    %v1013 = vadd.f32 %v1011, %v1012
    %v1014 = vtanh.pop %v1013
    %v1015 = vmul.f32 %v1010, %v1014
    %v1016 = vpack.c.bf16 %v1015, %v1015
    %s1017 = scalar_lea.vmem %s6, 8
    %1018 = vst [vmem:[%s1017] sm:$0xf] %v1016
    %s1019 = scalar_lea.vmem [#allocation4], 96
    %v1020 = vld [vmem:[%s1019] sm:$0xff]
    %v1021 = vld [vmem:[%s1019 + $0x8] sm:$0xff]
    %v1022 = vld [vmem:[%s1019 + $0x10] sm:$0xff]
    %v1023 = vld [vmem:[%s1019 + $0x18] sm:$0xff]
    %1024 = vmatprep.subr.bf16.mxu0 %v608
    %1025 = vmatpush1.bf16.msra.mxu0 %v607
    %1026 = vmatprep.subr.bf16.mxu0 %v612
    %1027 = vmatpush1.bf16.msra.mxu0 %v611
    %1028 = vmatprep.subr.bf16.mxu0 %v616
    %1029 = vmatpush1.bf16.msra.mxu0 %v615
    %1030 = vmatprep.subr.bf16.mxu0 %v620
    %1031 = vmatpush1.bf16.msra.mxu0 %v619
    %1032 = vmatprep.subr.bf16.mxu0 %v624
    %1033 = vmatpush1.bf16.msra.mxu0 %v623
    %1034 = vmatprep.subr.bf16.mxu0 %v628
    %1035 = vmatpush1.bf16.msra.mxu0 %v627
    %1036 = vmatprep.subr.bf16.mxu0 %v632
    %1037 = vmatpush1.bf16.msra.mxu0 %v631
    %1038 = vmatprep.subr.bf16.mxu0 %v636
    %1039 = vmatpush1.bf16.msra.mxu0 %v635
    %1040 = vmatprep.subr.bf16.mxu0 0
    %1041 = vmatpush1.bf16.msra.mxu0 0
    %1042 = vmatprep.subr.bf16.mxu0 0
    %1043 = vmatpush1.bf16.msra.mxu0 0
    %1044 = vmatprep.subr.bf16.mxu0 0
    %1045 = vmatpush1.bf16.msra.mxu0 0
    %1046 = vmatprep.subr.bf16.mxu0 0
    %1047 = vmatpush1.bf16.msra.mxu0 0
    %1048 = vmatprep.subr.bf16.mxu0 0
    %1049 = vmatpush1.bf16.msra.mxu0 0
    %1050 = vmatprep.subr.bf16.mxu0 0
    %1051 = vmatpush1.bf16.msra.mxu0 0
    %1052 = vmatprep.subr.bf16.mxu0 0
    %1053 = vmatpush1.bf16.msra.mxu0 0
    %1054 = vmatprep.subr.bf16.mxu0 0
    %1055 = vmatpush1.bf16.msra.mxu0 0
    %1056 = vmatprep.mubr.bf16.mxu0 0
    %1057 = vmatmul.mubr.bf16.gmra.mrb[0].mxu0 %v1016
    %v1058 = vpop.f32.mrb[0].mxu0
    %v1059 = vadd.f32 0.0, %v1058
    %v1060 = vpop.f32.mrb[0].mxu0
    %v1061 = vadd.f32 0.0, %v1060
    %v1062 = vpop.f32.mrb[0].mxu0
    %v1063 = vpop.f32.mrb[0].mxu0
    %1064 = vdwg.mxu0
    %1065 = vmatprep.subr.bf16.mxu0 %v610
    %1066 = vmatpush1.bf16.msra.mxu0 %v609
    %1067 = vmatprep.subr.bf16.mxu0 %v614
    %1068 = vmatpush1.bf16.msra.mxu0 %v613
    %1069 = vmatprep.subr.bf16.mxu0 %v618
    %1070 = vmatpush1.bf16.msra.mxu0 %v617
    %1071 = vmatprep.subr.bf16.mxu0 %v622
    %1072 = vmatpush1.bf16.msra.mxu0 %v621
    %1073 = vmatprep.subr.bf16.mxu0 %v626
    %1074 = vmatpush1.bf16.msra.mxu0 %v625
    %1075 = vmatprep.subr.bf16.mxu0 %v630
    %1076 = vmatpush1.bf16.msra.mxu0 %v629
    %1077 = vmatprep.subr.bf16.mxu0 %v634
    %1078 = vmatpush1.bf16.msra.mxu0 %v633
    %1079 = vmatprep.subr.bf16.mxu0 %v638
    %1080 = vmatpush1.bf16.msra.mxu0 %v637
    %1081 = vmatprep.subr.bf16.mxu0 0
    %1082 = vmatpush1.bf16.msra.mxu0 0
    %1083 = vmatprep.subr.bf16.mxu0 0
    %1084 = vmatpush1.bf16.msra.mxu0 0
    %1085 = vmatprep.subr.bf16.mxu0 0
    %1086 = vmatpush1.bf16.msra.mxu0 0
    %1087 = vmatprep.subr.bf16.mxu0 0
    %1088 = vmatpush1.bf16.msra.mxu0 0
    %1089 = vmatprep.subr.bf16.mxu0 0
    %1090 = vmatpush1.bf16.msra.mxu0 0
    %1091 = vmatprep.subr.bf16.mxu0 0
    %1092 = vmatpush1.bf16.msra.mxu0 0
    %1093 = vmatprep.subr.bf16.mxu0 0
    %1094 = vmatpush1.bf16.msra.mxu0 0
    %1095 = vmatprep.subr.bf16.mxu0 0
    %1096 = vmatpush1.bf16.msra.mxu0 0
    %1097 = vmatprep.mubr.bf16.mxu0 0
    %1098 = vmatmul.mubr.bf16.gmra.mrb[0].mxu0 %v1016
    %v1099 = vpop.f32.mrb[0].mxu0
    %v1100 = vadd.f32 0.0, %v1099
    %v1101 = vpop.f32.mrb[0].mxu0
    %v1102 = vadd.f32 0.0, %v1101
    %v1103 = vpop.f32.mrb[0].mxu0
    %v1104 = vpop.f32.mrb[0].mxu0
    %1105 = vdwg.mxu0
    %v1106 = vadd.f32 %v1020, %v1059
    %v1107 = vadd.f32 %v1021, %v1061
    %v1108 = vadd.f32 %v1022, %v1100
    %v1109 = vadd.f32 %v1023, %v1102
    %v1110 = vxor.u32 %v1106, 2147483648
    %v1111 = vmul.f32 %v1110, 1.442695
    %v1112 = vpow.pop %v1111
    %v1113 = vadd.f32 %v1112, 1.0
    %v1114 = vrcp.pop %v1113
    %v1115 = vmul.f32 1.0, %v1114
    %v1116 = vxor.u32 %v1107, 2147483648
    %v1117 = vmul.f32 %v1116, 1.442695
    %v1118 = vpow.pop %v1117
    %v1119 = vadd.f32 %v1118, 1.0
    %v1120 = vrcp.pop %v1119
    %v1121 = vmul.f32 1.0, %v1120
    %v1122 = vtanh.pop %v1108
    %v1123 = vxor.u32 %v1109, 2147483648
    %v1124 = vmul.f32 %v1123, 1.442695
    %v1125 = vpow.pop %v1124
    %v1126 = vadd.f32 %v1125, 1.0
    %v1127 = vrcp.pop %v1126
    %v1128 = vmul.f32 1.0, %v1127
    %v1129 = vmul.f32 %v1121, %v1013
    %v1130 = vmul.f32 %v1115, %v1122
    %v1131 = vadd.f32 %v1129, %v1130
    %v1132 = vtanh.pop %v1131
    %v1133 = vmul.f32 %v1128, %v1132
    %v1134 = vpack.c.bf16 %v1133, %v1133
    %s1135 = scalar_lea.vmem %s6, 12
    %1136 = vst [vmem:[%s1135] sm:$0xf] %v1134
    %s1137 = scalar_lea.vmem [#allocation4], 128
    %v1138 = vld [vmem:[%s1137] sm:$0xff]
    %v1139 = vld [vmem:[%s1137 + $0x8] sm:$0xff]
    %v1140 = vld [vmem:[%s1137 + $0x10] sm:$0xff]
    %v1141 = vld [vmem:[%s1137 + $0x18] sm:$0xff]
    %1142 = vmatprep.subr.bf16.mxu0 %v608
    %1143 = vmatpush1.bf16.msra.mxu0 %v607
    %1144 = vmatprep.subr.bf16.mxu0 %v612
    %1145 = vmatpush1.bf16.msra.mxu0 %v611
    %1146 = vmatprep.subr.bf16.mxu0 %v616
    %1147 = vmatpush1.bf16.msra.mxu0 %v615
    %1148 = vmatprep.subr.bf16.mxu0 %v620
    %1149 = vmatpush1.bf16.msra.mxu0 %v619
    %1150 = vmatprep.subr.bf16.mxu0 %v624
    %1151 = vmatpush1.bf16.msra.mxu0 %v623
    %1152 = vmatprep.subr.bf16.mxu0 %v628
    %1153 = vmatpush1.bf16.msra.mxu0 %v627
    %1154 = vmatprep.subr.bf16.mxu0 %v632
    %1155 = vmatpush1.bf16.msra.mxu0 %v631
    %1156 = vmatprep.subr.bf16.mxu0 %v636
    %1157 = vmatpush1.bf16.msra.mxu0 %v635
    %1158 = vmatprep.subr.bf16.mxu0 0
    %1159 = vmatpush1.bf16.msra.mxu0 0
    %1160 = vmatprep.subr.bf16.mxu0 0
    %1161 = vmatpush1.bf16.msra.mxu0 0
    %1162 = vmatprep.subr.bf16.mxu0 0
    %1163 = vmatpush1.bf16.msra.mxu0 0
    %1164 = vmatprep.subr.bf16.mxu0 0
    %1165 = vmatpush1.bf16.msra.mxu0 0
    %1166 = vmatprep.subr.bf16.mxu0 0
    %1167 = vmatpush1.bf16.msra.mxu0 0
    %1168 = vmatprep.subr.bf16.mxu0 0
    %1169 = vmatpush1.bf16.msra.mxu0 0
    %1170 = vmatprep.subr.bf16.mxu0 0
    %1171 = vmatpush1.bf16.msra.mxu0 0
    %1172 = vmatprep.subr.bf16.mxu0 0
    %1173 = vmatpush1.bf16.msra.mxu0 0
    %1174 = vmatprep.mubr.bf16.mxu0 0
    %1175 = vmatmul.mubr.bf16.gmra.mrb[0].mxu0 %v1134
    %v1176 = vpop.f32.mrb[0].mxu0
    %v1177 = vadd.f32 0.0, %v1176
    %v1178 = vpop.f32.mrb[0].mxu0
    %v1179 = vadd.f32 0.0, %v1178
    %v1180 = vpop.f32.mrb[0].mxu0
    %v1181 = vpop.f32.mrb[0].mxu0
    %1182 = vdwg.mxu0
    %1183 = vmatprep.subr.bf16.mxu0 %v610
    %1184 = vmatpush1.bf16.msra.mxu0 %v609
    %1185 = vmatprep.subr.bf16.mxu0 %v614
    %1186 = vmatpush1.bf16.msra.mxu0 %v613
    %1187 = vmatprep.subr.bf16.mxu0 %v618
    %1188 = vmatpush1.bf16.msra.mxu0 %v617
    %1189 = vmatprep.subr.bf16.mxu0 %v622
    %1190 = vmatpush1.bf16.msra.mxu0 %v621
    %1191 = vmatprep.subr.bf16.mxu0 %v626
    %1192 = vmatpush1.bf16.msra.mxu0 %v625
    %1193 = vmatprep.subr.bf16.mxu0 %v630
    %1194 = vmatpush1.bf16.msra.mxu0 %v629
    %1195 = vmatprep.subr.bf16.mxu0 %v634
    %1196 = vmatpush1.bf16.msra.mxu0 %v633
    %1197 = vmatprep.subr.bf16.mxu0 %v638
    %1198 = vmatpush1.bf16.msra.mxu0 %v637
    %1199 = vmatprep.subr.bf16.mxu0 0
    %1200 = vmatpush1.bf16.msra.mxu0 0
    %1201 = vmatprep.subr.bf16.mxu0 0
    %1202 = vmatpush1.bf16.msra.mxu0 0
    %1203 = vmatprep.subr.bf16.mxu0 0
    %1204 = vmatpush1.bf16.msra.mxu0 0
    %1205 = vmatprep.subr.bf16.mxu0 0
    %1206 = vmatpush1.bf16.msra.mxu0 0
    %1207 = vmatprep.subr.bf16.mxu0 0
    %1208 = vmatpush1.bf16.msra.mxu0 0
    %1209 = vmatprep.subr.bf16.mxu0 0
    %1210 = vmatpush1.bf16.msra.mxu0 0
    %1211 = vmatprep.subr.bf16.mxu0 0
    %1212 = vmatpush1.bf16.msra.mxu0 0
    %1213 = vmatprep.subr.bf16.mxu0 0
    %1214 = vmatpush1.bf16.msra.mxu0 0
    %1215 = vmatprep.mubr.bf16.mxu0 0
    %1216 = vmatmul.mubr.bf16.gmra.mrb[0].mxu0 %v1134
    %v1217 = vpop.f32.mrb[0].mxu0
    %v1218 = vadd.f32 0.0, %v1217
    %v1219 = vpop.f32.mrb[0].mxu0
    %v1220 = vadd.f32 0.0, %v1219
    %v1221 = vpop.f32.mrb[0].mxu0
    %v1222 = vpop.f32.mrb[0].mxu0
    %1223 = vdwg.mxu0
    %v1224 = vadd.f32 %v1138, %v1177
    %v1225 = vadd.f32 %v1139, %v1179
    %v1226 = vadd.f32 %v1140, %v1218
    %v1227 = vadd.f32 %v1141, %v1220
    %v1228 = vxor.u32 %v1224, 2147483648
    %v1229 = vmul.f32 %v1228, 1.442695
    %v1230 = vpow.pop %v1229
    %v1231 = vadd.f32 %v1230, 1.0
    %v1232 = vrcp.pop %v1231
    %v1233 = vmul.f32 1.0, %v1232
    %v1234 = vxor.u32 %v1225, 2147483648
    %v1235 = vmul.f32 %v1234, 1.442695
    %v1236 = vpow.pop %v1235
    %v1237 = vadd.f32 %v1236, 1.0
    %v1238 = vrcp.pop %v1237
    %v1239 = vmul.f32 1.0, %v1238
    %v1240 = vtanh.pop %v1226
    %v1241 = vxor.u32 %v1227, 2147483648
    %v1242 = vmul.f32 %v1241, 1.442695
    %v1243 = vpow.pop %v1242
    %v1244 = vadd.f32 %v1243, 1.0
    %v1245 = vrcp.pop %v1244
    %v1246 = vmul.f32 1.0, %v1245
    %v1247 = vmul.f32 %v1239, %v1131
    %v1248 = vmul.f32 %v1233, %v1240
    %v1249 = vadd.f32 %v1247, %v1248
    %v1250 = vtanh.pop %v1249
    %v1251 = vmul.f32 %v1246, %v1250
    %v1252 = vpack.c.bf16 %v1251, %v1251
    %s1253 = scalar_lea.vmem %s6, 16
    %1254 = vst [vmem:[%s1253] sm:$0xf] %v1252
    %s1255 = scalar_lea.vmem [#allocation4], 160
    %v1256 = vld [vmem:[%s1255] sm:$0xff]
    %v1257 = vld [vmem:[%s1255 + $0x8] sm:$0xff]
    %v1258 = vld [vmem:[%s1255 + $0x10] sm:$0xff]
    %v1259 = vld [vmem:[%s1255 + $0x18] sm:$0xff]
    %1260 = vmatprep.subr.bf16.mxu0 %v608
    %1261 = vmatpush1.bf16.msra.mxu0 %v607
    %1262 = vmatprep.subr.bf16.mxu0 %v612
    %1263 = vmatpush1.bf16.msra.mxu0 %v611
    %1264 = vmatprep.subr.bf16.mxu0 %v616
    %1265 = vmatpush1.bf16.msra.mxu0 %v615
    %1266 = vmatprep.subr.bf16.mxu0 %v620
    %1267 = vmatpush1.bf16.msra.mxu0 %v619
    %1268 = vmatprep.subr.bf16.mxu0 %v624
    %1269 = vmatpush1.bf16.msra.mxu0 %v623
    %1270 = vmatprep.subr.bf16.mxu0 %v628
    %1271 = vmatpush1.bf16.msra.mxu0 %v627
    %1272 = vmatprep.subr.bf16.mxu0 %v632
    %1273 = vmatpush1.bf16.msra.mxu0 %v631
    %1274 = vmatprep.subr.bf16.mxu0 %v636
    %1275 = vmatpush1.bf16.msra.mxu0 %v635
    %1276 = vmatprep.subr.bf16.mxu0 0
    %1277 = vmatpush1.bf16.msra.mxu0 0
    %1278 = vmatprep.subr.bf16.mxu0 0
    %1279 = vmatpush1.bf16.msra.mxu0 0
    %1280 = vmatprep.subr.bf16.mxu0 0
    %1281 = vmatpush1.bf16.msra.mxu0 0
    %1282 = vmatprep.subr.bf16.mxu0 0
    %1283 = vmatpush1.bf16.msra.mxu0 0
    %1284 = vmatprep.subr.bf16.mxu0 0
    %1285 = vmatpush1.bf16.msra.mxu0 0
    %1286 = vmatprep.subr.bf16.mxu0 0
    %1287 = vmatpush1.bf16.msra.mxu0 0
    %1288 = vmatprep.subr.bf16.mxu0 0
    %1289 = vmatpush1.bf16.msra.mxu0 0
    %1290 = vmatprep.subr.bf16.mxu0 0
    %1291 = vmatpush1.bf16.msra.mxu0 0
    %1292 = vmatprep.mubr.bf16.mxu0 0
    %1293 = vmatmul.mubr.bf16.gmra.mrb[0].mxu0 %v1252
    %v1294 = vpop.f32.mrb[0].mxu0
    %v1295 = vadd.f32 0.0, %v1294
    %v1296 = vpop.f32.mrb[0].mxu0
    %v1297 = vadd.f32 0.0, %v1296
    %v1298 = vpop.f32.mrb[0].mxu0
    %v1299 = vpop.f32.mrb[0].mxu0
    %1300 = vdwg.mxu0
    %1301 = vmatprep.subr.bf16.mxu0 %v610
    %1302 = vmatpush1.bf16.msra.mxu0 %v609
    %1303 = vmatprep.subr.bf16.mxu0 %v614
    %1304 = vmatpush1.bf16.msra.mxu0 %v613
    %1305 = vmatprep.subr.bf16.mxu0 %v618
    %1306 = vmatpush1.bf16.msra.mxu0 %v617
    %1307 = vmatprep.subr.bf16.mxu0 %v622
    %1308 = vmatpush1.bf16.msra.mxu0 %v621
    %1309 = vmatprep.subr.bf16.mxu0 %v626
    %1310 = vmatpush1.bf16.msra.mxu0 %v625
    %1311 = vmatprep.subr.bf16.mxu0 %v630
    %1312 = vmatpush1.bf16.msra.mxu0 %v629
    %1313 = vmatprep.subr.bf16.mxu0 %v634
    %1314 = vmatpush1.bf16.msra.mxu0 %v633
    %1315 = vmatprep.subr.bf16.mxu0 %v638
    %1316 = vmatpush1.bf16.msra.mxu0 %v637
    %1317 = vmatprep.subr.bf16.mxu0 0
    %1318 = vmatpush1.bf16.msra.mxu0 0
    %1319 = vmatprep.subr.bf16.mxu0 0
    %1320 = vmatpush1.bf16.msra.mxu0 0
    %1321 = vmatprep.subr.bf16.mxu0 0
    %1322 = vmatpush1.bf16.msra.mxu0 0
    %1323 = vmatprep.subr.bf16.mxu0 0
    %1324 = vmatpush1.bf16.msra.mxu0 0
    %1325 = vmatprep.subr.bf16.mxu0 0
    %1326 = vmatpush1.bf16.msra.mxu0 0
    %1327 = vmatprep.subr.bf16.mxu0 0
    %1328 = vmatpush1.bf16.msra.mxu0 0
    %1329 = vmatprep.subr.bf16.mxu0 0
    %1330 = vmatpush1.bf16.msra.mxu0 0
    %1331 = vmatprep.subr.bf16.mxu0 0
    %1332 = vmatpush1.bf16.msra.mxu0 0
    %1333 = vmatprep.mubr.bf16.mxu0 0
    %1334 = vmatmul.mubr.bf16.gmra.mrb[0].mxu0 %v1252
    %v1335 = vpop.f32.mrb[0].mxu0
    %v1336 = vadd.f32 0.0, %v1335
    %v1337 = vpop.f32.mrb[0].mxu0
    %v1338 = vadd.f32 0.0, %v1337
    %v1339 = vpop.f32.mrb[0].mxu0
    %v1340 = vpop.f32.mrb[0].mxu0
    %1341 = vdwg.mxu0
    %v1342 = vadd.f32 %v1256, %v1295
    %v1343 = vadd.f32 %v1257, %v1297
    %v1344 = vadd.f32 %v1258, %v1336
    %v1345 = vadd.f32 %v1259, %v1338
    %v1346 = vxor.u32 %v1342, 2147483648
    %v1347 = vmul.f32 %v1346, 1.442695
    %v1348 = vpow.pop %v1347
    %v1349 = vadd.f32 %v1348, 1.0
    %v1350 = vrcp.pop %v1349
    %v1351 = vmul.f32 1.0, %v1350
    %v1352 = vxor.u32 %v1343, 2147483648
    %v1353 = vmul.f32 %v1352, 1.442695
    %v1354 = vpow.pop %v1353
    %v1355 = vadd.f32 %v1354, 1.0
    %v1356 = vrcp.pop %v1355
    %v1357 = vmul.f32 1.0, %v1356
    %v1358 = vtanh.pop %v1344
    %v1359 = vxor.u32 %v1345, 2147483648
    %v1360 = vmul.f32 %v1359, 1.442695
    %v1361 = vpow.pop %v1360
    %v1362 = vadd.f32 %v1361, 1.0
    %v1363 = vrcp.pop %v1362
    %v1364 = vmul.f32 1.0, %v1363
    %v1365 = vmul.f32 %v1357, %v1249
    %v1366 = vmul.f32 %v1351, %v1358
    %v1367 = vadd.f32 %v1365, %v1366
    %v1368 = vtanh.pop %v1367
    %v1369 = vmul.f32 %v1364, %v1368
    %v1370 = vpack.c.bf16 %v1369, %v1369
    %s1371 = scalar_lea.vmem %s6, 20
    %1372 = vst [vmem:[%s1371] sm:$0xf] %v1370
    %s1373 = scalar_lea.vmem [#allocation4], 192
    %v1374 = vld [vmem:[%s1373] sm:$0xff]
    %v1375 = vld [vmem:[%s1373 + $0x8] sm:$0xff]
    %v1376 = vld [vmem:[%s1373 + $0x10] sm:$0xff]
    %v1377 = vld [vmem:[%s1373 + $0x18] sm:$0xff]
    %1378 = vmatprep.subr.bf16.mxu0 %v608
    %1379 = vmatpush1.bf16.msra.mxu0 %v607
    %1380 = vmatprep.subr.bf16.mxu0 %v612
    %1381 = vmatpush1.bf16.msra.mxu0 %v611
    %1382 = vmatprep.subr.bf16.mxu0 %v616
    %1383 = vmatpush1.bf16.msra.mxu0 %v615
    %1384 = vmatprep.subr.bf16.mxu0 %v620
    %1385 = vmatpush1.bf16.msra.mxu0 %v619
    %1386 = vmatprep.subr.bf16.mxu0 %v624
    %1387 = vmatpush1.bf16.msra.mxu0 %v623
    %1388 = vmatprep.subr.bf16.mxu0 %v628
    %1389 = vmatpush1.bf16.msra.mxu0 %v627
    %1390 = vmatprep.subr.bf16.mxu0 %v632
    %1391 = vmatpush1.bf16.msra.mxu0 %v631
    %1392 = vmatprep.subr.bf16.mxu0 %v636
    %1393 = vmatpush1.bf16.msra.mxu0 %v635
    %1394 = vmatprep.subr.bf16.mxu0 0
    %1395 = vmatpush1.bf16.msra.mxu0 0
    %1396 = vmatprep.subr.bf16.mxu0 0
    %1397 = vmatpush1.bf16.msra.mxu0 0
    %1398 = vmatprep.subr.bf16.mxu0 0
    %1399 = vmatpush1.bf16.msra.mxu0 0
    %1400 = vmatprep.subr.bf16.mxu0 0
    %1401 = vmatpush1.bf16.msra.mxu0 0
    %1402 = vmatprep.subr.bf16.mxu0 0
    %1403 = vmatpush1.bf16.msra.mxu0 0
    %1404 = vmatprep.subr.bf16.mxu0 0
    %1405 = vmatpush1.bf16.msra.mxu0 0
    %1406 = vmatprep.subr.bf16.mxu0 0
    %1407 = vmatpush1.bf16.msra.mxu0 0
    %1408 = vmatprep.subr.bf16.mxu0 0
    %1409 = vmatpush1.bf16.msra.mxu0 0
    %1410 = vmatprep.mubr.bf16.mxu0 0
    %1411 = vmatmul.mubr.bf16.gmra.mrb[0].mxu0 %v1370
    %v1412 = vpop.f32.mrb[0].mxu0
    %v1413 = vadd.f32 0.0, %v1412
    %v1414 = vpop.f32.mrb[0].mxu0
    %v1415 = vadd.f32 0.0, %v1414
    %v1416 = vpop.f32.mrb[0].mxu0
    %v1417 = vpop.f32.mrb[0].mxu0
    %1418 = vdwg.mxu0
    %1419 = vmatprep.subr.bf16.mxu0 %v610
    %1420 = vmatpush1.bf16.msra.mxu0 %v609
    %1421 = vmatprep.subr.bf16.mxu0 %v614
    %1422 = vmatpush1.bf16.msra.mxu0 %v613
    %1423 = vmatprep.subr.bf16.mxu0 %v618
    %1424 = vmatpush1.bf16.msra.mxu0 %v617
    %1425 = vmatprep.subr.bf16.mxu0 %v622
    %1426 = vmatpush1.bf16.msra.mxu0 %v621
    %1427 = vmatprep.subr.bf16.mxu0 %v626
    %1428 = vmatpush1.bf16.msra.mxu0 %v625
    %1429 = vmatprep.subr.bf16.mxu0 %v630
    %1430 = vmatpush1.bf16.msra.mxu0 %v629
    %1431 = vmatprep.subr.bf16.mxu0 %v634
    %1432 = vmatpush1.bf16.msra.mxu0 %v633
    %1433 = vmatprep.subr.bf16.mxu0 %v638
    %1434 = vmatpush1.bf16.msra.mxu0 %v637
    %1435 = vmatprep.subr.bf16.mxu0 0
    %1436 = vmatpush1.bf16.msra.mxu0 0
    %1437 = vmatprep.subr.bf16.mxu0 0
    %1438 = vmatpush1.bf16.msra.mxu0 0
    %1439 = vmatprep.subr.bf16.mxu0 0
    %1440 = vmatpush1.bf16.msra.mxu0 0
    %1441 = vmatprep.subr.bf16.mxu0 0
    %1442 = vmatpush1.bf16.msra.mxu0 0
    %1443 = vmatprep.subr.bf16.mxu0 0
    %1444 = vmatpush1.bf16.msra.mxu0 0
    %1445 = vmatprep.subr.bf16.mxu0 0
    %1446 = vmatpush1.bf16.msra.mxu0 0
    %1447 = vmatprep.subr.bf16.mxu0 0
    %1448 = vmatpush1.bf16.msra.mxu0 0
    %1449 = vmatprep.subr.bf16.mxu0 0
    %1450 = vmatpush1.bf16.msra.mxu0 0
    %1451 = vmatprep.mubr.bf16.mxu0 0
    %1452 = vmatmul.mubr.bf16.gmra.mrb[0].mxu0 %v1370
    %v1453 = vpop.f32.mrb[0].mxu0
    %v1454 = vadd.f32 0.0, %v1453
    %v1455 = vpop.f32.mrb[0].mxu0
    %v1456 = vadd.f32 0.0, %v1455
    %v1457 = vpop.f32.mrb[0].mxu0
    %v1458 = vpop.f32.mrb[0].mxu0
    %1459 = vdwg.mxu0
    %v1460 = vadd.f32 %v1374, %v1413
    %v1461 = vadd.f32 %v1375, %v1415
    %v1462 = vadd.f32 %v1376, %v1454
    %v1463 = vadd.f32 %v1377, %v1456
    %v1464 = vxor.u32 %v1460, 2147483648
    %v1465 = vmul.f32 %v1464, 1.442695
    %v1466 = vpow.pop %v1465
    %v1467 = vadd.f32 %v1466, 1.0
    %v1468 = vrcp.pop %v1467
    %v1469 = vmul.f32 1.0, %v1468
    %v1470 = vxor.u32 %v1461, 2147483648
    %v1471 = vmul.f32 %v1470, 1.442695
    %v1472 = vpow.pop %v1471
    %v1473 = vadd.f32 %v1472, 1.0
    %v1474 = vrcp.pop %v1473
    %v1475 = vmul.f32 1.0, %v1474
    %v1476 = vtanh.pop %v1462
    %v1477 = vxor.u32 %v1463, 2147483648
    %v1478 = vmul.f32 %v1477, 1.442695
    %v1479 = vpow.pop %v1478
    %v1480 = vadd.f32 %v1479, 1.0
    %v1481 = vrcp.pop %v1480
    %v1482 = vmul.f32 1.0, %v1481
    %v1483 = vmul.f32 %v1475, %v1367
    %v1484 = vmul.f32 %v1469, %v1476
    %v1485 = vadd.f32 %v1483, %v1484
    %v1486 = vtanh.pop %v1485
    %v1487 = vmul.f32 %v1482, %v1486
    %v1488 = vpack.c.bf16 %v1487, %v1487
    %s1489 = scalar_lea.vmem %s6, 24
    %1490 = vst [vmem:[%s1489] sm:$0xf] %v1488
    %s1491 = scalar_lea.vmem [#allocation4], 224
    %v1492 = vld [vmem:[%s1491] sm:$0xff]
    %v1493 = vld [vmem:[%s1491 + $0x8] sm:$0xff]
    %v1494 = vld [vmem:[%s1491 + $0x10] sm:$0xff]
    %v1495 = vld [vmem:[%s1491 + $0x18] sm:$0xff]
    %1496 = vmatprep.subr.bf16.mxu0 %v608
    %1497 = vmatpush1.bf16.msra.mxu0 %v607
    %1498 = vmatprep.subr.bf16.mxu0 %v612
    %1499 = vmatpush1.bf16.msra.mxu0 %v611
    %1500 = vmatprep.subr.bf16.mxu0 %v616
    %1501 = vmatpush1.bf16.msra.mxu0 %v615
    %1502 = vmatprep.subr.bf16.mxu0 %v620
    %1503 = vmatpush1.bf16.msra.mxu0 %v619
    %1504 = vmatprep.subr.bf16.mxu0 %v624
    %1505 = vmatpush1.bf16.msra.mxu0 %v623
    %1506 = vmatprep.subr.bf16.mxu0 %v628
    %1507 = vmatpush1.bf16.msra.mxu0 %v627
    %1508 = vmatprep.subr.bf16.mxu0 %v632
    %1509 = vmatpush1.bf16.msra.mxu0 %v631
    %1510 = vmatprep.subr.bf16.mxu0 %v636
    %1511 = vmatpush1.bf16.msra.mxu0 %v635
    %1512 = vmatprep.subr.bf16.mxu0 0
    %1513 = vmatpush1.bf16.msra.mxu0 0
    %1514 = vmatprep.subr.bf16.mxu0 0
    %1515 = vmatpush1.bf16.msra.mxu0 0
    %1516 = vmatprep.subr.bf16.mxu0 0
    %1517 = vmatpush1.bf16.msra.mxu0 0
    %1518 = vmatprep.subr.bf16.mxu0 0
    %1519 = vmatpush1.bf16.msra.mxu0 0
    %1520 = vmatprep.subr.bf16.mxu0 0
    %1521 = vmatpush1.bf16.msra.mxu0 0
    %1522 = vmatprep.subr.bf16.mxu0 0
    %1523 = vmatpush1.bf16.msra.mxu0 0
    %1524 = vmatprep.subr.bf16.mxu0 0
    %1525 = vmatpush1.bf16.msra.mxu0 0
    %1526 = vmatprep.subr.bf16.mxu0 0
    %1527 = vmatpush1.bf16.msra.mxu0 0
    %1528 = vmatprep.mubr.bf16.mxu0 0
    %1529 = vmatmul.mubr.bf16.gmra.mrb[0].mxu0 %v1488
    %v1530 = vpop.f32.mrb[0].mxu0
    %v1531 = vadd.f32 0.0, %v1530
    %v1532 = vpop.f32.mrb[0].mxu0
    %v1533 = vadd.f32 0.0, %v1532
    %v1534 = vpop.f32.mrb[0].mxu0
    %v1535 = vpop.f32.mrb[0].mxu0
    %1536 = vdwg.mxu0
    %1537 = vmatprep.subr.bf16.mxu0 %v610
    %1538 = vmatpush1.bf16.msra.mxu0 %v609
    %1539 = vmatprep.subr.bf16.mxu0 %v614
    %1540 = vmatpush1.bf16.msra.mxu0 %v613
    %1541 = vmatprep.subr.bf16.mxu0 %v618
    %1542 = vmatpush1.bf16.msra.mxu0 %v617
    %1543 = vmatprep.subr.bf16.mxu0 %v622
    %1544 = vmatpush1.bf16.msra.mxu0 %v621
    %1545 = vmatprep.subr.bf16.mxu0 %v626
    %1546 = vmatpush1.bf16.msra.mxu0 %v625
    %1547 = vmatprep.subr.bf16.mxu0 %v630
    %1548 = vmatpush1.bf16.msra.mxu0 %v629
    %1549 = vmatprep.subr.bf16.mxu0 %v634
    %1550 = vmatpush1.bf16.msra.mxu0 %v633
    %1551 = vmatprep.subr.bf16.mxu0 %v638
    %1552 = vmatpush1.bf16.msra.mxu0 %v637
    %1553 = vmatprep.subr.bf16.mxu0 0
    %1554 = vmatpush1.bf16.msra.mxu0 0
    %1555 = vmatprep.subr.bf16.mxu0 0
    %1556 = vmatpush1.bf16.msra.mxu0 0
    %1557 = vmatprep.subr.bf16.mxu0 0
    %1558 = vmatpush1.bf16.msra.mxu0 0
    %1559 = vmatprep.subr.bf16.mxu0 0
    %1560 = vmatpush1.bf16.msra.mxu0 0
    %1561 = vmatprep.subr.bf16.mxu0 0
    %1562 = vmatpush1.bf16.msra.mxu0 0
    %1563 = vmatprep.subr.bf16.mxu0 0
    %1564 = vmatpush1.bf16.msra.mxu0 0
    %1565 = vmatprep.subr.bf16.mxu0 0
    %1566 = vmatpush1.bf16.msra.mxu0 0
    %1567 = vmatprep.subr.bf16.mxu0 0
    %1568 = vmatpush1.bf16.msra.mxu0 0
    %1569 = vmatprep.mubr.bf16.mxu0 0
    %1570 = vmatmul.mubr.bf16.gmra.mrb[0].mxu0 %v1488
    %v1571 = vpop.f32.mrb[0].mxu0
    %v1572 = vadd.f32 0.0, %v1571
    %v1573 = vpop.f32.mrb[0].mxu0
    %v1574 = vadd.f32 0.0, %v1573
    %v1575 = vpop.f32.mrb[0].mxu0
    %v1576 = vpop.f32.mrb[0].mxu0
    %1577 = vdwg.mxu0
    %v1578 = vadd.f32 %v1492, %v1531
    %v1579 = vadd.f32 %v1493, %v1533
    %v1580 = vadd.f32 %v1494, %v1572
    %v1581 = vadd.f32 %v1495, %v1574
    %v1582 = vxor.u32 %v1578, 2147483648
    %v1583 = vmul.f32 %v1582, 1.442695
    %v1584 = vpow.pop %v1583
    %v1585 = vadd.f32 %v1584, 1.0
    %v1586 = vrcp.pop %v1585
    %v1587 = vmul.f32 1.0, %v1586
    %v1588 = vxor.u32 %v1579, 2147483648
    %v1589 = vmul.f32 %v1588, 1.442695
    %v1590 = vpow.pop %v1589
    %v1591 = vadd.f32 %v1590, 1.0
    %v1592 = vrcp.pop %v1591
    %v1593 = vmul.f32 1.0, %v1592
    %v1594 = vtanh.pop %v1580
    %v1595 = vxor.u32 %v1581, 2147483648
    %v1596 = vmul.f32 %v1595, 1.442695
    %v1597 = vpow.pop %v1596
    %v1598 = vadd.f32 %v1597, 1.0
    %v1599 = vrcp.pop %v1598
    %v1600 = vmul.f32 1.0, %v1599
    %v1601 = vmul.f32 %v1593, %v1485
    %v1602 = vmul.f32 %v1587, %v1594
    %v1603 = vadd.f32 %v1601, %v1602
    %v1604 = vtanh.pop %v1603
    %v1605 = vmul.f32 %v1600, %v1604
    %v1606 = vpack.c.bf16 %v1605, %v1605
    %s1607 = scalar_lea.vmem %s6, 28
    %1608 = vst [vmem:[%s1607] sm:$0xf] %v1606
    %1609 = vst [vmem:[#allocation2] sm:$0xf] %v1606
    %1610 = vst [vmem:[#allocation3] sm:$0xff] %v1603
    %v1611 = vld [vmem:[#allocation2] sm:$0xf]
    %1612 = vst [vmem:[%s7] sm:$0xf] %v1611
    %v1613 = vld [vmem:[#allocation3] sm:$0xff]
    %1614 = vst [vmem:[%s8] sm:$0xff] %v1613
    // Predicated region
    $region34: #{rnnlm_forward.3} parent=1 // pred_check
      _
    $region35: #{rnnlm_forward.3} parent=1 // pred_check_branch
      %1616 = sbr.rel (0) target = $region37
    $region36: #{rnnlm_forward.3} parent=1 // pred_region
      _
    $region37: #{rnnlm_forward.3} parent=1 // pred_fallthru
      _
    // Predicated region
    $region38: #{rnnlm_forward.3} parent=1 // pred_check
      _
    $region39: #{rnnlm_forward.3} parent=1 // pred_check_branch
      %1618 = sbr.rel (0) target = $region41
    $region40: #{rnnlm_forward.3} parent=1 // pred_region
      _
    $region41: #{rnnlm_forward.3} parent=1 // pred_fallthru
      _
    // Predicated region
    $region42: #{rnnlm_forward.3} parent=1 // pred_check
      _
    $region43: #{rnnlm_forward.3} parent=1 // pred_check_branch
      %1620 = sbr.rel (0) target = $region45
    $region44: #{rnnlm_forward.3} parent=1 // pred_region
      _
    $region45: #{rnnlm_forward.3} parent=1 // pred_fallthru
      _
    // Predicated region
    $region46: #{rnnlm_forward.3} parent=1 // pred_check
      _
    $region47: #{rnnlm_forward.3} parent=1 // pred_check_branch
      %1622 = sbr.rel (0) target = $region49
    $region48: #{rnnlm_forward.3} parent=1 // pred_region
      _
    $region49: #{rnnlm_forward.3} parent=1 // pred_fallthru
      _
    // Predicated region
    $region50: #{rnnlm_forward.3} parent=1 // pred_check
      _
    $region51: #{rnnlm_forward.3} parent=1 // pred_check_branch
      %1624 = sbr.rel (0) target = $region53
    $region52: #{rnnlm_forward.3} parent=1 // pred_region
      _
    $region53: #{rnnlm_forward.3} parent=1 // pred_fallthru
      _
    // Predicated region
    $region54: #{rnnlm_forward.3} parent=1 // pred_check
      _
    $region55: #{rnnlm_forward.3} parent=1 // pred_check_branch
      %1626 = sbr.rel (0) target = $region57
    $region56: #{rnnlm_forward.3} parent=1 // pred_region
      _
    $region57: #{rnnlm_forward.3} parent=1 // pred_fallthru
      _
    %1627 = vsyncpa [#allocation6], 1

// kernel: rnnlm_forward.4
$region0: #{rnnlm_forward.4}
  #allocation0 [shape = 'u32[]', space=smem, size = 0x4, offset = 0x4, fixed_abs, tag = 'smem constant byte address 0x4 - core index']
  #allocation1 [shape = 'u32[144,128]{1,0:T(1,128)}', space=vmem, size = 0x12000, scoped, tag = 'internal scratch']
  #allocation2 [shape = 'bf16[8,128]{1,0:T(8,128)(2,1)}', space=vmem, size = 0x800, scoped, tag = 'scratch operand']
  #allocation3 [shape = 'f32[8,128]{1,0:T(8,128)}', space=vmem, size = 0x1000, scoped, tag = 'scratch operand']
  #allocation4 [shape = 'f32[8,8,512]{2,1,0:T(8,128)}', space=vmem, size = 0x20000, scoped, tag = 'scratch operand']
  %s0 = inlined_call_operand.vmem [shape: bf16[8,8,128], index: 0, kind: input, shape index: {}]
  %s1 = inlined_call_operand.vmem [shape: bf16[128,512], index: 1, kind: input, shape index: {}]
  %s2 = inlined_call_operand.vmem [shape: bf16[128,512], index: 2, kind: input, shape index: {}]
  %s3 = inlined_call_operand.vmem [shape: f32[1,512], index: 3, kind: input, shape index: {}]
  %s4 = inlined_call_operand.vmem [shape: bf16[8,128], index: 4, kind: input, shape index: {}]
  %s5 = inlined_call_operand.vmem [shape: f32[8,128], index: 5, kind: input, shape index: {}]
  %s6 = inlined_call_operand.vmem [shape: bf16[8,8,128], index: 6, kind: output, shape index: {0}]
  %s7 = inlined_call_operand.vmem [shape: bf16[8,128], index: 7, kind: output, shape index: {1}]
  %s8 = inlined_call_operand.vmem [shape: f32[8,128], index: 8, kind: output, shape index: {2}]
  %9 = xla_tuple %s6, %s7, %s8
  %s10 = sld [smem:[#allocation0]]
  $region54: #{rnnlm_forward.4} parent=0
    _
  %s12 = ssub.s32 1, %s10
  %s13 = scalar_select 0, %s12, %s10
  // Predicated region
  $region2: #{rnnlm_forward.4} parent=0 // pred_check
    _
  $region3: #{rnnlm_forward.4} parent=0 // pred_check_branch
    %15 = sbr.rel (0) target = $region5
  $region4: #{rnnlm_forward.4} parent=0 // pred_region
    _
  $region5: #{rnnlm_forward.4} parent=0 // pred_fallthru
    _
  // Predicated region
  $region6: #{rnnlm_forward.4} parent=0 // pred_check
    _
  $region7: #{rnnlm_forward.4} parent=0 // pred_check_branch
    %17 = sbr.rel (0) target = $region9
  $region8: #{rnnlm_forward.4} parent=0 // pred_region
    _
  $region9: #{rnnlm_forward.4} parent=0 // pred_fallthru
    _
  // Predicated region
  $region10: #{rnnlm_forward.4} parent=0 // pred_check
    _
  $region11: #{rnnlm_forward.4} parent=0 // pred_check_branch
    %19 = sbr.rel (0) target = $region13
  $region12: #{rnnlm_forward.4} parent=0 // pred_region
    _
  $region13: #{rnnlm_forward.4} parent=0 // pred_fallthru
    _
  // Predicated region
  $region14: #{rnnlm_forward.4} parent=0 // pred_check
    _
  $region15: #{rnnlm_forward.4} parent=0 // pred_check_branch
    %21 = sbr.rel (0) target = $region17
  $region16: #{rnnlm_forward.4} parent=0 // pred_region
    _
  $region17: #{rnnlm_forward.4} parent=0 // pred_fallthru
    _
  // Predicated region
  $region18: #{rnnlm_forward.4} parent=0 // pred_check
    _
  $region19: #{rnnlm_forward.4} parent=0 // pred_check_branch
    %23 = sbr.rel (0) target = $region21
  $region20: #{rnnlm_forward.4} parent=0 // pred_region
    _
  $region21: #{rnnlm_forward.4} parent=0 // pred_fallthru
    _
  // Predicated region
  $region22: #{rnnlm_forward.4} parent=0 // pred_check
    _
  $region23: #{rnnlm_forward.4} parent=0 // pred_check_branch
    %25 = sbr.rel (0) target = $region25
  $region24: #{rnnlm_forward.4} parent=0 // pred_region
    _
  $region25: #{rnnlm_forward.4} parent=0 // pred_fallthru
    _
  %p27 = scmp.eq.s32.totalorder 0, 0
  // Predicated region
  $region26: #{rnnlm_forward.4} parent=0 // pred_check
    %p28 = pneg %p27
  $region27: #{rnnlm_forward.4} parent=0 // pred_check_branch
    %30 = sbr.rel (%p28) target = $region29
  $region28: #{rnnlm_forward.4} parent=0 // pred_region
    %v31 = vld [vmem:[%s4] sm:$0xf]
    %32 = vst [vmem:[#allocation2] sm:$0xf] %v31
    %v33 = vld [vmem:[%s5] sm:$0xff]
    %34 = vst [vmem:[#allocation3] sm:$0xff] %v33
  $region29: #{rnnlm_forward.4} parent=0 // pred_fallthru
    _
  %v35 = vld [vmem:[%s0] sm:$0xf]
  %v36 = vld [vmem:[%s0 + $0x4] sm:$0xf]
  %v37 = vld [vmem:[%s0 + $0x8] sm:$0xf]
  %v38 = vld [vmem:[%s0 + $0xc] sm:$0xf]
  %v39 = vld [vmem:[%s0 + $0x10] sm:$0xf]
  %v40 = vld [vmem:[%s0 + $0x14] sm:$0xf]
  %v41 = vld [vmem:[%s0 + $0x18] sm:$0xf]
  %v42 = vld [vmem:[%s0 + $0x1c] sm:$0xf]
  %v43 = vld [vmem:[%s1] sm:$0xff]
  %v44 = vld [vmem:[%s1 + $0x8] sm:$0xff]
  %v45 = vld [vmem:[%s1 + $0x10] sm:$0xff]
  %v46 = vld [vmem:[%s1 + $0x18] sm:$0xff]
  %v47 = vld [vmem:[%s1 + $0x20] sm:$0xff]
  %v48 = vld [vmem:[%s1 + $0x28] sm:$0xff]
  %v49 = vld [vmem:[%s1 + $0x30] sm:$0xff]
  %v50 = vld [vmem:[%s1 + $0x38] sm:$0xff]
  %v51 = vld [vmem:[%s1 + $0x40] sm:$0xff]
  %v52 = vld [vmem:[%s1 + $0x48] sm:$0xff]
  %v53 = vld [vmem:[%s1 + $0x50] sm:$0xff]
  %v54 = vld [vmem:[%s1 + $0x58] sm:$0xff]
  %v55 = vld [vmem:[%s1 + $0x60] sm:$0xff]
  %v56 = vld [vmem:[%s1 + $0x68] sm:$0xff]
  %v57 = vld [vmem:[%s1 + $0x70] sm:$0xff]
  %v58 = vld [vmem:[%s1 + $0x78] sm:$0xff]
  %v59 = vld [vmem:[%s1 + $0x80] sm:$0xff]
  %v60 = vld [vmem:[%s1 + $0x88] sm:$0xff]
  %v61 = vld [vmem:[%s1 + $0x90] sm:$0xff]
  %v62 = vld [vmem:[%s1 + $0x98] sm:$0xff]
  %v63 = vld [vmem:[%s1 + $0xa0] sm:$0xff]
  %v64 = vld [vmem:[%s1 + $0xa8] sm:$0xff]
  %v65 = vld [vmem:[%s1 + $0xb0] sm:$0xff]
  %v66 = vld [vmem:[%s1 + $0xb8] sm:$0xff]
  %v67 = vld [vmem:[%s1 + $0xc0] sm:$0xff]
  %v68 = vld [vmem:[%s1 + $0xc8] sm:$0xff]
  %v69 = vld [vmem:[%s1 + $0xd0] sm:$0xff]
  %v70 = vld [vmem:[%s1 + $0xd8] sm:$0xff]
  %v71 = vld [vmem:[%s1 + $0xe0] sm:$0xff]
  %v72 = vld [vmem:[%s1 + $0xe8] sm:$0xff]
  %v73 = vld [vmem:[%s1 + $0xf0] sm:$0xff]
  %v74 = vld [vmem:[%s1 + $0xf8] sm:$0xff]
  %v75 = vld [vmem:[%s3] sm:$0xf]
  %v77 = vlaneseq
  %v78 = vshrl.u32 %v77, 7
  %v79 = vsub.s32 0, %v78
  %v80 = vrot.slane %v75, %v79
  %v81 = vlaneseq
  %v82 = vshrl.u32 %v81, 7
  %v83 = vsub.s32 1, %v82
  %v84 = vrot.slane %v75, %v83
  %v85 = vlaneseq
  %v86 = vshrl.u32 %v85, 7
  %v87 = vsub.s32 2, %v86
  %v88 = vrot.slane %v75, %v87
  %v89 = vlaneseq
  %v90 = vshrl.u32 %v89, 7
  %v91 = vsub.s32 3, %v90
  %v92 = vrot.slane %v75, %v91
  %v105 = vunpack.c.l.b16 %v35
  %v106 = vunpack.c.l.b16 %v36
  %v107 = vunpack.c.l.b16 %v37
  %v108 = vunpack.c.l.b16 %v38
  %v109 = vunpack.c.l.b16 %v39
  %v110 = vunpack.c.l.b16 %v40
  %v111 = vunpack.c.l.b16 %v41
  %v112 = vunpack.c.l.b16 %v42
  %v113 = vpack.c.b16 %v106, %v105
  %v114 = vpack.c.b16 %v108, %v107
  %v115 = vpack.c.b16 %v110, %v109
  %v116 = vpack.c.b16 %v112, %v111
  %v153 = vunpack.c.l.b16 %v43
  %v154 = vunpack.c.h.b16 %v43
  %v155 = vunpack.c.l.b16 %v44
  %v156 = vunpack.c.h.b16 %v44
  %v157 = vunpack.c.l.b16 %v45
  %v158 = vunpack.c.h.b16 %v45
  %v159 = vunpack.c.l.b16 %v46
  %v160 = vunpack.c.h.b16 %v46
  %v161 = vunpack.c.l.b16 %v47
  %v162 = vunpack.c.h.b16 %v47
  %v163 = vunpack.c.l.b16 %v48
  %v164 = vunpack.c.h.b16 %v48
  %v165 = vunpack.c.l.b16 %v49
  %v166 = vunpack.c.h.b16 %v49
  %v167 = vunpack.c.l.b16 %v50
  %v168 = vunpack.c.h.b16 %v50
  %v169 = vunpack.c.l.b16 %v51
  %v170 = vunpack.c.h.b16 %v51
  %v171 = vunpack.c.l.b16 %v52
  %v172 = vunpack.c.h.b16 %v52
  %v173 = vunpack.c.l.b16 %v53
  %v174 = vunpack.c.h.b16 %v53
  %v175 = vunpack.c.l.b16 %v54
  %v176 = vunpack.c.h.b16 %v54
  %v177 = vunpack.c.l.b16 %v55
  %v178 = vunpack.c.h.b16 %v55
  %v179 = vunpack.c.l.b16 %v56
  %v180 = vunpack.c.h.b16 %v56
  %v181 = vunpack.c.l.b16 %v57
  %v182 = vunpack.c.h.b16 %v57
  %v183 = vunpack.c.l.b16 %v58
  %v184 = vunpack.c.h.b16 %v58
  %v185 = vunpack.c.l.b16 %v59
  %v186 = vunpack.c.h.b16 %v59
  %v187 = vunpack.c.l.b16 %v60
  %v188 = vunpack.c.h.b16 %v60
  %v189 = vunpack.c.l.b16 %v61
  %v190 = vunpack.c.h.b16 %v61
  %v191 = vunpack.c.l.b16 %v62
  %v192 = vunpack.c.h.b16 %v62
  %v193 = vunpack.c.l.b16 %v63
  %v194 = vunpack.c.h.b16 %v63
  %v195 = vunpack.c.l.b16 %v64
  %v196 = vunpack.c.h.b16 %v64
  %v197 = vunpack.c.l.b16 %v65
  %v198 = vunpack.c.h.b16 %v65
  %v199 = vunpack.c.l.b16 %v66
  %v200 = vunpack.c.h.b16 %v66
  %v201 = vunpack.c.l.b16 %v67
  %v202 = vunpack.c.h.b16 %v67
  %v203 = vunpack.c.l.b16 %v68
  %v204 = vunpack.c.h.b16 %v68
  %v205 = vunpack.c.l.b16 %v69
  %v206 = vunpack.c.h.b16 %v69
  %v207 = vunpack.c.l.b16 %v70
  %v208 = vunpack.c.h.b16 %v70
  %v209 = vunpack.c.l.b16 %v71
  %v210 = vunpack.c.h.b16 %v71
  %v211 = vunpack.c.l.b16 %v72
  %v212 = vunpack.c.h.b16 %v72
  %v213 = vunpack.c.l.b16 %v73
  %v214 = vunpack.c.h.b16 %v73
  %v215 = vunpack.c.l.b16 %v74
  %v216 = vunpack.c.h.b16 %v74
  %v217 = vpack.c.b16 %v157, %v153
  %v218 = vpack.c.b16 %v158, %v154
  %v219 = vpack.c.b16 %v159, %v155
  %v220 = vpack.c.b16 %v160, %v156
  %v221 = vpack.c.b16 %v165, %v161
  %v222 = vpack.c.b16 %v166, %v162
  %v223 = vpack.c.b16 %v167, %v163
  %v224 = vpack.c.b16 %v168, %v164
  %v225 = vpack.c.b16 %v173, %v169
  %v226 = vpack.c.b16 %v174, %v170
  %v227 = vpack.c.b16 %v175, %v171
  %v228 = vpack.c.b16 %v176, %v172
  %v229 = vpack.c.b16 %v181, %v177
  %v230 = vpack.c.b16 %v182, %v178
  %v231 = vpack.c.b16 %v183, %v179
  %v232 = vpack.c.b16 %v184, %v180
  %v233 = vpack.c.b16 %v189, %v185
  %v234 = vpack.c.b16 %v190, %v186
  %v235 = vpack.c.b16 %v191, %v187
  %v236 = vpack.c.b16 %v192, %v188
  %v237 = vpack.c.b16 %v197, %v193
  %v238 = vpack.c.b16 %v198, %v194
  %v239 = vpack.c.b16 %v199, %v195
  %v240 = vpack.c.b16 %v200, %v196
  %v241 = vpack.c.b16 %v205, %v201
  %v242 = vpack.c.b16 %v206, %v202
  %v243 = vpack.c.b16 %v207, %v203
  %v244 = vpack.c.b16 %v208, %v204
  %v245 = vpack.c.b16 %v213, %v209
  %v246 = vpack.c.b16 %v214, %v210
  %v247 = vpack.c.b16 %v215, %v211
  %v248 = vpack.c.b16 %v216, %v212
  %281 = vmatprep.subr.bf16.mxu0 %v218
  %282 = vmatpush1.bf16.msra.mxu0 %v217
  %283 = vmatprep.subr.bf16.mxu0 %v222
  %284 = vmatpush1.bf16.msra.mxu0 %v221
  %285 = vmatprep.subr.bf16.mxu0 %v226
  %286 = vmatpush1.bf16.msra.mxu0 %v225
  %287 = vmatprep.subr.bf16.mxu0 %v230
  %288 = vmatpush1.bf16.msra.mxu0 %v229
  %289 = vmatprep.subr.bf16.mxu0 %v234
  %290 = vmatpush1.bf16.msra.mxu0 %v233
  %291 = vmatprep.subr.bf16.mxu0 %v238
  %292 = vmatpush1.bf16.msra.mxu0 %v237
  %293 = vmatprep.subr.bf16.mxu0 %v242
  %294 = vmatpush1.bf16.msra.mxu0 %v241
  %295 = vmatprep.subr.bf16.mxu0 %v246
  %296 = vmatpush1.bf16.msra.mxu0 %v245
  %297 = vmatprep.subr.bf16.mxu0 0
  %298 = vmatpush1.bf16.msra.mxu0 0
  %299 = vmatprep.subr.bf16.mxu0 0
  %300 = vmatpush1.bf16.msra.mxu0 0
  %301 = vmatprep.subr.bf16.mxu0 0
  %302 = vmatpush1.bf16.msra.mxu0 0
  %303 = vmatprep.subr.bf16.mxu0 0
  %304 = vmatpush1.bf16.msra.mxu0 0
  %305 = vmatprep.subr.bf16.mxu0 0
  %306 = vmatpush1.bf16.msra.mxu0 0
  %307 = vmatprep.subr.bf16.mxu0 0
  %308 = vmatpush1.bf16.msra.mxu0 0
  %309 = vmatprep.subr.bf16.mxu0 0
  %310 = vmatpush1.bf16.msra.mxu0 0
  %311 = vmatprep.subr.bf16.mxu0 0
  %312 = vmatpush1.bf16.msra.mxu0 0
  %313 = vmatprep.mubr.bf16.mxu0 0
  %314 = vmatmul.mubr.bf16.gmra.mrb[0].mxu0 %v113
  %v315 = vpop.f32.mrb[0].mxu0
  %v316 = vadd.f32 %v80, %v315
  %v317 = vpop.f32.mrb[0].mxu0
  %v318 = vadd.f32 %v84, %v317
  %v319 = vpop.f32.mrb[0].mxu0
  %v320 = vadd.f32 %v80, %v319
  %v321 = vpop.f32.mrb[0].mxu0
  %v322 = vadd.f32 %v84, %v321
  %323 = vmatprep.mubr.bf16.mxu0 0
  %324 = vmatmul.mubr.bf16.gmra.mrb[0].mxu0 %v114
  %v325 = vpop.f32.mrb[0].mxu0
  %v326 = vadd.f32 %v80, %v325
  %v327 = vpop.f32.mrb[0].mxu0
  %v328 = vadd.f32 %v84, %v327
  %v329 = vpop.f32.mrb[0].mxu0
  %v330 = vadd.f32 %v80, %v329
  %v331 = vpop.f32.mrb[0].mxu0
  %v332 = vadd.f32 %v84, %v331
  %333 = vmatprep.mubr.bf16.mxu0 0
  %334 = vmatmul.mubr.bf16.gmra.mrb[0].mxu0 %v115
  %v335 = vpop.f32.mrb[0].mxu0
  %v336 = vadd.f32 %v80, %v335
  %v337 = vpop.f32.mrb[0].mxu0
  %v338 = vadd.f32 %v84, %v337
  %v339 = vpop.f32.mrb[0].mxu0
  %v340 = vadd.f32 %v80, %v339
  %v341 = vpop.f32.mrb[0].mxu0
  %v342 = vadd.f32 %v84, %v341
  %343 = vmatprep.mubr.bf16.mxu0 0
  %344 = vmatmul.mubr.bf16.gmra.mrb[0].mxu0 %v116
  %v345 = vpop.f32.mrb[0].mxu0
  %v346 = vadd.f32 %v80, %v345
  %v347 = vpop.f32.mrb[0].mxu0
  %v348 = vadd.f32 %v84, %v347
  %v349 = vpop.f32.mrb[0].mxu0
  %v350 = vadd.f32 %v80, %v349
  %v351 = vpop.f32.mrb[0].mxu0
  %v352 = vadd.f32 %v84, %v351
  %353 = vdwg.mxu0
  %354 = vmatprep.subr.bf16.mxu0 %v220
  %355 = vmatpush1.bf16.msra.mxu0 %v219
  %356 = vmatprep.subr.bf16.mxu0 %v224
  %357 = vmatpush1.bf16.msra.mxu0 %v223
  %358 = vmatprep.subr.bf16.mxu0 %v228
  %359 = vmatpush1.bf16.msra.mxu0 %v227
  %360 = vmatprep.subr.bf16.mxu0 %v232
  %361 = vmatpush1.bf16.msra.mxu0 %v231
  %362 = vmatprep.subr.bf16.mxu0 %v236
  %363 = vmatpush1.bf16.msra.mxu0 %v235
  %364 = vmatprep.subr.bf16.mxu0 %v240
  %365 = vmatpush1.bf16.msra.mxu0 %v239
  %366 = vmatprep.subr.bf16.mxu0 %v244
  %367 = vmatpush1.bf16.msra.mxu0 %v243
  %368 = vmatprep.subr.bf16.mxu0 %v248
  %369 = vmatpush1.bf16.msra.mxu0 %v247
  %370 = vmatprep.subr.bf16.mxu0 0
  %371 = vmatpush1.bf16.msra.mxu0 0
  %372 = vmatprep.subr.bf16.mxu0 0
  %373 = vmatpush1.bf16.msra.mxu0 0
  %374 = vmatprep.subr.bf16.mxu0 0
  %375 = vmatpush1.bf16.msra.mxu0 0
  %376 = vmatprep.subr.bf16.mxu0 0
  %377 = vmatpush1.bf16.msra.mxu0 0
  %378 = vmatprep.subr.bf16.mxu0 0
  %379 = vmatpush1.bf16.msra.mxu0 0
  %380 = vmatprep.subr.bf16.mxu0 0
  %381 = vmatpush1.bf16.msra.mxu0 0
  %382 = vmatprep.subr.bf16.mxu0 0
  %383 = vmatpush1.bf16.msra.mxu0 0
  %384 = vmatprep.subr.bf16.mxu0 0
  %385 = vmatpush1.bf16.msra.mxu0 0
  %386 = vmatprep.mubr.bf16.mxu0 0
  %387 = vmatmul.mubr.bf16.gmra.mrb[0].mxu0 %v113
  %v388 = vpop.f32.mrb[0].mxu0
  %v389 = vadd.f32 %v88, %v388
  %v390 = vpop.f32.mrb[0].mxu0
  %v391 = vadd.f32 %v92, %v390
  %v392 = vpop.f32.mrb[0].mxu0
  %v393 = vadd.f32 %v88, %v392
  %v394 = vpop.f32.mrb[0].mxu0
  %v395 = vadd.f32 %v92, %v394
  %396 = vmatprep.mubr.bf16.mxu0 0
  %397 = vmatmul.mubr.bf16.gmra.mrb[0].mxu0 %v114
  %v398 = vpop.f32.mrb[0].mxu0
  %v399 = vadd.f32 %v88, %v398
  %v400 = vpop.f32.mrb[0].mxu0
  %v401 = vadd.f32 %v92, %v400
  %v402 = vpop.f32.mrb[0].mxu0
  %v403 = vadd.f32 %v88, %v402
  %v404 = vpop.f32.mrb[0].mxu0
  %v405 = vadd.f32 %v92, %v404
  %406 = vmatprep.mubr.bf16.mxu0 0
  %407 = vmatmul.mubr.bf16.gmra.mrb[0].mxu0 %v115
  %v408 = vpop.f32.mrb[0].mxu0
  %v409 = vadd.f32 %v88, %v408
  %v410 = vpop.f32.mrb[0].mxu0
  %v411 = vadd.f32 %v92, %v410
  %v412 = vpop.f32.mrb[0].mxu0
  %v413 = vadd.f32 %v88, %v412
  %v414 = vpop.f32.mrb[0].mxu0
  %v415 = vadd.f32 %v92, %v414
  %416 = vmatprep.mubr.bf16.mxu0 0
  %417 = vmatmul.mubr.bf16.gmra.mrb[0].mxu0 %v116
  %v418 = vpop.f32.mrb[0].mxu0
  %v419 = vadd.f32 %v88, %v418
  %v420 = vpop.f32.mrb[0].mxu0
  %v421 = vadd.f32 %v92, %v420
  %v422 = vpop.f32.mrb[0].mxu0
  %v423 = vadd.f32 %v88, %v422
  %v424 = vpop.f32.mrb[0].mxu0
  %v425 = vadd.f32 %v92, %v424
  %426 = vdwg.mxu0
  %427 = vst [vmem:[#allocation4] sm:$0xff] %v316
  %428 = vst [vmem:[#allocation4 + $0x8] sm:$0xff] %v318
  %429 = vst [vmem:[#allocation4 + $0x10] sm:$0xff] %v389
  %430 = vst [vmem:[#allocation4 + $0x18] sm:$0xff] %v391
  %431 = vst [vmem:[#allocation4 + $0x20] sm:$0xff] %v320
  %432 = vst [vmem:[#allocation4 + $0x28] sm:$0xff] %v322
  %433 = vst [vmem:[#allocation4 + $0x30] sm:$0xff] %v393
  %434 = vst [vmem:[#allocation4 + $0x38] sm:$0xff] %v395
  %435 = vst [vmem:[#allocation4 + $0x40] sm:$0xff] %v326
  %436 = vst [vmem:[#allocation4 + $0x48] sm:$0xff] %v328
  %437 = vst [vmem:[#allocation4 + $0x50] sm:$0xff] %v399
  %438 = vst [vmem:[#allocation4 + $0x58] sm:$0xff] %v401
  %439 = vst [vmem:[#allocation4 + $0x60] sm:$0xff] %v330
  %440 = vst [vmem:[#allocation4 + $0x68] sm:$0xff] %v332
  %441 = vst [vmem:[#allocation4 + $0x70] sm:$0xff] %v403
  %442 = vst [vmem:[#allocation4 + $0x78] sm:$0xff] %v405
  %443 = vst [vmem:[#allocation4 + $0x80] sm:$0xff] %v336
  %444 = vst [vmem:[#allocation4 + $0x88] sm:$0xff] %v338
  %445 = vst [vmem:[#allocation4 + $0x90] sm:$0xff] %v409
  %446 = vst [vmem:[#allocation4 + $0x98] sm:$0xff] %v411
  %447 = vst [vmem:[#allocation4 + $0xa0] sm:$0xff] %v340
  %448 = vst [vmem:[#allocation4 + $0xa8] sm:$0xff] %v342
  %449 = vst [vmem:[#allocation4 + $0xb0] sm:$0xff] %v413
  %450 = vst [vmem:[#allocation4 + $0xb8] sm:$0xff] %v415
  %451 = vst [vmem:[#allocation4 + $0xc0] sm:$0xff] %v346
  %452 = vst [vmem:[#allocation4 + $0xc8] sm:$0xff] %v348
  %453 = vst [vmem:[#allocation4 + $0xd0] sm:$0xff] %v419
  %454 = vst [vmem:[#allocation4 + $0xd8] sm:$0xff] %v421
  %455 = vst [vmem:[#allocation4 + $0xe0] sm:$0xff] %v350
  %456 = vst [vmem:[#allocation4 + $0xe8] sm:$0xff] %v352
  %457 = vst [vmem:[#allocation4 + $0xf0] sm:$0xff] %v423
  %458 = vst [vmem:[#allocation4 + $0xf8] sm:$0xff] %v425
  %v459 = vld [vmem:[%s2] sm:$0xff]
  %v460 = vld [vmem:[%s2 + $0x8] sm:$0xff]
  %v461 = vld [vmem:[%s2 + $0x10] sm:$0xff]
  %v462 = vld [vmem:[%s2 + $0x18] sm:$0xff]
  %v463 = vld [vmem:[%s2 + $0x20] sm:$0xff]
  %v464 = vld [vmem:[%s2 + $0x28] sm:$0xff]
  %v465 = vld [vmem:[%s2 + $0x30] sm:$0xff]
  %v466 = vld [vmem:[%s2 + $0x38] sm:$0xff]
  %v467 = vld [vmem:[%s2 + $0x40] sm:$0xff]
  %v468 = vld [vmem:[%s2 + $0x48] sm:$0xff]
  %v469 = vld [vmem:[%s2 + $0x50] sm:$0xff]
  %v470 = vld [vmem:[%s2 + $0x58] sm:$0xff]
  %v471 = vld [vmem:[%s2 + $0x60] sm:$0xff]
  %v472 = vld [vmem:[%s2 + $0x68] sm:$0xff]
  %v473 = vld [vmem:[%s2 + $0x70] sm:$0xff]
  %v474 = vld [vmem:[%s2 + $0x78] sm:$0xff]
  %v475 = vld [vmem:[%s2 + $0x80] sm:$0xff]
  %v476 = vld [vmem:[%s2 + $0x88] sm:$0xff]
  %v477 = vld [vmem:[%s2 + $0x90] sm:$0xff]
  %v478 = vld [vmem:[%s2 + $0x98] sm:$0xff]
  %v479 = vld [vmem:[%s2 + $0xa0] sm:$0xff]
  %v480 = vld [vmem:[%s2 + $0xa8] sm:$0xff]
  %v481 = vld [vmem:[%s2 + $0xb0] sm:$0xff]
  %v482 = vld [vmem:[%s2 + $0xb8] sm:$0xff]
  %v483 = vld [vmem:[%s2 + $0xc0] sm:$0xff]
  %v484 = vld [vmem:[%s2 + $0xc8] sm:$0xff]
  %v485 = vld [vmem:[%s2 + $0xd0] sm:$0xff]
  %v486 = vld [vmem:[%s2 + $0xd8] sm:$0xff]
  %v487 = vld [vmem:[%s2 + $0xe0] sm:$0xff]
  %v488 = vld [vmem:[%s2 + $0xe8] sm:$0xff]
  %v489 = vld [vmem:[%s2 + $0xf0] sm:$0xff]
  %v490 = vld [vmem:[%s2 + $0xf8] sm:$0xff]
  %v491 = vld [vmem:[#allocation2] sm:$0xf]
  %v492 = vld [vmem:[#allocation3] sm:$0xff]
  %v493 = vld [vmem:[#allocation4] sm:$0xff]
  %v494 = vld [vmem:[#allocation4 + $0x8] sm:$0xff]
  %v495 = vld [vmem:[#allocation4 + $0x10] sm:$0xff]
  %v496 = vld [vmem:[#allocation4 + $0x18] sm:$0xff]
  %v529 = vunpack.c.l.b16 %v459
  %v530 = vunpack.c.h.b16 %v459
  %v531 = vunpack.c.l.b16 %v460
  %v532 = vunpack.c.h.b16 %v460
  %v533 = vunpack.c.l.b16 %v461
  %v534 = vunpack.c.h.b16 %v461
  %v535 = vunpack.c.l.b16 %v462
  %v536 = vunpack.c.h.b16 %v462
  %v537 = vunpack.c.l.b16 %v463
  %v538 = vunpack.c.h.b16 %v463
  %v539 = vunpack.c.l.b16 %v464
  %v540 = vunpack.c.h.b16 %v464
  %v541 = vunpack.c.l.b16 %v465
  %v542 = vunpack.c.h.b16 %v465
  %v543 = vunpack.c.l.b16 %v466
  %v544 = vunpack.c.h.b16 %v466
  %v545 = vunpack.c.l.b16 %v467
  %v546 = vunpack.c.h.b16 %v467
  %v547 = vunpack.c.l.b16 %v468
  %v548 = vunpack.c.h.b16 %v468
  %v549 = vunpack.c.l.b16 %v469
  %v550 = vunpack.c.h.b16 %v469
  %v551 = vunpack.c.l.b16 %v470
  %v552 = vunpack.c.h.b16 %v470
  %v553 = vunpack.c.l.b16 %v471
  %v554 = vunpack.c.h.b16 %v471
  %v555 = vunpack.c.l.b16 %v472
  %v556 = vunpack.c.h.b16 %v472
  %v557 = vunpack.c.l.b16 %v473
  %v558 = vunpack.c.h.b16 %v473
  %v559 = vunpack.c.l.b16 %v474
  %v560 = vunpack.c.h.b16 %v474
  %v561 = vunpack.c.l.b16 %v475
  %v562 = vunpack.c.h.b16 %v475
  %v563 = vunpack.c.l.b16 %v476
  %v564 = vunpack.c.h.b16 %v476
  %v565 = vunpack.c.l.b16 %v477
  %v566 = vunpack.c.h.b16 %v477
  %v567 = vunpack.c.l.b16 %v478
  %v568 = vunpack.c.h.b16 %v478
  %v569 = vunpack.c.l.b16 %v479
  %v570 = vunpack.c.h.b16 %v479
  %v571 = vunpack.c.l.b16 %v480
  %v572 = vunpack.c.h.b16 %v480
  %v573 = vunpack.c.l.b16 %v481
  %v574 = vunpack.c.h.b16 %v481
  %v575 = vunpack.c.l.b16 %v482
  %v576 = vunpack.c.h.b16 %v482
  %v577 = vunpack.c.l.b16 %v483
  %v578 = vunpack.c.h.b16 %v483
  %v579 = vunpack.c.l.b16 %v484
  %v580 = vunpack.c.h.b16 %v484
  %v581 = vunpack.c.l.b16 %v485
  %v582 = vunpack.c.h.b16 %v485
  %v583 = vunpack.c.l.b16 %v486
  %v584 = vunpack.c.h.b16 %v486
  %v585 = vunpack.c.l.b16 %v487
  %v586 = vunpack.c.h.b16 %v487
  %v587 = vunpack.c.l.b16 %v488
  %v588 = vunpack.c.h.b16 %v488
  %v589 = vunpack.c.l.b16 %v489
  %v590 = vunpack.c.h.b16 %v489
  %v591 = vunpack.c.l.b16 %v490
  %v592 = vunpack.c.h.b16 %v490
  %v593 = vpack.c.b16 %v533, %v529
  %v594 = vpack.c.b16 %v534, %v530
  %v595 = vpack.c.b16 %v535, %v531
  %v596 = vpack.c.b16 %v536, %v532
  %v597 = vpack.c.b16 %v541, %v537
  %v598 = vpack.c.b16 %v542, %v538
  %v599 = vpack.c.b16 %v543, %v539
  %v600 = vpack.c.b16 %v544, %v540
  %v601 = vpack.c.b16 %v549, %v545
  %v602 = vpack.c.b16 %v550, %v546
  %v603 = vpack.c.b16 %v551, %v547
  %v604 = vpack.c.b16 %v552, %v548
  %v605 = vpack.c.b16 %v557, %v553
  %v606 = vpack.c.b16 %v558, %v554
  %v607 = vpack.c.b16 %v559, %v555
  %v608 = vpack.c.b16 %v560, %v556
  %v609 = vpack.c.b16 %v565, %v561
  %v610 = vpack.c.b16 %v566, %v562
  %v611 = vpack.c.b16 %v567, %v563
  %v612 = vpack.c.b16 %v568, %v564
  %v613 = vpack.c.b16 %v573, %v569
  %v614 = vpack.c.b16 %v574, %v570
  %v615 = vpack.c.b16 %v575, %v571
  %v616 = vpack.c.b16 %v576, %v572
  %v617 = vpack.c.b16 %v581, %v577
  %v618 = vpack.c.b16 %v582, %v578
  %v619 = vpack.c.b16 %v583, %v579
  %v620 = vpack.c.b16 %v584, %v580
  %v621 = vpack.c.b16 %v589, %v585
  %v622 = vpack.c.b16 %v590, %v586
  %v623 = vpack.c.b16 %v591, %v587
  %v624 = vpack.c.b16 %v592, %v588
  %657 = vmatprep.subr.bf16.mxu0 %v594
  %658 = vmatpush1.bf16.msra.mxu0 %v593
  %659 = vmatprep.subr.bf16.mxu0 %v598
  %660 = vmatpush1.bf16.msra.mxu0 %v597
  %661 = vmatprep.subr.bf16.mxu0 %v602
  %662 = vmatpush1.bf16.msra.mxu0 %v601
  %663 = vmatprep.subr.bf16.mxu0 %v606
  %664 = vmatpush1.bf16.msra.mxu0 %v605
  %665 = vmatprep.subr.bf16.mxu0 %v610
  %666 = vmatpush1.bf16.msra.mxu0 %v609
  %667 = vmatprep.subr.bf16.mxu0 %v614
  %668 = vmatpush1.bf16.msra.mxu0 %v613
  %669 = vmatprep.subr.bf16.mxu0 %v618
  %670 = vmatpush1.bf16.msra.mxu0 %v617
  %671 = vmatprep.subr.bf16.mxu0 %v622
  %672 = vmatpush1.bf16.msra.mxu0 %v621
  %673 = vmatprep.subr.bf16.mxu0 0
  %674 = vmatpush1.bf16.msra.mxu0 0
  %675 = vmatprep.subr.bf16.mxu0 0
  %676 = vmatpush1.bf16.msra.mxu0 0
  %677 = vmatprep.subr.bf16.mxu0 0
  %678 = vmatpush1.bf16.msra.mxu0 0
  %679 = vmatprep.subr.bf16.mxu0 0
  %680 = vmatpush1.bf16.msra.mxu0 0
  %681 = vmatprep.subr.bf16.mxu0 0
  %682 = vmatpush1.bf16.msra.mxu0 0
  %683 = vmatprep.subr.bf16.mxu0 0
  %684 = vmatpush1.bf16.msra.mxu0 0
  %685 = vmatprep.subr.bf16.mxu0 0
  %686 = vmatpush1.bf16.msra.mxu0 0
  %687 = vmatprep.subr.bf16.mxu0 0
  %688 = vmatpush1.bf16.msra.mxu0 0
  %689 = vmatprep.mubr.bf16.mxu0 0
  %690 = vmatmul.mubr.bf16.gmra.mrb[0].mxu0 %v491
  %v691 = vpop.f32.mrb[0].mxu0
  %v692 = vadd.f32 0.0, %v691
  %v693 = vpop.f32.mrb[0].mxu0
  %v694 = vadd.f32 0.0, %v693
  %v695 = vpop.f32.mrb[0].mxu0
  %v696 = vpop.f32.mrb[0].mxu0
  %697 = vdwg.mxu0
  %698 = vmatprep.subr.bf16.mxu0 %v596
  %699 = vmatpush1.bf16.msra.mxu0 %v595
  %700 = vmatprep.subr.bf16.mxu0 %v600
  %701 = vmatpush1.bf16.msra.mxu0 %v599
  %702 = vmatprep.subr.bf16.mxu0 %v604
  %703 = vmatpush1.bf16.msra.mxu0 %v603
  %704 = vmatprep.subr.bf16.mxu0 %v608
  %705 = vmatpush1.bf16.msra.mxu0 %v607
  %706 = vmatprep.subr.bf16.mxu0 %v612
  %707 = vmatpush1.bf16.msra.mxu0 %v611
  %708 = vmatprep.subr.bf16.mxu0 %v616
  %709 = vmatpush1.bf16.msra.mxu0 %v615
  %710 = vmatprep.subr.bf16.mxu0 %v620
  %711 = vmatpush1.bf16.msra.mxu0 %v619
  %712 = vmatprep.subr.bf16.mxu0 %v624
  %713 = vmatpush1.bf16.msra.mxu0 %v623
  %714 = vmatprep.subr.bf16.mxu0 0
  %715 = vmatpush1.bf16.msra.mxu0 0
  %716 = vmatprep.subr.bf16.mxu0 0
  %717 = vmatpush1.bf16.msra.mxu0 0
  %718 = vmatprep.subr.bf16.mxu0 0
  %719 = vmatpush1.bf16.msra.mxu0 0
  %720 = vmatprep.subr.bf16.mxu0 0
  %721 = vmatpush1.bf16.msra.mxu0 0
  %722 = vmatprep.subr.bf16.mxu0 0
  %723 = vmatpush1.bf16.msra.mxu0 0
  %724 = vmatprep.subr.bf16.mxu0 0
  %725 = vmatpush1.bf16.msra.mxu0 0
  %726 = vmatprep.subr.bf16.mxu0 0
  %727 = vmatpush1.bf16.msra.mxu0 0
  %728 = vmatprep.subr.bf16.mxu0 0
  %729 = vmatpush1.bf16.msra.mxu0 0
  %730 = vmatprep.mubr.bf16.mxu0 0
  %731 = vmatmul.mubr.bf16.gmra.mrb[0].mxu0 %v491
  %v732 = vpop.f32.mrb[0].mxu0
  %v733 = vadd.f32 0.0, %v732
  %v734 = vpop.f32.mrb[0].mxu0
  %v735 = vadd.f32 0.0, %v734
  %v736 = vpop.f32.mrb[0].mxu0
  %v737 = vpop.f32.mrb[0].mxu0
  %738 = vdwg.mxu0
  %v739 = vadd.f32 %v493, %v692
  %v740 = vadd.f32 %v494, %v694
  %v741 = vadd.f32 %v495, %v733
  %v742 = vadd.f32 %v496, %v735
  %v743 = vxor.u32 %v739, 2147483648
  %v744 = vmul.f32 %v743, 1.442695
  %v745 = vpow.pop %v744
  %v746 = vadd.f32 %v745, 1.0
  %v747 = vrcp.pop %v746
  %v748 = vmul.f32 1.0, %v747
  %v749 = vxor.u32 %v740, 2147483648
  %v750 = vmul.f32 %v749, 1.442695
  %v751 = vpow.pop %v750
  %v752 = vadd.f32 %v751, 1.0
  %v753 = vrcp.pop %v752
  %v754 = vmul.f32 1.0, %v753
  %v755 = vtanh.pop %v741
  %v756 = vxor.u32 %v742, 2147483648
  %v757 = vmul.f32 %v756, 1.442695
  %v758 = vpow.pop %v757
  %v759 = vadd.f32 %v758, 1.0
  %v760 = vrcp.pop %v759
  %v761 = vmul.f32 1.0, %v760
  %v762 = vmul.f32 %v754, %v492
  %v763 = vmul.f32 %v748, %v755
  %v764 = vadd.f32 %v762, %v763
  %v765 = vtanh.pop %v764
  %v766 = vmul.f32 %v761, %v765
  %v767 = vpack.c.bf16 %v766, %v766
  %768 = vst [vmem:[%s6] sm:$0xf] %v767
  %s769 = scalar_lea.vmem [#allocation4], 32
  %v770 = vld [vmem:[%s769] sm:$0xff]
  %v771 = vld [vmem:[%s769 + $0x8] sm:$0xff]
  %v772 = vld [vmem:[%s769 + $0x10] sm:$0xff]
  %v773 = vld [vmem:[%s769 + $0x18] sm:$0xff]
  %774 = vmatprep.subr.bf16.mxu0 %v594
  %775 = vmatpush1.bf16.msra.mxu0 %v593
  %776 = vmatprep.subr.bf16.mxu0 %v598
  %777 = vmatpush1.bf16.msra.mxu0 %v597
  %778 = vmatprep.subr.bf16.mxu0 %v602
  %779 = vmatpush1.bf16.msra.mxu0 %v601
  %780 = vmatprep.subr.bf16.mxu0 %v606
  %781 = vmatpush1.bf16.msra.mxu0 %v605
  %782 = vmatprep.subr.bf16.mxu0 %v610
  %783 = vmatpush1.bf16.msra.mxu0 %v609
  %784 = vmatprep.subr.bf16.mxu0 %v614
  %785 = vmatpush1.bf16.msra.mxu0 %v613
  %786 = vmatprep.subr.bf16.mxu0 %v618
  %787 = vmatpush1.bf16.msra.mxu0 %v617
  %788 = vmatprep.subr.bf16.mxu0 %v622
  %789 = vmatpush1.bf16.msra.mxu0 %v621
  %790 = vmatprep.subr.bf16.mxu0 0
  %791 = vmatpush1.bf16.msra.mxu0 0
  %792 = vmatprep.subr.bf16.mxu0 0
  %793 = vmatpush1.bf16.msra.mxu0 0
  %794 = vmatprep.subr.bf16.mxu0 0
  %795 = vmatpush1.bf16.msra.mxu0 0
  %796 = vmatprep.subr.bf16.mxu0 0
  %797 = vmatpush1.bf16.msra.mxu0 0
  %798 = vmatprep.subr.bf16.mxu0 0
  %799 = vmatpush1.bf16.msra.mxu0 0
  %800 = vmatprep.subr.bf16.mxu0 0
  %801 = vmatpush1.bf16.msra.mxu0 0
  %802 = vmatprep.subr.bf16.mxu0 0
  %803 = vmatpush1.bf16.msra.mxu0 0
  %804 = vmatprep.subr.bf16.mxu0 0
  %805 = vmatpush1.bf16.msra.mxu0 0
  %806 = vmatprep.mubr.bf16.mxu0 0
  %807 = vmatmul.mubr.bf16.gmra.mrb[0].mxu0 %v767
  %v808 = vpop.f32.mrb[0].mxu0
  %v809 = vadd.f32 0.0, %v808
  %v810 = vpop.f32.mrb[0].mxu0
  %v811 = vadd.f32 0.0, %v810
  %v812 = vpop.f32.mrb[0].mxu0
  %v813 = vpop.f32.mrb[0].mxu0
  %814 = vdwg.mxu0
  %815 = vmatprep.subr.bf16.mxu0 %v596
  %816 = vmatpush1.bf16.msra.mxu0 %v595
  %817 = vmatprep.subr.bf16.mxu0 %v600
  %818 = vmatpush1.bf16.msra.mxu0 %v599
  %819 = vmatprep.subr.bf16.mxu0 %v604
  %820 = vmatpush1.bf16.msra.mxu0 %v603
  %821 = vmatprep.subr.bf16.mxu0 %v608
  %822 = vmatpush1.bf16.msra.mxu0 %v607
  %823 = vmatprep.subr.bf16.mxu0 %v612
  %824 = vmatpush1.bf16.msra.mxu0 %v611
  %825 = vmatprep.subr.bf16.mxu0 %v616
  %826 = vmatpush1.bf16.msra.mxu0 %v615
  %827 = vmatprep.subr.bf16.mxu0 %v620
  %828 = vmatpush1.bf16.msra.mxu0 %v619
  %829 = vmatprep.subr.bf16.mxu0 %v624
  %830 = vmatpush1.bf16.msra.mxu0 %v623
  %831 = vmatprep.subr.bf16.mxu0 0
  %832 = vmatpush1.bf16.msra.mxu0 0
  %833 = vmatprep.subr.bf16.mxu0 0
  %834 = vmatpush1.bf16.msra.mxu0 0
  %835 = vmatprep.subr.bf16.mxu0 0
  %836 = vmatpush1.bf16.msra.mxu0 0
  %837 = vmatprep.subr.bf16.mxu0 0
  %838 = vmatpush1.bf16.msra.mxu0 0
  %839 = vmatprep.subr.bf16.mxu0 0
  %840 = vmatpush1.bf16.msra.mxu0 0
  %841 = vmatprep.subr.bf16.mxu0 0
  %842 = vmatpush1.bf16.msra.mxu0 0
  %843 = vmatprep.subr.bf16.mxu0 0
  %844 = vmatpush1.bf16.msra.mxu0 0
  %845 = vmatprep.subr.bf16.mxu0 0
  %846 = vmatpush1.bf16.msra.mxu0 0
  %847 = vmatprep.mubr.bf16.mxu0 0
  %848 = vmatmul.mubr.bf16.gmra.mrb[0].mxu0 %v767
  %v849 = vpop.f32.mrb[0].mxu0
  %v850 = vadd.f32 0.0, %v849
  %v851 = vpop.f32.mrb[0].mxu0
  %v852 = vadd.f32 0.0, %v851
  %v853 = vpop.f32.mrb[0].mxu0
  %v854 = vpop.f32.mrb[0].mxu0
  %855 = vdwg.mxu0
  %v856 = vadd.f32 %v770, %v809
  %v857 = vadd.f32 %v771, %v811
  %v858 = vadd.f32 %v772, %v850
  %v859 = vadd.f32 %v773, %v852
  %v860 = vxor.u32 %v856, 2147483648
  %v861 = vmul.f32 %v860, 1.442695
  %v862 = vpow.pop %v861
  %v863 = vadd.f32 %v862, 1.0
  %v864 = vrcp.pop %v863
  %v865 = vmul.f32 1.0, %v864
  %v866 = vxor.u32 %v857, 2147483648
  %v867 = vmul.f32 %v866, 1.442695
  %v868 = vpow.pop %v867
  %v869 = vadd.f32 %v868, 1.0
  %v870 = vrcp.pop %v869
  %v871 = vmul.f32 1.0, %v870
  %v872 = vtanh.pop %v858
  %v873 = vxor.u32 %v859, 2147483648
  %v874 = vmul.f32 %v873, 1.442695
  %v875 = vpow.pop %v874
  %v876 = vadd.f32 %v875, 1.0
  %v877 = vrcp.pop %v876
  %v878 = vmul.f32 1.0, %v877
  %v879 = vmul.f32 %v871, %v764
  %v880 = vmul.f32 %v865, %v872
  %v881 = vadd.f32 %v879, %v880
  %v882 = vtanh.pop %v881
  %v883 = vmul.f32 %v878, %v882
  %v884 = vpack.c.bf16 %v883, %v883
  %s885 = scalar_lea.vmem %s6, 4
  %886 = vst [vmem:[%s885] sm:$0xf] %v884
  %s887 = scalar_lea.vmem [#allocation4], 64
  %v888 = vld [vmem:[%s887] sm:$0xff]
  %v889 = vld [vmem:[%s887 + $0x8] sm:$0xff]
  %v890 = vld [vmem:[%s887 + $0x10] sm:$0xff]
  %v891 = vld [vmem:[%s887 + $0x18] sm:$0xff]
  %892 = vmatprep.subr.bf16.mxu0 %v594
  %893 = vmatpush1.bf16.msra.mxu0 %v593
  %894 = vmatprep.subr.bf16.mxu0 %v598
  %895 = vmatpush1.bf16.msra.mxu0 %v597
  %896 = vmatprep.subr.bf16.mxu0 %v602
  %897 = vmatpush1.bf16.msra.mxu0 %v601
  %898 = vmatprep.subr.bf16.mxu0 %v606
  %899 = vmatpush1.bf16.msra.mxu0 %v605
  %900 = vmatprep.subr.bf16.mxu0 %v610
  %901 = vmatpush1.bf16.msra.mxu0 %v609
  %902 = vmatprep.subr.bf16.mxu0 %v614
  %903 = vmatpush1.bf16.msra.mxu0 %v613
  %904 = vmatprep.subr.bf16.mxu0 %v618
  %905 = vmatpush1.bf16.msra.mxu0 %v617
  %906 = vmatprep.subr.bf16.mxu0 %v622
  %907 = vmatpush1.bf16.msra.mxu0 %v621
  %908 = vmatprep.subr.bf16.mxu0 0
  %909 = vmatpush1.bf16.msra.mxu0 0
  %910 = vmatprep.subr.bf16.mxu0 0
  %911 = vmatpush1.bf16.msra.mxu0 0
  %912 = vmatprep.subr.bf16.mxu0 0
  %913 = vmatpush1.bf16.msra.mxu0 0
  %914 = vmatprep.subr.bf16.mxu0 0
  %915 = vmatpush1.bf16.msra.mxu0 0
  %916 = vmatprep.subr.bf16.mxu0 0
  %917 = vmatpush1.bf16.msra.mxu0 0
  %918 = vmatprep.subr.bf16.mxu0 0
  %919 = vmatpush1.bf16.msra.mxu0 0
  %920 = vmatprep.subr.bf16.mxu0 0
  %921 = vmatpush1.bf16.msra.mxu0 0
  %922 = vmatprep.subr.bf16.mxu0 0
  %923 = vmatpush1.bf16.msra.mxu0 0
  %924 = vmatprep.mubr.bf16.mxu0 0
  %925 = vmatmul.mubr.bf16.gmra.mrb[0].mxu0 %v884
  %v926 = vpop.f32.mrb[0].mxu0
  %v927 = vadd.f32 0.0, %v926
  %v928 = vpop.f32.mrb[0].mxu0
  %v929 = vadd.f32 0.0, %v928
  %v930 = vpop.f32.mrb[0].mxu0
  %v931 = vpop.f32.mrb[0].mxu0
  %932 = vdwg.mxu0
  %933 = vmatprep.subr.bf16.mxu0 %v596
  %934 = vmatpush1.bf16.msra.mxu0 %v595
  %935 = vmatprep.subr.bf16.mxu0 %v600
  %936 = vmatpush1.bf16.msra.mxu0 %v599
  %937 = vmatprep.subr.bf16.mxu0 %v604
  %938 = vmatpush1.bf16.msra.mxu0 %v603
  %939 = vmatprep.subr.bf16.mxu0 %v608
  %940 = vmatpush1.bf16.msra.mxu0 %v607
  %941 = vmatprep.subr.bf16.mxu0 %v612
  %942 = vmatpush1.bf16.msra.mxu0 %v611
  %943 = vmatprep.subr.bf16.mxu0 %v616
  %944 = vmatpush1.bf16.msra.mxu0 %v615
  %945 = vmatprep.subr.bf16.mxu0 %v620
  %946 = vmatpush1.bf16.msra.mxu0 %v619
  %947 = vmatprep.subr.bf16.mxu0 %v624
  %948 = vmatpush1.bf16.msra.mxu0 %v623
  %949 = vmatprep.subr.bf16.mxu0 0
  %950 = vmatpush1.bf16.msra.mxu0 0
  %951 = vmatprep.subr.bf16.mxu0 0
  %952 = vmatpush1.bf16.msra.mxu0 0
  %953 = vmatprep.subr.bf16.mxu0 0
  %954 = vmatpush1.bf16.msra.mxu0 0
  %955 = vmatprep.subr.bf16.mxu0 0
  %956 = vmatpush1.bf16.msra.mxu0 0
  %957 = vmatprep.subr.bf16.mxu0 0
  %958 = vmatpush1.bf16.msra.mxu0 0
  %959 = vmatprep.subr.bf16.mxu0 0
  %960 = vmatpush1.bf16.msra.mxu0 0
  %961 = vmatprep.subr.bf16.mxu0 0
  %962 = vmatpush1.bf16.msra.mxu0 0
  %963 = vmatprep.subr.bf16.mxu0 0
  %964 = vmatpush1.bf16.msra.mxu0 0
  %965 = vmatprep.mubr.bf16.mxu0 0
  %966 = vmatmul.mubr.bf16.gmra.mrb[0].mxu0 %v884
  %v967 = vpop.f32.mrb[0].mxu0
  %v968 = vadd.f32 0.0, %v967
  %v969 = vpop.f32.mrb[0].mxu0
  %v970 = vadd.f32 0.0, %v969
  %v971 = vpop.f32.mrb[0].mxu0
  %v972 = vpop.f32.mrb[0].mxu0
  %973 = vdwg.mxu0
  %v974 = vadd.f32 %v888, %v927
  %v975 = vadd.f32 %v889, %v929
  %v976 = vadd.f32 %v890, %v968
  %v977 = vadd.f32 %v891, %v970
  %v978 = vxor.u32 %v974, 2147483648
  %v979 = vmul.f32 %v978, 1.442695
  %v980 = vpow.pop %v979
  %v981 = vadd.f32 %v980, 1.0
  %v982 = vrcp.pop %v981
  %v983 = vmul.f32 1.0, %v982
  %v984 = vxor.u32 %v975, 2147483648
  %v985 = vmul.f32 %v984, 1.442695
  %v986 = vpow.pop %v985
  %v987 = vadd.f32 %v986, 1.0
  %v988 = vrcp.pop %v987
  %v989 = vmul.f32 1.0, %v988
  %v990 = vtanh.pop %v976
  %v991 = vxor.u32 %v977, 2147483648
  %v992 = vmul.f32 %v991, 1.442695
  %v993 = vpow.pop %v992
  %v994 = vadd.f32 %v993, 1.0
  %v995 = vrcp.pop %v994
  %v996 = vmul.f32 1.0, %v995
  %v997 = vmul.f32 %v989, %v881
  %v998 = vmul.f32 %v983, %v990
  %v999 = vadd.f32 %v997, %v998
  %v1000 = vtanh.pop %v999
  %v1001 = vmul.f32 %v996, %v1000
  %v1002 = vpack.c.bf16 %v1001, %v1001
  %s1003 = scalar_lea.vmem %s6, 8
  %1004 = vst [vmem:[%s1003] sm:$0xf] %v1002
  %s1005 = scalar_lea.vmem [#allocation4], 96
  %v1006 = vld [vmem:[%s1005] sm:$0xff]
  %v1007 = vld [vmem:[%s1005 + $0x8] sm:$0xff]
  %v1008 = vld [vmem:[%s1005 + $0x10] sm:$0xff]
  %v1009 = vld [vmem:[%s1005 + $0x18] sm:$0xff]
  %1010 = vmatprep.subr.bf16.mxu0 %v594
  %1011 = vmatpush1.bf16.msra.mxu0 %v593
  %1012 = vmatprep.subr.bf16.mxu0 %v598
  %1013 = vmatpush1.bf16.msra.mxu0 %v597
  %1014 = vmatprep.subr.bf16.mxu0 %v602
  %1015 = vmatpush1.bf16.msra.mxu0 %v601
  %1016 = vmatprep.subr.bf16.mxu0 %v606
  %1017 = vmatpush1.bf16.msra.mxu0 %v605
  %1018 = vmatprep.subr.bf16.mxu0 %v610
  %1019 = vmatpush1.bf16.msra.mxu0 %v609
  %1020 = vmatprep.subr.bf16.mxu0 %v614
  %1021 = vmatpush1.bf16.msra.mxu0 %v613
  %1022 = vmatprep.subr.bf16.mxu0 %v618
  %1023 = vmatpush1.bf16.msra.mxu0 %v617
  %1024 = vmatprep.subr.bf16.mxu0 %v622
  %1025 = vmatpush1.bf16.msra.mxu0 %v621
  %1026 = vmatprep.subr.bf16.mxu0 0
  %1027 = vmatpush1.bf16.msra.mxu0 0
  %1028 = vmatprep.subr.bf16.mxu0 0
  %1029 = vmatpush1.bf16.msra.mxu0 0
  %1030 = vmatprep.subr.bf16.mxu0 0
  %1031 = vmatpush1.bf16.msra.mxu0 0
  %1032 = vmatprep.subr.bf16.mxu0 0
  %1033 = vmatpush1.bf16.msra.mxu0 0
  %1034 = vmatprep.subr.bf16.mxu0 0
  %1035 = vmatpush1.bf16.msra.mxu0 0
  %1036 = vmatprep.subr.bf16.mxu0 0
  %1037 = vmatpush1.bf16.msra.mxu0 0
  %1038 = vmatprep.subr.bf16.mxu0 0
  %1039 = vmatpush1.bf16.msra.mxu0 0
  %1040 = vmatprep.subr.bf16.mxu0 0
  %1041 = vmatpush1.bf16.msra.mxu0 0
  %1042 = vmatprep.mubr.bf16.mxu0 0
  %1043 = vmatmul.mubr.bf16.gmra.mrb[0].mxu0 %v1002
  %v1044 = vpop.f32.mrb[0].mxu0
  %v1045 = vadd.f32 0.0, %v1044
  %v1046 = vpop.f32.mrb[0].mxu0
  %v1047 = vadd.f32 0.0, %v1046
  %v1048 = vpop.f32.mrb[0].mxu0
  %v1049 = vpop.f32.mrb[0].mxu0
  %1050 = vdwg.mxu0
  %1051 = vmatprep.subr.bf16.mxu0 %v596
  %1052 = vmatpush1.bf16.msra.mxu0 %v595
  %1053 = vmatprep.subr.bf16.mxu0 %v600
  %1054 = vmatpush1.bf16.msra.mxu0 %v599
  %1055 = vmatprep.subr.bf16.mxu0 %v604
  %1056 = vmatpush1.bf16.msra.mxu0 %v603
  %1057 = vmatprep.subr.bf16.mxu0 %v608
  %1058 = vmatpush1.bf16.msra.mxu0 %v607
  %1059 = vmatprep.subr.bf16.mxu0 %v612
  %1060 = vmatpush1.bf16.msra.mxu0 %v611
  %1061 = vmatprep.subr.bf16.mxu0 %v616
  %1062 = vmatpush1.bf16.msra.mxu0 %v615
  %1063 = vmatprep.subr.bf16.mxu0 %v620
  %1064 = vmatpush1.bf16.msra.mxu0 %v619
  %1065 = vmatprep.subr.bf16.mxu0 %v624
  %1066 = vmatpush1.bf16.msra.mxu0 %v623
  %1067 = vmatprep.subr.bf16.mxu0 0
  %1068 = vmatpush1.bf16.msra.mxu0 0
  %1069 = vmatprep.subr.bf16.mxu0 0
  %1070 = vmatpush1.bf16.msra.mxu0 0
  %1071 = vmatprep.subr.bf16.mxu0 0
  %1072 = vmatpush1.bf16.msra.mxu0 0
  %1073 = vmatprep.subr.bf16.mxu0 0
  %1074 = vmatpush1.bf16.msra.mxu0 0
  %1075 = vmatprep.subr.bf16.mxu0 0
  %1076 = vmatpush1.bf16.msra.mxu0 0
  %1077 = vmatprep.subr.bf16.mxu0 0
  %1078 = vmatpush1.bf16.msra.mxu0 0
  %1079 = vmatprep.subr.bf16.mxu0 0
  %1080 = vmatpush1.bf16.msra.mxu0 0
  %1081 = vmatprep.subr.bf16.mxu0 0
  %1082 = vmatpush1.bf16.msra.mxu0 0
  %1083 = vmatprep.mubr.bf16.mxu0 0
  %1084 = vmatmul.mubr.bf16.gmra.mrb[0].mxu0 %v1002
  %v1085 = vpop.f32.mrb[0].mxu0
  %v1086 = vadd.f32 0.0, %v1085
  %v1087 = vpop.f32.mrb[0].mxu0
  %v1088 = vadd.f32 0.0, %v1087
  %v1089 = vpop.f32.mrb[0].mxu0
  %v1090 = vpop.f32.mrb[0].mxu0
  %1091 = vdwg.mxu0
  %v1092 = vadd.f32 %v1006, %v1045
  %v1093 = vadd.f32 %v1007, %v1047
  %v1094 = vadd.f32 %v1008, %v1086
  %v1095 = vadd.f32 %v1009, %v1088
  %v1096 = vxor.u32 %v1092, 2147483648
  %v1097 = vmul.f32 %v1096, 1.442695
  %v1098 = vpow.pop %v1097
  %v1099 = vadd.f32 %v1098, 1.0
  %v1100 = vrcp.pop %v1099
  %v1101 = vmul.f32 1.0, %v1100
  %v1102 = vxor.u32 %v1093, 2147483648
  %v1103 = vmul.f32 %v1102, 1.442695
  %v1104 = vpow.pop %v1103
  %v1105 = vadd.f32 %v1104, 1.0
  %v1106 = vrcp.pop %v1105
  %v1107 = vmul.f32 1.0, %v1106
  %v1108 = vtanh.pop %v1094
  %v1109 = vxor.u32 %v1095, 2147483648
  %v1110 = vmul.f32 %v1109, 1.442695
  %v1111 = vpow.pop %v1110
  %v1112 = vadd.f32 %v1111, 1.0
  %v1113 = vrcp.pop %v1112
  %v1114 = vmul.f32 1.0, %v1113
  %v1115 = vmul.f32 %v1107, %v999
  %v1116 = vmul.f32 %v1101, %v1108
  %v1117 = vadd.f32 %v1115, %v1116
  %v1118 = vtanh.pop %v1117
  %v1119 = vmul.f32 %v1114, %v1118
  %v1120 = vpack.c.bf16 %v1119, %v1119
  %s1121 = scalar_lea.vmem %s6, 12
  %1122 = vst [vmem:[%s1121] sm:$0xf] %v1120
  %s1123 = scalar_lea.vmem [#allocation4], 128
  %v1124 = vld [vmem:[%s1123] sm:$0xff]
  %v1125 = vld [vmem:[%s1123 + $0x8] sm:$0xff]
  %v1126 = vld [vmem:[%s1123 + $0x10] sm:$0xff]
  %v1127 = vld [vmem:[%s1123 + $0x18] sm:$0xff]
  %1128 = vmatprep.subr.bf16.mxu0 %v594
  %1129 = vmatpush1.bf16.msra.mxu0 %v593
  %1130 = vmatprep.subr.bf16.mxu0 %v598
  %1131 = vmatpush1.bf16.msra.mxu0 %v597
  %1132 = vmatprep.subr.bf16.mxu0 %v602
  %1133 = vmatpush1.bf16.msra.mxu0 %v601
  %1134 = vmatprep.subr.bf16.mxu0 %v606
  %1135 = vmatpush1.bf16.msra.mxu0 %v605
  %1136 = vmatprep.subr.bf16.mxu0 %v610
  %1137 = vmatpush1.bf16.msra.mxu0 %v609
  %1138 = vmatprep.subr.bf16.mxu0 %v614
  %1139 = vmatpush1.bf16.msra.mxu0 %v613
  %1140 = vmatprep.subr.bf16.mxu0 %v618
  %1141 = vmatpush1.bf16.msra.mxu0 %v617
  %1142 = vmatprep.subr.bf16.mxu0 %v622
  %1143 = vmatpush1.bf16.msra.mxu0 %v621
  %1144 = vmatprep.subr.bf16.mxu0 0
  %1145 = vmatpush1.bf16.msra.mxu0 0
  %1146 = vmatprep.subr.bf16.mxu0 0
  %1147 = vmatpush1.bf16.msra.mxu0 0
  %1148 = vmatprep.subr.bf16.mxu0 0
  %1149 = vmatpush1.bf16.msra.mxu0 0
  %1150 = vmatprep.subr.bf16.mxu0 0
  %1151 = vmatpush1.bf16.msra.mxu0 0
  %1152 = vmatprep.subr.bf16.mxu0 0
  %1153 = vmatpush1.bf16.msra.mxu0 0
  %1154 = vmatprep.subr.bf16.mxu0 0
  %1155 = vmatpush1.bf16.msra.mxu0 0
  %1156 = vmatprep.subr.bf16.mxu0 0
  %1157 = vmatpush1.bf16.msra.mxu0 0
  %1158 = vmatprep.subr.bf16.mxu0 0
  %1159 = vmatpush1.bf16.msra.mxu0 0
  %1160 = vmatprep.mubr.bf16.mxu0 0
  %1161 = vmatmul.mubr.bf16.gmra.mrb[0].mxu0 %v1120
  %v1162 = vpop.f32.mrb[0].mxu0
  %v1163 = vadd.f32 0.0, %v1162
  %v1164 = vpop.f32.mrb[0].mxu0
  %v1165 = vadd.f32 0.0, %v1164
  %v1166 = vpop.f32.mrb[0].mxu0
  %v1167 = vpop.f32.mrb[0].mxu0
  %1168 = vdwg.mxu0
  %1169 = vmatprep.subr.bf16.mxu0 %v596
  %1170 = vmatpush1.bf16.msra.mxu0 %v595
  %1171 = vmatprep.subr.bf16.mxu0 %v600
  %1172 = vmatpush1.bf16.msra.mxu0 %v599
  %1173 = vmatprep.subr.bf16.mxu0 %v604
  %1174 = vmatpush1.bf16.msra.mxu0 %v603
  %1175 = vmatprep.subr.bf16.mxu0 %v608
  %1176 = vmatpush1.bf16.msra.mxu0 %v607
  %1177 = vmatprep.subr.bf16.mxu0 %v612
  %1178 = vmatpush1.bf16.msra.mxu0 %v611
  %1179 = vmatprep.subr.bf16.mxu0 %v616
  %1180 = vmatpush1.bf16.msra.mxu0 %v615
  %1181 = vmatprep.subr.bf16.mxu0 %v620
  %1182 = vmatpush1.bf16.msra.mxu0 %v619
  %1183 = vmatprep.subr.bf16.mxu0 %v624
  %1184 = vmatpush1.bf16.msra.mxu0 %v623
  %1185 = vmatprep.subr.bf16.mxu0 0
  %1186 = vmatpush1.bf16.msra.mxu0 0
  %1187 = vmatprep.subr.bf16.mxu0 0
  %1188 = vmatpush1.bf16.msra.mxu0 0
  %1189 = vmatprep.subr.bf16.mxu0 0
  %1190 = vmatpush1.bf16.msra.mxu0 0
  %1191 = vmatprep.subr.bf16.mxu0 0
  %1192 = vmatpush1.bf16.msra.mxu0 0
  %1193 = vmatprep.subr.bf16.mxu0 0
  %1194 = vmatpush1.bf16.msra.mxu0 0
  %1195 = vmatprep.subr.bf16.mxu0 0
  %1196 = vmatpush1.bf16.msra.mxu0 0
  %1197 = vmatprep.subr.bf16.mxu0 0
  %1198 = vmatpush1.bf16.msra.mxu0 0
  %1199 = vmatprep.subr.bf16.mxu0 0
  %1200 = vmatpush1.bf16.msra.mxu0 0
  %1201 = vmatprep.mubr.bf16.mxu0 0
  %1202 = vmatmul.mubr.bf16.gmra.mrb[0].mxu0 %v1120
  %v1203 = vpop.f32.mrb[0].mxu0
  %v1204 = vadd.f32 0.0, %v1203
  %v1205 = vpop.f32.mrb[0].mxu0
  %v1206 = vadd.f32 0.0, %v1205
  %v1207 = vpop.f32.mrb[0].mxu0
  %v1208 = vpop.f32.mrb[0].mxu0
  %1209 = vdwg.mxu0
  %v1210 = vadd.f32 %v1124, %v1163
  %v1211 = vadd.f32 %v1125, %v1165
  %v1212 = vadd.f32 %v1126, %v1204
  %v1213 = vadd.f32 %v1127, %v1206
  %v1214 = vxor.u32 %v1210, 2147483648
  %v1215 = vmul.f32 %v1214, 1.442695
  %v1216 = vpow.pop %v1215
  %v1217 = vadd.f32 %v1216, 1.0
  %v1218 = vrcp.pop %v1217
  %v1219 = vmul.f32 1.0, %v1218
  %v1220 = vxor.u32 %v1211, 2147483648
  %v1221 = vmul.f32 %v1220, 1.442695
  %v1222 = vpow.pop %v1221
  %v1223 = vadd.f32 %v1222, 1.0
  %v1224 = vrcp.pop %v1223
  %v1225 = vmul.f32 1.0, %v1224
  %v1226 = vtanh.pop %v1212
  %v1227 = vxor.u32 %v1213, 2147483648
  %v1228 = vmul.f32 %v1227, 1.442695
  %v1229 = vpow.pop %v1228
  %v1230 = vadd.f32 %v1229, 1.0
  %v1231 = vrcp.pop %v1230
  %v1232 = vmul.f32 1.0, %v1231
  %v1233 = vmul.f32 %v1225, %v1117
  %v1234 = vmul.f32 %v1219, %v1226
  %v1235 = vadd.f32 %v1233, %v1234
  %v1236 = vtanh.pop %v1235
  %v1237 = vmul.f32 %v1232, %v1236
  %v1238 = vpack.c.bf16 %v1237, %v1237
  %s1239 = scalar_lea.vmem %s6, 16
  %1240 = vst [vmem:[%s1239] sm:$0xf] %v1238
  %s1241 = scalar_lea.vmem [#allocation4], 160
  %v1242 = vld [vmem:[%s1241] sm:$0xff]
  %v1243 = vld [vmem:[%s1241 + $0x8] sm:$0xff]
  %v1244 = vld [vmem:[%s1241 + $0x10] sm:$0xff]
  %v1245 = vld [vmem:[%s1241 + $0x18] sm:$0xff]
  %1246 = vmatprep.subr.bf16.mxu0 %v594
  %1247 = vmatpush1.bf16.msra.mxu0 %v593
  %1248 = vmatprep.subr.bf16.mxu0 %v598
  %1249 = vmatpush1.bf16.msra.mxu0 %v597
  %1250 = vmatprep.subr.bf16.mxu0 %v602
  %1251 = vmatpush1.bf16.msra.mxu0 %v601
  %1252 = vmatprep.subr.bf16.mxu0 %v606
  %1253 = vmatpush1.bf16.msra.mxu0 %v605
  %1254 = vmatprep.subr.bf16.mxu0 %v610
  %1255 = vmatpush1.bf16.msra.mxu0 %v609
  %1256 = vmatprep.subr.bf16.mxu0 %v614
  %1257 = vmatpush1.bf16.msra.mxu0 %v613
  %1258 = vmatprep.subr.bf16.mxu0 %v618
  %1259 = vmatpush1.bf16.msra.mxu0 %v617
  %1260 = vmatprep.subr.bf16.mxu0 %v622
  %1261 = vmatpush1.bf16.msra.mxu0 %v621
  %1262 = vmatprep.subr.bf16.mxu0 0
  %1263 = vmatpush1.bf16.msra.mxu0 0
  %1264 = vmatprep.subr.bf16.mxu0 0
  %1265 = vmatpush1.bf16.msra.mxu0 0
  %1266 = vmatprep.subr.bf16.mxu0 0
  %1267 = vmatpush1.bf16.msra.mxu0 0
  %1268 = vmatprep.subr.bf16.mxu0 0
  %1269 = vmatpush1.bf16.msra.mxu0 0
  %1270 = vmatprep.subr.bf16.mxu0 0
  %1271 = vmatpush1.bf16.msra.mxu0 0
  %1272 = vmatprep.subr.bf16.mxu0 0
  %1273 = vmatpush1.bf16.msra.mxu0 0
  %1274 = vmatprep.subr.bf16.mxu0 0
  %1275 = vmatpush1.bf16.msra.mxu0 0
  %1276 = vmatprep.subr.bf16.mxu0 0
  %1277 = vmatpush1.bf16.msra.mxu0 0
  %1278 = vmatprep.mubr.bf16.mxu0 0
  %1279 = vmatmul.mubr.bf16.gmra.mrb[0].mxu0 %v1238
  %v1280 = vpop.f32.mrb[0].mxu0
  %v1281 = vadd.f32 0.0, %v1280
  %v1282 = vpop.f32.mrb[0].mxu0
  %v1283 = vadd.f32 0.0, %v1282
  %v1284 = vpop.f32.mrb[0].mxu0
  %v1285 = vpop.f32.mrb[0].mxu0
  %1286 = vdwg.mxu0
  %1287 = vmatprep.subr.bf16.mxu0 %v596
  %1288 = vmatpush1.bf16.msra.mxu0 %v595
  %1289 = vmatprep.subr.bf16.mxu0 %v600
  %1290 = vmatpush1.bf16.msra.mxu0 %v599
  %1291 = vmatprep.subr.bf16.mxu0 %v604
  %1292 = vmatpush1.bf16.msra.mxu0 %v603
  %1293 = vmatprep.subr.bf16.mxu0 %v608
  %1294 = vmatpush1.bf16.msra.mxu0 %v607
  %1295 = vmatprep.subr.bf16.mxu0 %v612
  %1296 = vmatpush1.bf16.msra.mxu0 %v611
  %1297 = vmatprep.subr.bf16.mxu0 %v616
  %1298 = vmatpush1.bf16.msra.mxu0 %v615
  %1299 = vmatprep.subr.bf16.mxu0 %v620
  %1300 = vmatpush1.bf16.msra.mxu0 %v619
  %1301 = vmatprep.subr.bf16.mxu0 %v624
  %1302 = vmatpush1.bf16.msra.mxu0 %v623
  %1303 = vmatprep.subr.bf16.mxu0 0
  %1304 = vmatpush1.bf16.msra.mxu0 0
  %1305 = vmatprep.subr.bf16.mxu0 0
  %1306 = vmatpush1.bf16.msra.mxu0 0
  %1307 = vmatprep.subr.bf16.mxu0 0
  %1308 = vmatpush1.bf16.msra.mxu0 0
  %1309 = vmatprep.subr.bf16.mxu0 0
  %1310 = vmatpush1.bf16.msra.mxu0 0
  %1311 = vmatprep.subr.bf16.mxu0 0
  %1312 = vmatpush1.bf16.msra.mxu0 0
  %1313 = vmatprep.subr.bf16.mxu0 0
  %1314 = vmatpush1.bf16.msra.mxu0 0
  %1315 = vmatprep.subr.bf16.mxu0 0
  %1316 = vmatpush1.bf16.msra.mxu0 0
  %1317 = vmatprep.subr.bf16.mxu0 0
  %1318 = vmatpush1.bf16.msra.mxu0 0
  %1319 = vmatprep.mubr.bf16.mxu0 0
  %1320 = vmatmul.mubr.bf16.gmra.mrb[0].mxu0 %v1238
  %v1321 = vpop.f32.mrb[0].mxu0
  %v1322 = vadd.f32 0.0, %v1321
  %v1323 = vpop.f32.mrb[0].mxu0
  %v1324 = vadd.f32 0.0, %v1323
  %v1325 = vpop.f32.mrb[0].mxu0
  %v1326 = vpop.f32.mrb[0].mxu0
  %1327 = vdwg.mxu0
  %v1328 = vadd.f32 %v1242, %v1281
  %v1329 = vadd.f32 %v1243, %v1283
  %v1330 = vadd.f32 %v1244, %v1322
  %v1331 = vadd.f32 %v1245, %v1324
  %v1332 = vxor.u32 %v1328, 2147483648
  %v1333 = vmul.f32 %v1332, 1.442695
  %v1334 = vpow.pop %v1333
  %v1335 = vadd.f32 %v1334, 1.0
  %v1336 = vrcp.pop %v1335
  %v1337 = vmul.f32 1.0, %v1336
  %v1338 = vxor.u32 %v1329, 2147483648
  %v1339 = vmul.f32 %v1338, 1.442695
  %v1340 = vpow.pop %v1339
  %v1341 = vadd.f32 %v1340, 1.0
  %v1342 = vrcp.pop %v1341
  %v1343 = vmul.f32 1.0, %v1342
  %v1344 = vtanh.pop %v1330
  %v1345 = vxor.u32 %v1331, 2147483648
  %v1346 = vmul.f32 %v1345, 1.442695
  %v1347 = vpow.pop %v1346
  %v1348 = vadd.f32 %v1347, 1.0
  %v1349 = vrcp.pop %v1348
  %v1350 = vmul.f32 1.0, %v1349
  %v1351 = vmul.f32 %v1343, %v1235
  %v1352 = vmul.f32 %v1337, %v1344
  %v1353 = vadd.f32 %v1351, %v1352
  %v1354 = vtanh.pop %v1353
  %v1355 = vmul.f32 %v1350, %v1354
  %v1356 = vpack.c.bf16 %v1355, %v1355
  %s1357 = scalar_lea.vmem %s6, 20
  %1358 = vst [vmem:[%s1357] sm:$0xf] %v1356
  %s1359 = scalar_lea.vmem [#allocation4], 192
  %v1360 = vld [vmem:[%s1359] sm:$0xff]
  %v1361 = vld [vmem:[%s1359 + $0x8] sm:$0xff]
  %v1362 = vld [vmem:[%s1359 + $0x10] sm:$0xff]
  %v1363 = vld [vmem:[%s1359 + $0x18] sm:$0xff]
  %1364 = vmatprep.subr.bf16.mxu0 %v594
  %1365 = vmatpush1.bf16.msra.mxu0 %v593
  %1366 = vmatprep.subr.bf16.mxu0 %v598
  %1367 = vmatpush1.bf16.msra.mxu0 %v597
  %1368 = vmatprep.subr.bf16.mxu0 %v602
  %1369 = vmatpush1.bf16.msra.mxu0 %v601
  %1370 = vmatprep.subr.bf16.mxu0 %v606
  %1371 = vmatpush1.bf16.msra.mxu0 %v605
  %1372 = vmatprep.subr.bf16.mxu0 %v610
  %1373 = vmatpush1.bf16.msra.mxu0 %v609
  %1374 = vmatprep.subr.bf16.mxu0 %v614
  %1375 = vmatpush1.bf16.msra.mxu0 %v613
  %1376 = vmatprep.subr.bf16.mxu0 %v618
  %1377 = vmatpush1.bf16.msra.mxu0 %v617
  %1378 = vmatprep.subr.bf16.mxu0 %v622
  %1379 = vmatpush1.bf16.msra.mxu0 %v621
  %1380 = vmatprep.subr.bf16.mxu0 0
  %1381 = vmatpush1.bf16.msra.mxu0 0
  %1382 = vmatprep.subr.bf16.mxu0 0
  %1383 = vmatpush1.bf16.msra.mxu0 0
  %1384 = vmatprep.subr.bf16.mxu0 0
  %1385 = vmatpush1.bf16.msra.mxu0 0
  %1386 = vmatprep.subr.bf16.mxu0 0
  %1387 = vmatpush1.bf16.msra.mxu0 0
  %1388 = vmatprep.subr.bf16.mxu0 0
  %1389 = vmatpush1.bf16.msra.mxu0 0
  %1390 = vmatprep.subr.bf16.mxu0 0
  %1391 = vmatpush1.bf16.msra.mxu0 0
  %1392 = vmatprep.subr.bf16.mxu0 0
  %1393 = vmatpush1.bf16.msra.mxu0 0
  %1394 = vmatprep.subr.bf16.mxu0 0
  %1395 = vmatpush1.bf16.msra.mxu0 0
  %1396 = vmatprep.mubr.bf16.mxu0 0
  %1397 = vmatmul.mubr.bf16.gmra.mrb[0].mxu0 %v1356
  %v1398 = vpop.f32.mrb[0].mxu0
  %v1399 = vadd.f32 0.0, %v1398
  %v1400 = vpop.f32.mrb[0].mxu0
  %v1401 = vadd.f32 0.0, %v1400
  %v1402 = vpop.f32.mrb[0].mxu0
  %v1403 = vpop.f32.mrb[0].mxu0
  %1404 = vdwg.mxu0
  %1405 = vmatprep.subr.bf16.mxu0 %v596
  %1406 = vmatpush1.bf16.msra.mxu0 %v595
  %1407 = vmatprep.subr.bf16.mxu0 %v600
  %1408 = vmatpush1.bf16.msra.mxu0 %v599
  %1409 = vmatprep.subr.bf16.mxu0 %v604
  %1410 = vmatpush1.bf16.msra.mxu0 %v603
  %1411 = vmatprep.subr.bf16.mxu0 %v608
  %1412 = vmatpush1.bf16.msra.mxu0 %v607
  %1413 = vmatprep.subr.bf16.mxu0 %v612
  %1414 = vmatpush1.bf16.msra.mxu0 %v611
  %1415 = vmatprep.subr.bf16.mxu0 %v616
  %1416 = vmatpush1.bf16.msra.mxu0 %v615
  %1417 = vmatprep.subr.bf16.mxu0 %v620
  %1418 = vmatpush1.bf16.msra.mxu0 %v619
  %1419 = vmatprep.subr.bf16.mxu0 %v624
  %1420 = vmatpush1.bf16.msra.mxu0 %v623
  %1421 = vmatprep.subr.bf16.mxu0 0
  %1422 = vmatpush1.bf16.msra.mxu0 0
  %1423 = vmatprep.subr.bf16.mxu0 0
  %1424 = vmatpush1.bf16.msra.mxu0 0
  %1425 = vmatprep.subr.bf16.mxu0 0
  %1426 = vmatpush1.bf16.msra.mxu0 0
  %1427 = vmatprep.subr.bf16.mxu0 0
  %1428 = vmatpush1.bf16.msra.mxu0 0
  %1429 = vmatprep.subr.bf16.mxu0 0
  %1430 = vmatpush1.bf16.msra.mxu0 0
  %1431 = vmatprep.subr.bf16.mxu0 0
  %1432 = vmatpush1.bf16.msra.mxu0 0
  %1433 = vmatprep.subr.bf16.mxu0 0
  %1434 = vmatpush1.bf16.msra.mxu0 0
  %1435 = vmatprep.subr.bf16.mxu0 0
  %1436 = vmatpush1.bf16.msra.mxu0 0
  %1437 = vmatprep.mubr.bf16.mxu0 0
  %1438 = vmatmul.mubr.bf16.gmra.mrb[0].mxu0 %v1356
  %v1439 = vpop.f32.mrb[0].mxu0
  %v1440 = vadd.f32 0.0, %v1439
  %v1441 = vpop.f32.mrb[0].mxu0
  %v1442 = vadd.f32 0.0, %v1441
  %v1443 = vpop.f32.mrb[0].mxu0
  %v1444 = vpop.f32.mrb[0].mxu0
  %1445 = vdwg.mxu0
  %v1446 = vadd.f32 %v1360, %v1399
  %v1447 = vadd.f32 %v1361, %v1401
  %v1448 = vadd.f32 %v1362, %v1440
  %v1449 = vadd.f32 %v1363, %v1442
  %v1450 = vxor.u32 %v1446, 2147483648
  %v1451 = vmul.f32 %v1450, 1.442695
  %v1452 = vpow.pop %v1451
  %v1453 = vadd.f32 %v1452, 1.0
  %v1454 = vrcp.pop %v1453
  %v1455 = vmul.f32 1.0, %v1454
  %v1456 = vxor.u32 %v1447, 2147483648
  %v1457 = vmul.f32 %v1456, 1.442695
  %v1458 = vpow.pop %v1457
  %v1459 = vadd.f32 %v1458, 1.0
  %v1460 = vrcp.pop %v1459
  %v1461 = vmul.f32 1.0, %v1460
  %v1462 = vtanh.pop %v1448
  %v1463 = vxor.u32 %v1449, 2147483648
  %v1464 = vmul.f32 %v1463, 1.442695
  %v1465 = vpow.pop %v1464
  %v1466 = vadd.f32 %v1465, 1.0
  %v1467 = vrcp.pop %v1466
  %v1468 = vmul.f32 1.0, %v1467
  %v1469 = vmul.f32 %v1461, %v1353
  %v1470 = vmul.f32 %v1455, %v1462
  %v1471 = vadd.f32 %v1469, %v1470
  %v1472 = vtanh.pop %v1471
  %v1473 = vmul.f32 %v1468, %v1472
  %v1474 = vpack.c.bf16 %v1473, %v1473
  %s1475 = scalar_lea.vmem %s6, 24
  %1476 = vst [vmem:[%s1475] sm:$0xf] %v1474
  %s1477 = scalar_lea.vmem [#allocation4], 224
  %v1478 = vld [vmem:[%s1477] sm:$0xff]
  %v1479 = vld [vmem:[%s1477 + $0x8] sm:$0xff]
  %v1480 = vld [vmem:[%s1477 + $0x10] sm:$0xff]
  %v1481 = vld [vmem:[%s1477 + $0x18] sm:$0xff]
  %1482 = vmatprep.subr.bf16.mxu0 %v594
  %1483 = vmatpush1.bf16.msra.mxu0 %v593
  %1484 = vmatprep.subr.bf16.mxu0 %v598
  %1485 = vmatpush1.bf16.msra.mxu0 %v597
  %1486 = vmatprep.subr.bf16.mxu0 %v602
  %1487 = vmatpush1.bf16.msra.mxu0 %v601
  %1488 = vmatprep.subr.bf16.mxu0 %v606
  %1489 = vmatpush1.bf16.msra.mxu0 %v605
  %1490 = vmatprep.subr.bf16.mxu0 %v610
  %1491 = vmatpush1.bf16.msra.mxu0 %v609
  %1492 = vmatprep.subr.bf16.mxu0 %v614
  %1493 = vmatpush1.bf16.msra.mxu0 %v613
  %1494 = vmatprep.subr.bf16.mxu0 %v618
  %1495 = vmatpush1.bf16.msra.mxu0 %v617
  %1496 = vmatprep.subr.bf16.mxu0 %v622
  %1497 = vmatpush1.bf16.msra.mxu0 %v621
  %1498 = vmatprep.subr.bf16.mxu0 0
  %1499 = vmatpush1.bf16.msra.mxu0 0
  %1500 = vmatprep.subr.bf16.mxu0 0
  %1501 = vmatpush1.bf16.msra.mxu0 0
  %1502 = vmatprep.subr.bf16.mxu0 0
  %1503 = vmatpush1.bf16.msra.mxu0 0
  %1504 = vmatprep.subr.bf16.mxu0 0
  %1505 = vmatpush1.bf16.msra.mxu0 0
  %1506 = vmatprep.subr.bf16.mxu0 0
  %1507 = vmatpush1.bf16.msra.mxu0 0
  %1508 = vmatprep.subr.bf16.mxu0 0
  %1509 = vmatpush1.bf16.msra.mxu0 0
  %1510 = vmatprep.subr.bf16.mxu0 0
  %1511 = vmatpush1.bf16.msra.mxu0 0
  %1512 = vmatprep.subr.bf16.mxu0 0
  %1513 = vmatpush1.bf16.msra.mxu0 0
  %1514 = vmatprep.mubr.bf16.mxu0 0
  %1515 = vmatmul.mubr.bf16.gmra.mrb[0].mxu0 %v1474
  %v1516 = vpop.f32.mrb[0].mxu0
  %v1517 = vadd.f32 0.0, %v1516
  %v1518 = vpop.f32.mrb[0].mxu0
  %v1519 = vadd.f32 0.0, %v1518
  %v1520 = vpop.f32.mrb[0].mxu0
  %v1521 = vpop.f32.mrb[0].mxu0
  %1522 = vdwg.mxu0
  %1523 = vmatprep.subr.bf16.mxu0 %v596
  %1524 = vmatpush1.bf16.msra.mxu0 %v595
  %1525 = vmatprep.subr.bf16.mxu0 %v600
  %1526 = vmatpush1.bf16.msra.mxu0 %v599
  %1527 = vmatprep.subr.bf16.mxu0 %v604
  %1528 = vmatpush1.bf16.msra.mxu0 %v603
  %1529 = vmatprep.subr.bf16.mxu0 %v608
  %1530 = vmatpush1.bf16.msra.mxu0 %v607
  %1531 = vmatprep.subr.bf16.mxu0 %v612
  %1532 = vmatpush1.bf16.msra.mxu0 %v611
  %1533 = vmatprep.subr.bf16.mxu0 %v616
  %1534 = vmatpush1.bf16.msra.mxu0 %v615
  %1535 = vmatprep.subr.bf16.mxu0 %v620
  %1536 = vmatpush1.bf16.msra.mxu0 %v619
  %1537 = vmatprep.subr.bf16.mxu0 %v624
  %1538 = vmatpush1.bf16.msra.mxu0 %v623
  %1539 = vmatprep.subr.bf16.mxu0 0
  %1540 = vmatpush1.bf16.msra.mxu0 0
  %1541 = vmatprep.subr.bf16.mxu0 0
  %1542 = vmatpush1.bf16.msra.mxu0 0
  %1543 = vmatprep.subr.bf16.mxu0 0
  %1544 = vmatpush1.bf16.msra.mxu0 0
  %1545 = vmatprep.subr.bf16.mxu0 0
  %1546 = vmatpush1.bf16.msra.mxu0 0
  %1547 = vmatprep.subr.bf16.mxu0 0
  %1548 = vmatpush1.bf16.msra.mxu0 0
  %1549 = vmatprep.subr.bf16.mxu0 0
  %1550 = vmatpush1.bf16.msra.mxu0 0
  %1551 = vmatprep.subr.bf16.mxu0 0
  %1552 = vmatpush1.bf16.msra.mxu0 0
  %1553 = vmatprep.subr.bf16.mxu0 0
  %1554 = vmatpush1.bf16.msra.mxu0 0
  %1555 = vmatprep.mubr.bf16.mxu0 0
  %1556 = vmatmul.mubr.bf16.gmra.mrb[0].mxu0 %v1474
  %v1557 = vpop.f32.mrb[0].mxu0
  %v1558 = vadd.f32 0.0, %v1557
  %v1559 = vpop.f32.mrb[0].mxu0
  %v1560 = vadd.f32 0.0, %v1559
  %v1561 = vpop.f32.mrb[0].mxu0
  %v1562 = vpop.f32.mrb[0].mxu0
  %1563 = vdwg.mxu0
  %v1564 = vadd.f32 %v1478, %v1517
  %v1565 = vadd.f32 %v1479, %v1519
  %v1566 = vadd.f32 %v1480, %v1558
  %v1567 = vadd.f32 %v1481, %v1560
  %v1568 = vxor.u32 %v1564, 2147483648
  %v1569 = vmul.f32 %v1568, 1.442695
  %v1570 = vpow.pop %v1569
  %v1571 = vadd.f32 %v1570, 1.0
  %v1572 = vrcp.pop %v1571
  %v1573 = vmul.f32 1.0, %v1572
  %v1574 = vxor.u32 %v1565, 2147483648
  %v1575 = vmul.f32 %v1574, 1.442695
  %v1576 = vpow.pop %v1575
  %v1577 = vadd.f32 %v1576, 1.0
  %v1578 = vrcp.pop %v1577
  %v1579 = vmul.f32 1.0, %v1578
  %v1580 = vtanh.pop %v1566
  %v1581 = vxor.u32 %v1567, 2147483648
  %v1582 = vmul.f32 %v1581, 1.442695
  %v1583 = vpow.pop %v1582
  %v1584 = vadd.f32 %v1583, 1.0
  %v1585 = vrcp.pop %v1584
  %v1586 = vmul.f32 1.0, %v1585
  %v1587 = vmul.f32 %v1579, %v1471
  %v1588 = vmul.f32 %v1573, %v1580
  %v1589 = vadd.f32 %v1587, %v1588
  %v1590 = vtanh.pop %v1589
  %v1591 = vmul.f32 %v1586, %v1590
  %v1592 = vpack.c.bf16 %v1591, %v1591
  %s1593 = scalar_lea.vmem %s6, 28
  %1594 = vst [vmem:[%s1593] sm:$0xf] %v1592
  %1595 = vst [vmem:[#allocation2] sm:$0xf] %v1592
  %1596 = vst [vmem:[#allocation3] sm:$0xff] %v1589
  %v1597 = vld [vmem:[#allocation2] sm:$0xf]
  %1598 = vst [vmem:[%s7] sm:$0xf] %v1597
  %v1599 = vld [vmem:[#allocation3] sm:$0xff]
  %1600 = vst [vmem:[%s8] sm:$0xff] %v1599
  // Predicated region
  $region30: #{rnnlm_forward.4} parent=0 // pred_check
    _
  $region31: #{rnnlm_forward.4} parent=0 // pred_check_branch
    %1602 = sbr.rel (0) target = $region33
  $region32: #{rnnlm_forward.4} parent=0 // pred_region
    _
  $region33: #{rnnlm_forward.4} parent=0 // pred_fallthru
    _
  // Predicated region
  $region34: #{rnnlm_forward.4} parent=0 // pred_check
    _
  $region35: #{rnnlm_forward.4} parent=0 // pred_check_branch
    %1604 = sbr.rel (0) target = $region37
  $region36: #{rnnlm_forward.4} parent=0 // pred_region
    _
  $region37: #{rnnlm_forward.4} parent=0 // pred_fallthru
    _
  // Predicated region
  $region38: #{rnnlm_forward.4} parent=0 // pred_check
    _
  $region39: #{rnnlm_forward.4} parent=0 // pred_check_branch
    %1606 = sbr.rel (0) target = $region41
  $region40: #{rnnlm_forward.4} parent=0 // pred_region
    _
  $region41: #{rnnlm_forward.4} parent=0 // pred_fallthru
    _
  // Predicated region
  $region42: #{rnnlm_forward.4} parent=0 // pred_check
    _
  $region43: #{rnnlm_forward.4} parent=0 // pred_check_branch
    %1608 = sbr.rel (0) target = $region45
  $region44: #{rnnlm_forward.4} parent=0 // pred_region
    _
  $region45: #{rnnlm_forward.4} parent=0 // pred_fallthru
    _
  // Predicated region
  $region46: #{rnnlm_forward.4} parent=0 // pred_check
    _
  $region47: #{rnnlm_forward.4} parent=0 // pred_check_branch
    %1610 = sbr.rel (0) target = $region49
  $region48: #{rnnlm_forward.4} parent=0 // pred_region
    _
  $region49: #{rnnlm_forward.4} parent=0 // pred_fallthru
    _
  // Predicated region
  $region50: #{rnnlm_forward.4} parent=0 // pred_check
    _
  $region51: #{rnnlm_forward.4} parent=0 // pred_check_branch
    %1612 = sbr.rel (0) target = $region53
  $region52: #{rnnlm_forward.4} parent=0 // pred_region
    _
  $region53: #{rnnlm_forward.4} parent=0 // pred_fallthru
    _

</llo_original>
